<compile_context>
chip_gen: v5e
topology: v5e:2x2
jax: 0.10.0
libtpu: 0.0.40
codegen_flags: <defaults>
</compile_context>

<pallas_src>
import jax
import jax.numpy as jnp
from jax.experimental import pallas as pl
from jax.experimental.pallas import tpu as pltpu


def add_conv1x1_kernel(a_ref, b_ref, w_ref, s_ref, o_ref):
    # a_ref, b_ref: (Cin, M)  f32  full blocks of the two NCHW inputs (free reshape)
    # w_ref:        (TCO, Cin) int8 quantized weight tile (rows = output channels)
    # s_ref:        (TCO, 1)   f32  per-output-channel dequant scale
    # o_ref:        (TCO, M)   f32  output tile
    x = (a_ref[...] + b_ref[...]).astype(jnp.bfloat16)  # VPU add + cast, negligible
    # int8 -> f32 -> bf16: both legs are plain Mosaic casts; hidden under weight DMA.
    w = w_ref[...].astype(jnp.float32).astype(jnp.bfloat16)
    acc = jnp.dot(w, x, preferred_element_type=jnp.float32)
    # Fold the per-channel scale into the f32 accumulator after the dot.
    o_ref[...] = (acc * s_ref[...]).astype(o_ref.dtype)


def prepare_weight(weight):
    """One-time prep OUTSIDE the hot path.

    (Cout, Cin, 1, 1) f32  ->  (int8 weight (Cout, Cin), f32 scale (Cout, 1))
    Symmetric per-output-channel quantization; all int8 values are exactly
    representable in bf16, so the in-kernel dequant is lossless w.r.t. this encoding.
    """
    Cout, Cin = weight.shape[0], weight.shape[1]
    w2 = weight.reshape(Cout, Cin).astype(jnp.float32)
    amax = jnp.max(jnp.abs(w2), axis=1, keepdims=True)           # (Cout, 1)
    scale = jnp.where(amax > 0.0, amax / 127.0, 1.0)             # (Cout, 1) f32
    wq = jnp.clip(jnp.round(w2 / scale), -127.0, 127.0).astype(jnp.int8)
    return wq, scale


def _default_tco(cout):
    """Chip-aware output-channel tile (per perf review)."""
    try:
        kind = jax.devices()[0].device_kind.lower()
    except Exception:  # pragma: no cover - defensive
        kind = ""
    if "v7" in kind or "7x" in kind:
        return 576          # grid=(4,): 2 steps per TensorCore, intra-core pipelining
    if "v6" in kind:
        return cout         # grid=(1,): drop per-step overhead on single-TC v6e
    return 1152             # v5e / unknown: grid=(2,)


def add_conv1x1(x718, x703, wq, scale, *, tco=None):
    """x718, x703: (N, Cin, H, W) f32; wq: (Cout, Cin) int8; scale: (Cout, 1) f32.

    Returns (N, Cout, H, W) f32 == Conv2d(Cin, Cout, 1, bias=False)(x718 + x703)
    with weight-only int8 quantization.
    """
    N, Cin, H, W = x718.shape
    Cout = wq.shape[0]
    M = N * H * W
    assert N == 1, "zero-transpose path assumes N == 1 (NCHW reshape == (Cin, H*W))"

    if tco is None:
        tco = _default_tco(Cout)
    assert Cout % tco == 0 and tco % 32 == 0, "tco must evenly tile Cout (int8 sublane tiling)"

    # Free reshapes (no data movement): NCHW -> (Cin, M)
    a = x718.reshape(Cin, M)
    b = x703.reshape(Cin, M)

    grid = (Cout // tco,)

    flops = 2 * Cout * Cin * M
    bytes_accessed = (
        Cout * Cin * 1        # int8 weight (dominant read)
        + Cout * 4            # per-channel scales
        + 2 * Cin * M * 4     # the two f32 activations
        + Cout * M * 4        # f32 output writeback
    )

    out_flat = pl.pallas_call(
        add_conv1x1_kernel,
        out_shape=jax.ShapeDtypeStruct((Cout, M), jnp.float32),
        grid_spec=pltpu.PrefetchScalarGridSpec(
            num_scalar_prefetch=0,
            grid=grid,
            in_specs=[
                pl.BlockSpec((Cin, M), lambda j: (0, 0)),    # x718 (full, stays resident)
                pl.BlockSpec((Cin, M), lambda j: (0, 0)),    # x703 (full, stays resident)
                pl.BlockSpec((tco, Cin), lambda j: (j, 0)),  # int8 weight tile (real traffic)
                pl.BlockSpec((tco, 1), lambda j: (j, 0)),    # per-channel scale tile
            ],
            out_specs=pl.BlockSpec((tco, M), lambda j: (j, 0)),
        ),
        compiler_params=pltpu.CompilerParams(
            dimension_semantics=("parallel",),
        ),
        cost_estimate=pl.CostEstimate(
            flops=flops, transcendentals=0, bytes_accessed=bytes_accessed
        ),
    )(a, b, wq, scale)

    # Free reshape: (Cout, M) -> (N, Cout, H, W)
    return out_flat.reshape(N, Cout, H, W)


if __name__ == "__main__":
    key = jax.random.PRNGKey(0)
    k1, k2, k3 = jax.random.split(key, 3)

    N, Cin, H, W, Cout = 1, 384, 7, 7, 2304

    x718 = jax.random.normal(k1, (N, Cin, H, W), dtype=jnp.float32)
    x703 = jax.random.normal(k2, (N, Cin, H, W), dtype=jnp.float32)
    # Deterministic Conv2d weight (bias=False), shape (Cout, Cin, 1, 1)
    weight = jax.random.normal(k3, (Cout, Cin, 1, 1), dtype=jnp.float32) * (
        1.0 / jnp.sqrt(Cin)
    )

    # Constant-parameter quantization, outside the hot path.
    wq, scale = prepare_weight(weight)

    out = add_conv1x1(x718, x703, wq, scale)
    jax.block_until_ready(out)
    assert out.shape == (N, Cout, H, W), out.shape

    M = N * H * W

    # Tight check vs. a reference doing the *identical* quantized math
    # (bf16 activation + bf16-dequantized int8 weight, f32 accumulation, post-scale):
    xsum_q = (x718.reshape(Cin, M) + x703.reshape(Cin, M)).astype(jnp.bfloat16)
    w_bf16 = wq.astype(jnp.float32).astype(jnp.bfloat16)
    ref_q = (
        jnp.dot(w_bf16, xsum_q, preferred_element_type=jnp.float32) * scale
    ).reshape(N, Cout, H, W)
    assert jnp.allclose(out, ref_q, atol=2e-2, rtol=1e-2), "mismatch vs quantized reference"

    # Loose semantic check vs. the full-f32 PyTorch module math (int8 weight +
    # bf16 activation introduce ~1% relative error at these magnitudes):
    ref_f32 = jnp.einsum("nchw,oc->nohw", x718 + x703, weight.reshape(Cout, Cin))
    rel_err = jnp.linalg.norm(out - ref_f32) / jnp.linalg.norm(ref_f32)
    assert rel_err < 5e-2, f"relative error vs f32 reference too large: {rel_err}"

    print("KERNEL_OK")
</pallas_src>

<mosaic_0001>
module attributes {stable_mosaic.version = 11 : i64} {
  func.func @add_conv1x1_kernel(%arg0: i32, %arg1: memref<384x49xf32, #tpu.memory_space<vmem>>, %arg2: memref<384x49xf32, #tpu.memory_space<vmem>>, %arg3: memref<1152x384xi8, #tpu.memory_space<vmem>>, %arg4: memref<1152x1xf32, #tpu.memory_space<vmem>>, %arg5: memref<1152x49xf32, #tpu.memory_space<vmem>>) attributes {dimension_semantics = [#tpu.dimension_semantics<parallel>], iteration_bounds = array<i64: 2>, scalar_prefetch = 0 : i64, scratch_operands = 0 : i64, tpu.core_type = #tpu.core_type<tc>, window_params = [{pipeline_mode = #tpu.pipeline_mode<synchronous>, transform_indices = @transform_0, window_bounds = array<i64: 384, 49>}, {pipeline_mode = #tpu.pipeline_mode<synchronous>, transform_indices = @transform_1, window_bounds = array<i64: 384, 49>}, {transform_indices = @transform_2, window_bounds = array<i64: 1152, 384>}, {transform_indices = @transform_3, window_bounds = array<i64: 1152, 1>}, {transform_indices = @transform_4, window_bounds = array<i64: 1152, 49>}]} {
    %c0 = arith.constant 0 : index
    %c0_0 = arith.constant 0 : index
    %0 = vector.load %arg1[%c0, %c0_0] : memref<384x49xf32, #tpu.memory_space<vmem>>, vector<384x49xf32>
    %c0_1 = arith.constant 0 : index
    %c0_2 = arith.constant 0 : index
    %1 = vector.load %arg2[%c0_1, %c0_2] : memref<384x49xf32, #tpu.memory_space<vmem>>, vector<384x49xf32>
    %2 = arith.addf %0, %1 : vector<384x49xf32>
    %3 = arith.truncf %2 : vector<384x49xf32> to vector<384x49xbf16>
    %c0_3 = arith.constant 0 : index
    %c0_4 = arith.constant 0 : index
    %4 = vector.load %arg3[%c0_3, %c0_4] : memref<1152x384xi8, #tpu.memory_space<vmem>>, vector<1152x384xi8>
    %5 = arith.sitofp %4 : vector<1152x384xi8> to vector<1152x384xf32>
    %6 = arith.truncf %5 : vector<1152x384xf32> to vector<1152x384xbf16>
    %cst = arith.constant dense<0.000000e+00> : vector<1152x49xf32>
    %7 = tpu.matmul %6, %3, %cst {dimension_numbers = #tpu.dot_dimension_numbers<[1], [0], [0], [1], [0, 0, 1, 1], [], []>} : vector<1152x384xbf16>, vector<384x49xbf16>, vector<1152x49xf32> -> vector<1152x49xf32>
    %c0_5 = arith.constant 0 : index
    %c0_6 = arith.constant 0 : index
    %8 = vector.load %arg4[%c0_5, %c0_6] : memref<1152x1xf32, #tpu.memory_space<vmem>>, vector<1152x1xf32>
    %9 = vector.broadcast %8 : vector<1152x1xf32> to vector<1152x49xf32>
    %10 = arith.mulf %7, %9 : vector<1152x49xf32>
    %c0_7 = arith.constant 0 : index
    %c0_8 = arith.constant 0 : index
    %11 = vector.load %arg5[%c0_7, %c0_8] : memref<1152x49xf32, #tpu.memory_space<vmem>>, vector<1152x49xf32>
    tpu.vector_store %arg5[%c0_7, %c0_8], %10 {strides = array<i32>} : memref<1152x49xf32, #tpu.memory_space<vmem>>, vector<1152x49xf32>,
    return
  }
  func.func @transform_0(%arg0: i32) -> (i32, i32) {
    %c0_i32 = arith.constant 0 : i32
    %c0_i32_0 = arith.constant 0 : i32
    %c0_i32_1 = arith.constant 0 : i32
    return %c0_i32, %c0_i32_0 : i32, i32
  }
  func.func @transform_1(%arg0: i32) -> (i32, i32) {
    %c0_i32 = arith.constant 0 : i32
    %c0_i32_0 = arith.constant 0 : i32
    %c0_i32_1 = arith.constant 0 : i32
    return %c0_i32, %c0_i32_0 : i32, i32
  }
  func.func @transform_2(%arg0: i32) -> (i32, i32) {
    %c0_i32 = arith.constant 0 : i32
    %c0_i32_0 = arith.constant 0 : i32
    return %arg0, %c0_i32 : i32, i32
  }
  func.func @transform_3(%arg0: i32) -> (i32, i32) {
    %c0_i32 = arith.constant 0 : i32
    %c0_i32_0 = arith.constant 0 : i32
    return %arg0, %c0_i32 : i32, i32
  }
  func.func @transform_4(%arg0: i32) -> (i32, i32) {
    %c0_i32 = arith.constant 0 : i32
    %c0_i32_0 = arith.constant 0 : i32
    return %arg0, %c0_i32 : i32, i32
  }
}

</mosaic_0001>

<llo_original>
// kernel: tpu_custom_call.1
$region0: #{tpu_custom_call.1}
  #allocation0 [shape = 'u32[]', space=smem, size = 0x4, offset = 0x4, fixed_abs, tag = 'smem constant byte address 0x4 - core index']
  #allocation1 [shape = 'u32[72,128]{1,0:T(1,128)}', space=vmem, size = 0x9000, scoped, tag = 'internal scratch']
  %s0 = inlined_call_operand.vmem [shape: f32[384,49], index: 0, kind: input, shape index: {}]
  %s1 = inlined_call_operand.vmem [shape: f32[384,49], index: 1, kind: input, shape index: {}]
  %s2 = inlined_call_operand.vmem [shape: s8[2304,384], index: 2, kind: input, shape index: {}]
  %s3 = inlined_call_operand.vmem [shape: f32[2304,1], index: 3, kind: input, shape index: {}]
  %s4 = inlined_call_operand.vmem [shape: f32[2304,49], index: 4, kind: output, shape index: {}]
  %s5 = sld [smem:[#allocation0]]
  $region49: #{tpu_custom_call.1} parent=0
    _
  %s7 = ssub.s32 1, %s5
  %s8 = scalar_select 0, %s7, %s5
  loop: start=0, step=1, limit=4
  $region2: #{tpu_custom_call.1} parent=0 // loop_pre_header
    _
  $region3: #{tpu_custom_call.1} parent=0 // loop_header
    %s10 = sphi 0, %s14
    %p11 = scmp.ge.s32.totalorder %s10, 4
    %s18 = sphi 0, %s18
    %s20 = sphi 0, %s18
    %s21 = sphi 0, %s20
    %s35 = sphi 0, %s21
    %s39 = sphi 0, %s39
    %s41 = sphi 0, %s39
    %s42 = sphi 0, %s41
    %s56 = sphi 0, %s42
    %s62 = sphi 0, %s64
    %s65 = sphi 0, %s62
    %s66 = sphi 0, %s65
    %s82 = sphi 0, %s66
    %s88 = sphi 0, %s90
    %s91 = sphi 0, %s88
    %s92 = sphi 0, %s91
    %s108 = sphi 0, %s92
    %s114 = sphi 0, %s116
    %s117 = sphi 0, %s114
    %s118 = sphi 0, %s117
    %s134 = sphi 0, %s118
  $region4: #{tpu_custom_call.1} parent=0 // loop_header_branch
    %13 = sbr.rel (%p11) target = $region8
  $region5: #{tpu_custom_call.1} parent=0 // loop_body
    %s15 = ssub.s32 %s10, 1
    %s16 = ssub.s32 %s10, 2
    %s17 = sadd.s32 %s10, 1
    %s19 = sadd.s32 %s18, 1
    %p22 = scmp.eq.s32.totalorder %s10, 1
    %p23 = scmp.ne.s32.totalorder %s18, %s20
    %p24 = scmp.eq.s32.totalorder %s10, 0
    %p25 = por %p23, %p24
    %p26 = scmp.ne.s32.totalorder %s18, %s20
    %p27 = scmp.eq.s32.totalorder %s15, 1
    %p28 = por %p26, %p27
    %p29 = scmp.ne.s32.totalorder %s20, %s21
    %p30 = scmp.eq.s32.totalorder %s15, 0
    %p31 = por %p29, %p30
    %p32 = scmp.ne.s32.totalorder %s20, %s21
    %p33 = scmp.eq.s32.totalorder %s16, 1
    %p34 = por %p32, %p33
    %p36 = scmp.ne.s32.totalorder %s21, %s35
    %p37 = scmp.eq.s32.totalorder %s16, 0
    %p38 = por %p36, %p37
    %s40 = sadd.s32 %s39, 1
    %p43 = scmp.eq.s32.totalorder %s10, 1
    %p44 = scmp.ne.s32.totalorder %s39, %s41
    %p45 = scmp.eq.s32.totalorder %s10, 0
    %p46 = por %p44, %p45
    %p47 = scmp.ne.s32.totalorder %s39, %s41
    %p48 = scmp.eq.s32.totalorder %s15, 1
    %p49 = por %p47, %p48
    %p50 = scmp.ne.s32.totalorder %s41, %s42
    %p51 = scmp.eq.s32.totalorder %s15, 0
    %p52 = por %p50, %p51
    %p53 = scmp.ne.s32.totalorder %s41, %s42
    %p54 = scmp.eq.s32.totalorder %s16, 1
    %p55 = por %p53, %p54
    %p57 = scmp.ne.s32.totalorder %s42, %s56
    %p58 = scmp.eq.s32.totalorder %s16, 0
    %p59 = por %p57, %p58
    %s60 = ssub.s32 %s10, %s17
    %p61 = scmp.eq.s32.totalorder %s60, 0
    %s63 = sadd.s32 %s62, 1
    %s64 = scalar_select %p61, %s62, %s63
    %p67 = pneg %p61
    %p68 = scmp.eq.s32.totalorder %s10, 1
    %p69 = por %p67, %p68
    %p70 = scmp.ne.s32.totalorder %s62, %s65
    %p71 = scmp.eq.s32.totalorder %s10, 0
    %p72 = por %p70, %p71
    %p73 = scmp.ne.s32.totalorder %s62, %s65
    %p74 = scmp.eq.s32.totalorder %s15, 1
    %p75 = por %p73, %p74
    %p76 = scmp.ne.s32.totalorder %s65, %s66
    %p77 = scmp.eq.s32.totalorder %s15, 0
    %p78 = por %p76, %p77
    %p79 = scmp.ne.s32.totalorder %s65, %s66
    %p80 = scmp.eq.s32.totalorder %s16, 1
    %p81 = por %p79, %p80
    %p83 = scmp.ne.s32.totalorder %s66, %s82
    %p84 = scmp.eq.s32.totalorder %s16, 0
    %p85 = por %p83, %p84
    %s86 = ssub.s32 %s10, %s17
    %p87 = scmp.eq.s32.totalorder %s86, 0
    %s89 = sadd.s32 %s88, 1
    %s90 = scalar_select %p87, %s88, %s89
    %p93 = pneg %p87
    %p94 = scmp.eq.s32.totalorder %s10, 1
    %p95 = por %p93, %p94
    %p96 = scmp.ne.s32.totalorder %s88, %s91
    %p97 = scmp.eq.s32.totalorder %s10, 0
    %p98 = por %p96, %p97
    %p99 = scmp.ne.s32.totalorder %s88, %s91
    %p100 = scmp.eq.s32.totalorder %s15, 1
    %p101 = por %p99, %p100
    %p102 = scmp.ne.s32.totalorder %s91, %s92
    %p103 = scmp.eq.s32.totalorder %s15, 0
    %p104 = por %p102, %p103
    %p105 = scmp.ne.s32.totalorder %s91, %s92
    %p106 = scmp.eq.s32.totalorder %s16, 1
    %p107 = por %p105, %p106
    %p109 = scmp.ne.s32.totalorder %s92, %s108
    %p110 = scmp.eq.s32.totalorder %s16, 0
    %p111 = por %p109, %p110
    %s112 = ssub.s32 %s10, %s17
    %p113 = scmp.eq.s32.totalorder %s112, 0
    %s115 = sadd.s32 %s114, 1
    %s116 = scalar_select %p113, %s114, %s115
    %p119 = pneg %p113
    %p120 = scmp.eq.s32.totalorder %s10, 1
    %p121 = por %p119, %p120
    %p122 = scmp.ne.s32.totalorder %s114, %s117
    %p123 = scmp.eq.s32.totalorder %s10, 0
    %p124 = por %p122, %p123
    %p125 = scmp.ne.s32.totalorder %s114, %s117
    %p126 = scmp.eq.s32.totalorder %s15, 1
    %p127 = por %p125, %p126
    %p128 = scmp.ne.s32.totalorder %s117, %s118
    %p129 = scmp.eq.s32.totalorder %s15, 0
    %p130 = por %p128, %p129
    %p131 = scmp.ne.s32.totalorder %s117, %s118
    %p132 = scmp.eq.s32.totalorder %s16, 1
    %p133 = por %p131, %p132
    %p135 = scmp.ne.s32.totalorder %s118, %s134
    %p136 = scmp.eq.s32.totalorder %s16, 0
    %p137 = por %p135, %p136
    %p138 = scmp.le.s32.totalorder 1, %s10
    %p139 = scmp.lt.s32.totalorder %s10, 3
    %p140 = pnand %p138, %p139
    %p141 = pneg %p140
    // Predicated region
    $region9: #{tpu_custom_call.1} parent=5 // pred_check
      _
    $region10: #{tpu_custom_call.1} parent=5 // pred_check_branch
      %143 = sbr.rel (%p140) target = $region12
    $region11: #{tpu_custom_call.1} parent=5 // pred_region
      %s144 = ssub.s32 %s10, 1
      // Predicated region
      $region13: #{tpu_custom_call.1} parent=11 // pred_check
        %p145 = pneg %p31
      $region14: #{tpu_custom_call.1} parent=11 // pred_check_branch
        %147 = sbr.rel (%p145) target = $region16
      $region15: #{tpu_custom_call.1} parent=11 // pred_region
        _
      $region16: #{tpu_custom_call.1} parent=11 // pred_fallthru
        _
      // Predicated region
      $region17: #{tpu_custom_call.1} parent=11 // pred_check
        %p148 = pneg %p52
      $region18: #{tpu_custom_call.1} parent=11 // pred_check_branch
        %150 = sbr.rel (%p148) target = $region20
      $region19: #{tpu_custom_call.1} parent=11 // pred_region
        _
      $region20: #{tpu_custom_call.1} parent=11 // pred_fallthru
        _
    $region12: #{tpu_custom_call.1} parent=5 // pred_fallthru
      _
    %p151 = scmp.lt.s32.totalorder %s10, 2
    // Predicated region
    $region21: #{tpu_custom_call.1} parent=5 // pred_check
      %p152 = pneg %p151
    $region22: #{tpu_custom_call.1} parent=5 // pred_check_branch
      %154 = sbr.rel (%p152) target = $region24
    $region23: #{tpu_custom_call.1} parent=5 // pred_region
      // Predicated region
      $region25: #{tpu_custom_call.1} parent=23 // pred_check
        %p155 = pneg %p72
      $region26: #{tpu_custom_call.1} parent=23 // pred_check_branch
        %157 = sbr.rel (%p155) target = $region28
      $region27: #{tpu_custom_call.1} parent=23 // pred_region
        %s158 = smul.u32 36, %s10
        %p159 = scmp.lt.s32.totalorder %s158, 71
        %s160 = scalar_select %p159, %s158, 71
        %s161 = smul.addr %s160, 3
        %s162 = smul.addr %s161, 8
        %s163 = scalar_lea.vmem %s2, %s162
        %s164 = smul.u32 36, %s10
      $region28: #{tpu_custom_call.1} parent=23 // pred_fallthru
        _
      // Predicated region
      $region29: #{tpu_custom_call.1} parent=23 // pred_check
        %p165 = pneg %p98
      $region30: #{tpu_custom_call.1} parent=23 // pred_check_branch
        %167 = sbr.rel (%p165) target = $region32
      $region31: #{tpu_custom_call.1} parent=23 // pred_region
        %s168 = smul.u32 144, %s10
        %p169 = scmp.lt.s32.totalorder %s168, 287
        %s170 = scalar_select %p169, %s168, 287
        %s171 = smul.addr %s170, 8
        %s172 = scalar_lea.vmem %s3, %s171
        %s173 = smul.u32 144, %s10
      $region32: #{tpu_custom_call.1} parent=23 // pred_fallthru
        _
    $region24: #{tpu_custom_call.1} parent=5 // pred_fallthru
      _
    %p174 = scmp.le.s32.totalorder 1, %s10
    %p175 = scmp.lt.s32.totalorder %s10, 3
    %p176 = pnand %p174, %p175
    %p177 = pneg %p176
    // Predicated region
    $region33: #{tpu_custom_call.1} parent=5 // pred_check
      _
    $region34: #{tpu_custom_call.1} parent=5 // pred_check_branch
      %179 = sbr.rel (%p176) target = $region36
    $region35: #{tpu_custom_call.1} parent=5 // pred_region
      %s180 = ssub.s32 %s10, 1
      %p181 = pneg %p31
      %p182 = pneg %p28
      %p183 = pneg %p52
      %p184 = pneg %p49
      %s185 = smul.u32 36, %s15
      %p186 = scmp.lt.s32.totalorder %s185, 71
      %s187 = scalar_select %p186, %s185, 71
      %s188 = smul.addr %s187, 3
      %s189 = smul.addr %s188, 8
      %s190 = scalar_lea.vmem %s2, %s189
      %p191 = pneg %p78
      %p192 = pneg %p75
      %s193 = smul.u32 144, %s15
      %p194 = scmp.lt.s32.totalorder %s193, 287
      %s195 = scalar_select %p194, %s193, 287
      %s196 = smul.addr %s195, 8
      %s197 = scalar_lea.vmem %s3, %s196
      %p198 = pneg %p104
      %p199 = pneg %p101
      %p200 = pneg %p130
      %p201 = pneg %p127
      %s202 = smul.u32 144, %s15
      %p203 = scmp.lt.s32.totalorder %s202, 287
      %s204 = scalar_select %p203, %s202, 287
      %s205 = smul.addr %s204, 8
      %s206 = scalar_lea.vmem %s4, %s205
      %s207 = smul.u32 36, %s15
      %p208 = scmp.lt.s32.totalorder %s207, 71
      %s209 = scalar_select %p208, %s207, 71
      %s210 = smul.addr %s209, 3
      %s211 = smul.addr %s210, 8
      %s212 = scalar_lea.vmem %s2, %s211
      %s213 = smul.u32 36, %s15
      %s214 = smul.u32 144, %s15
      %p215 = scmp.lt.s32.totalorder %s214, 287
      %s216 = scalar_select %p215, %s214, 287
      %s217 = smul.addr %s216, 8
      %s218 = scalar_lea.vmem %s3, %s217
      %s219 = smul.u32 144, %s15
      %s220 = smul.u32 144, %s15
      %p221 = scmp.lt.s32.totalorder %s220, 287
      %s222 = scalar_select %p221, %s220, 287
      %s223 = smul.addr %s222, 8
      %s224 = scalar_lea.vmem %s4, %s223
      %s225 = smul.u32 144, %s15
      %v226 = vld [vmem:[%s0] sm:$0xff]
      %v227 = vld [vmem:[%s0 + $0x8] sm:$0xff]
      %v228 = vld [vmem:[%s0 + $0x10] sm:$0xff]
      %v229 = vld [vmem:[%s0 + $0x18] sm:$0xff]
      %v230 = vld [vmem:[%s0 + $0x20] sm:$0xff]
      %v231 = vld [vmem:[%s0 + $0x28] sm:$0xff]
      %v232 = vld [vmem:[%s0 + $0x30] sm:$0xff]
      %v233 = vld [vmem:[%s0 + $0x38] sm:$0xff]
      %v234 = vld [vmem:[%s0 + $0x40] sm:$0xff]
      %v235 = vld [vmem:[%s0 + $0x48] sm:$0xff]
      %v236 = vld [vmem:[%s0 + $0x50] sm:$0xff]
      %v237 = vld [vmem:[%s0 + $0x58] sm:$0xff]
      %v238 = vld [vmem:[%s0 + $0x60] sm:$0xff]
      %v239 = vld [vmem:[%s0 + $0x68] sm:$0xff]
      %v240 = vld [vmem:[%s0 + $0x70] sm:$0xff]
      %v241 = vld [vmem:[%s0 + $0x78] sm:$0xff]
      %v242 = vld [vmem:[%s0 + $0x80] sm:$0xff]
      %v243 = vld [vmem:[%s0 + $0x88] sm:$0xff]
      %v244 = vld [vmem:[%s0 + $0x90] sm:$0xff]
      %v245 = vld [vmem:[%s0 + $0x98] sm:$0xff]
      %v246 = vld [vmem:[%s0 + $0xa0] sm:$0xff]
      %v247 = vld [vmem:[%s0 + $0xa8] sm:$0xff]
      %v248 = vld [vmem:[%s0 + $0xb0] sm:$0xff]
      %v249 = vld [vmem:[%s0 + $0xb8] sm:$0xff]
      %v250 = vld [vmem:[%s0 + $0xc0] sm:$0xff]
      %v251 = vld [vmem:[%s0 + $0xc8] sm:$0xff]
      %v252 = vld [vmem:[%s0 + $0xd0] sm:$0xff]
      %v253 = vld [vmem:[%s0 + $0xd8] sm:$0xff]
      %v254 = vld [vmem:[%s0 + $0xe0] sm:$0xff]
      %v255 = vld [vmem:[%s0 + $0xe8] sm:$0xff]
      %v256 = vld [vmem:[%s0 + $0xf0] sm:$0xff]
      %v257 = vld [vmem:[%s0 + $0xf8] sm:$0xff]
      %v258 = vld [vmem:[%s0 + $0x100] sm:$0xff]
      %v259 = vld [vmem:[%s0 + $0x108] sm:$0xff]
      %v260 = vld [vmem:[%s0 + $0x110] sm:$0xff]
      %v261 = vld [vmem:[%s0 + $0x118] sm:$0xff]
      %v262 = vld [vmem:[%s0 + $0x120] sm:$0xff]
      %v263 = vld [vmem:[%s0 + $0x128] sm:$0xff]
      %v264 = vld [vmem:[%s0 + $0x130] sm:$0xff]
      %v265 = vld [vmem:[%s0 + $0x138] sm:$0xff]
      %v266 = vld [vmem:[%s0 + $0x140] sm:$0xff]
      %v267 = vld [vmem:[%s0 + $0x148] sm:$0xff]
      %v268 = vld [vmem:[%s0 + $0x150] sm:$0xff]
      %v269 = vld [vmem:[%s0 + $0x158] sm:$0xff]
      %v270 = vld [vmem:[%s0 + $0x160] sm:$0xff]
      %v271 = vld [vmem:[%s0 + $0x168] sm:$0xff]
      %v272 = vld [vmem:[%s0 + $0x170] sm:$0xff]
      %v273 = vld [vmem:[%s0 + $0x178] sm:$0xff]
      %v274 = vld [vmem:[%s1] sm:$0xff]
      %v275 = vld [vmem:[%s1 + $0x8] sm:$0xff]
      %v276 = vld [vmem:[%s1 + $0x10] sm:$0xff]
      %v277 = vld [vmem:[%s1 + $0x18] sm:$0xff]
      %v278 = vld [vmem:[%s1 + $0x20] sm:$0xff]
      %v279 = vld [vmem:[%s1 + $0x28] sm:$0xff]
      %v280 = vld [vmem:[%s1 + $0x30] sm:$0xff]
      %v281 = vld [vmem:[%s1 + $0x38] sm:$0xff]
      %v282 = vld [vmem:[%s1 + $0x40] sm:$0xff]
      %v283 = vld [vmem:[%s1 + $0x48] sm:$0xff]
      %v284 = vld [vmem:[%s1 + $0x50] sm:$0xff]
      %v285 = vld [vmem:[%s1 + $0x58] sm:$0xff]
      %v286 = vld [vmem:[%s1 + $0x60] sm:$0xff]
      %v287 = vld [vmem:[%s1 + $0x68] sm:$0xff]
      %v288 = vld [vmem:[%s1 + $0x70] sm:$0xff]
      %v289 = vld [vmem:[%s1 + $0x78] sm:$0xff]
      %v290 = vld [vmem:[%s1 + $0x80] sm:$0xff]
      %v291 = vld [vmem:[%s1 + $0x88] sm:$0xff]
      %v292 = vld [vmem:[%s1 + $0x90] sm:$0xff]
      %v293 = vld [vmem:[%s1 + $0x98] sm:$0xff]
      %v294 = vld [vmem:[%s1 + $0xa0] sm:$0xff]
      %v295 = vld [vmem:[%s1 + $0xa8] sm:$0xff]
      %v296 = vld [vmem:[%s1 + $0xb0] sm:$0xff]
      %v297 = vld [vmem:[%s1 + $0xb8] sm:$0xff]
      %v298 = vld [vmem:[%s1 + $0xc0] sm:$0xff]
      %v299 = vld [vmem:[%s1 + $0xc8] sm:$0xff]
      %v300 = vld [vmem:[%s1 + $0xd0] sm:$0xff]
      %v301 = vld [vmem:[%s1 + $0xd8] sm:$0xff]
      %v302 = vld [vmem:[%s1 + $0xe0] sm:$0xff]
      %v303 = vld [vmem:[%s1 + $0xe8] sm:$0xff]
      %v304 = vld [vmem:[%s1 + $0xf0] sm:$0xff]
      %v305 = vld [vmem:[%s1 + $0xf8] sm:$0xff]
      %v306 = vld [vmem:[%s1 + $0x100] sm:$0xff]
      %v307 = vld [vmem:[%s1 + $0x108] sm:$0xff]
      %v308 = vld [vmem:[%s1 + $0x110] sm:$0xff]
      %v309 = vld [vmem:[%s1 + $0x118] sm:$0xff]
      %v310 = vld [vmem:[%s1 + $0x120] sm:$0xff]
      %v311 = vld [vmem:[%s1 + $0x128] sm:$0xff]
      %v312 = vld [vmem:[%s1 + $0x130] sm:$0xff]
      %v313 = vld [vmem:[%s1 + $0x138] sm:$0xff]
      %v314 = vld [vmem:[%s1 + $0x140] sm:$0xff]
      %v315 = vld [vmem:[%s1 + $0x148] sm:$0xff]
      %v316 = vld [vmem:[%s1 + $0x150] sm:$0xff]
      %v317 = vld [vmem:[%s1 + $0x158] sm:$0xff]
      %v318 = vld [vmem:[%s1 + $0x160] sm:$0xff]
      %v319 = vld [vmem:[%s1 + $0x168] sm:$0xff]
      %v320 = vld [vmem:[%s1 + $0x170] sm:$0xff]
      %v321 = vld [vmem:[%s1 + $0x178] sm:$0xff]
      %v322 = vadd.f32 %v226, %v274
      %v323 = vadd.f32 %v227, %v275
      %v324 = vadd.f32 %v228, %v276
      %v325 = vadd.f32 %v229, %v277
      %v326 = vadd.f32 %v230, %v278
      %v327 = vadd.f32 %v231, %v279
      %v328 = vadd.f32 %v232, %v280
      %v329 = vadd.f32 %v233, %v281
      %v330 = vadd.f32 %v234, %v282
      %v331 = vadd.f32 %v235, %v283
      %v332 = vadd.f32 %v236, %v284
      %v333 = vadd.f32 %v237, %v285
      %v334 = vadd.f32 %v238, %v286
      %v335 = vadd.f32 %v239, %v287
      %v336 = vadd.f32 %v240, %v288
      %v337 = vadd.f32 %v241, %v289
      %v338 = vadd.f32 %v242, %v290
      %v339 = vadd.f32 %v243, %v291
      %v340 = vadd.f32 %v244, %v292
      %v341 = vadd.f32 %v245, %v293
      %v342 = vadd.f32 %v246, %v294
      %v343 = vadd.f32 %v247, %v295
      %v344 = vadd.f32 %v248, %v296
      %v345 = vadd.f32 %v249, %v297
      %v346 = vadd.f32 %v250, %v298
      %v347 = vadd.f32 %v251, %v299
      %v348 = vadd.f32 %v252, %v300
      %v349 = vadd.f32 %v253, %v301
      %v350 = vadd.f32 %v254, %v302
      %v351 = vadd.f32 %v255, %v303
      %v352 = vadd.f32 %v256, %v304
      %v353 = vadd.f32 %v257, %v305
      %v354 = vadd.f32 %v258, %v306
      %v355 = vadd.f32 %v259, %v307
      %v356 = vadd.f32 %v260, %v308
      %v357 = vadd.f32 %v261, %v309
      %v358 = vadd.f32 %v262, %v310
      %v359 = vadd.f32 %v263, %v311
      %v360 = vadd.f32 %v264, %v312
      %v361 = vadd.f32 %v265, %v313
      %v362 = vadd.f32 %v266, %v314
      %v363 = vadd.f32 %v267, %v315
      %v364 = vadd.f32 %v268, %v316
      %v365 = vadd.f32 %v269, %v317
      %v366 = vadd.f32 %v270, %v318
      %v367 = vadd.f32 %v271, %v319
      %v368 = vadd.f32 %v272, %v320
      %v369 = vadd.f32 %v273, %v321
      %v370 = vpack.c.bf16 %v323, %v322
      %v371 = vpack.c.bf16 %v325, %v324
      %v372 = vpack.c.bf16 %v327, %v326
      %v373 = vpack.c.bf16 %v329, %v328
      %v374 = vpack.c.bf16 %v331, %v330
      %v375 = vpack.c.bf16 %v333, %v332
      %v376 = vpack.c.bf16 %v335, %v334
      %v377 = vpack.c.bf16 %v337, %v336
      %v378 = vpack.c.bf16 %v339, %v338
      %v379 = vpack.c.bf16 %v341, %v340
      %v380 = vpack.c.bf16 %v343, %v342
      %v381 = vpack.c.bf16 %v345, %v344
      %v382 = vpack.c.bf16 %v347, %v346
      %v383 = vpack.c.bf16 %v349, %v348
      %v384 = vpack.c.bf16 %v351, %v350
      %v385 = vpack.c.bf16 %v353, %v352
      %v386 = vpack.c.bf16 %v355, %v354
      %v387 = vpack.c.bf16 %v357, %v356
      %v388 = vpack.c.bf16 %v359, %v358
      %v389 = vpack.c.bf16 %v361, %v360
      %v390 = vpack.c.bf16 %v363, %v362
      %v391 = vpack.c.bf16 %v365, %v364
      %v392 = vpack.c.bf16 %v367, %v366
      %v393 = vpack.c.bf16 %v369, %v368
      %v394 = vld [vmem:[%s212] sm:$0xff]
      %v395 = vld [vmem:[%s212 + $0x8] sm:$0xff]
      %v396 = vld [vmem:[%s212 + $0x10] sm:$0xff]
      %v397 = vld [vmem:[%s212 + $0x18] sm:$0xff]
      %v398 = vld [vmem:[%s212 + $0x20] sm:$0xff]
      %v399 = vld [vmem:[%s212 + $0x28] sm:$0xff]
      %v400 = vld [vmem:[%s212 + $0x30] sm:$0xff]
      %v401 = vld [vmem:[%s212 + $0x38] sm:$0xff]
      %v402 = vld [vmem:[%s212 + $0x40] sm:$0xff]
      %v403 = vld [vmem:[%s212 + $0x48] sm:$0xff]
      %v404 = vld [vmem:[%s212 + $0x50] sm:$0xff]
      %v405 = vld [vmem:[%s212 + $0x58] sm:$0xff]
      %v406 = vld [vmem:[%s212 + $0x60] sm:$0xff]
      %v407 = vld [vmem:[%s212 + $0x68] sm:$0xff]
      %v408 = vld [vmem:[%s212 + $0x70] sm:$0xff]
      %v409 = vld [vmem:[%s212 + $0x78] sm:$0xff]
      %v410 = vld [vmem:[%s212 + $0x80] sm:$0xff]
      %v411 = vld [vmem:[%s212 + $0x88] sm:$0xff]
      %v412 = vld [vmem:[%s212 + $0x90] sm:$0xff]
      %v413 = vld [vmem:[%s212 + $0x98] sm:$0xff]
      %v414 = vld [vmem:[%s212 + $0xa0] sm:$0xff]
      %v415 = vld [vmem:[%s212 + $0xa8] sm:$0xff]
      %v416 = vld [vmem:[%s212 + $0xb0] sm:$0xff]
      %v417 = vld [vmem:[%s212 + $0xb8] sm:$0xff]
      %v418 = vld [vmem:[%s212 + $0xc0] sm:$0xff]
      %v419 = vld [vmem:[%s212 + $0xc8] sm:$0xff]
      %v420 = vld [vmem:[%s212 + $0xd0] sm:$0xff]
      %v421 = vld [vmem:[%s212 + $0xd8] sm:$0xff]
      %v422 = vld [vmem:[%s212 + $0xe0] sm:$0xff]
      %v423 = vld [vmem:[%s212 + $0xe8] sm:$0xff]
      %v424 = vld [vmem:[%s212 + $0xf0] sm:$0xff]
      %v425 = vld [vmem:[%s212 + $0xf8] sm:$0xff]
      %v426 = vld [vmem:[%s212 + $0x100] sm:$0xff]
      %v427 = vld [vmem:[%s212 + $0x108] sm:$0xff]
      %v428 = vld [vmem:[%s212 + $0x110] sm:$0xff]
      %v429 = vld [vmem:[%s212 + $0x118] sm:$0xff]
      %v430 = vld [vmem:[%s212 + $0x120] sm:$0xff]
      %v431 = vld [vmem:[%s212 + $0x128] sm:$0xff]
      %v432 = vld [vmem:[%s212 + $0x130] sm:$0xff]
      %v433 = vld [vmem:[%s212 + $0x138] sm:$0xff]
      %v434 = vld [vmem:[%s212 + $0x140] sm:$0xff]
      %v435 = vld [vmem:[%s212 + $0x148] sm:$0xff]
      %v436 = vld [vmem:[%s212 + $0x150] sm:$0xff]
      %v437 = vld [vmem:[%s212 + $0x158] sm:$0xff]
      %v438 = vld [vmem:[%s212 + $0x160] sm:$0xff]
      %v439 = vld [vmem:[%s212 + $0x168] sm:$0xff]
      %v440 = vld [vmem:[%s212 + $0x170] sm:$0xff]
      %v441 = vld [vmem:[%s212 + $0x178] sm:$0xff]
      %v442 = vld [vmem:[%s212 + $0x180] sm:$0xff]
      %v443 = vld [vmem:[%s212 + $0x188] sm:$0xff]
      %v444 = vld [vmem:[%s212 + $0x190] sm:$0xff]
      %v445 = vld [vmem:[%s212 + $0x198] sm:$0xff]
      %v446 = vld [vmem:[%s212 + $0x1a0] sm:$0xff]
      %v447 = vld [vmem:[%s212 + $0x1a8] sm:$0xff]
      %v448 = vld [vmem:[%s212 + $0x1b0] sm:$0xff]
      %v449 = vld [vmem:[%s212 + $0x1b8] sm:$0xff]
      %v450 = vld [vmem:[%s212 + $0x1c0] sm:$0xff]
      %v451 = vld [vmem:[%s212 + $0x1c8] sm:$0xff]
      %v452 = vld [vmem:[%s212 + $0x1d0] sm:$0xff]
      %v453 = vld [vmem:[%s212 + $0x1d8] sm:$0xff]
      %v454 = vld [vmem:[%s212 + $0x1e0] sm:$0xff]
      %v455 = vld [vmem:[%s212 + $0x1e8] sm:$0xff]
      %v456 = vld [vmem:[%s212 + $0x1f0] sm:$0xff]
      %v457 = vld [vmem:[%s212 + $0x1f8] sm:$0xff]
      %v458 = vld [vmem:[%s212 + $0x200] sm:$0xff]
      %v459 = vld [vmem:[%s212 + $0x208] sm:$0xff]
      %v460 = vld [vmem:[%s212 + $0x210] sm:$0xff]
      %v461 = vld [vmem:[%s212 + $0x218] sm:$0xff]
      %v462 = vld [vmem:[%s212 + $0x220] sm:$0xff]
      %v463 = vld [vmem:[%s212 + $0x228] sm:$0xff]
      %v464 = vld [vmem:[%s212 + $0x230] sm:$0xff]
      %v465 = vld [vmem:[%s212 + $0x238] sm:$0xff]
      %v466 = vld [vmem:[%s212 + $0x240] sm:$0xff]
      %v467 = vld [vmem:[%s212 + $0x248] sm:$0xff]
      %v468 = vld [vmem:[%s212 + $0x250] sm:$0xff]
      %v469 = vld [vmem:[%s212 + $0x258] sm:$0xff]
      %v470 = vld [vmem:[%s212 + $0x260] sm:$0xff]
      %v471 = vld [vmem:[%s212 + $0x268] sm:$0xff]
      %v472 = vld [vmem:[%s212 + $0x270] sm:$0xff]
      %v473 = vld [vmem:[%s212 + $0x278] sm:$0xff]
      %v474 = vld [vmem:[%s212 + $0x280] sm:$0xff]
      %v475 = vld [vmem:[%s212 + $0x288] sm:$0xff]
      %v476 = vld [vmem:[%s212 + $0x290] sm:$0xff]
      %v477 = vld [vmem:[%s212 + $0x298] sm:$0xff]
      %v478 = vld [vmem:[%s212 + $0x2a0] sm:$0xff]
      %v479 = vld [vmem:[%s212 + $0x2a8] sm:$0xff]
      %v480 = vld [vmem:[%s212 + $0x2b0] sm:$0xff]
      %v481 = vld [vmem:[%s212 + $0x2b8] sm:$0xff]
      %v482 = vld [vmem:[%s212 + $0x2c0] sm:$0xff]
      %v483 = vld [vmem:[%s212 + $0x2c8] sm:$0xff]
      %v484 = vld [vmem:[%s212 + $0x2d0] sm:$0xff]
      %v485 = vld [vmem:[%s212 + $0x2d8] sm:$0xff]
      %v486 = vld [vmem:[%s212 + $0x2e0] sm:$0xff]
      %v487 = vld [vmem:[%s212 + $0x2e8] sm:$0xff]
      %v488 = vld [vmem:[%s212 + $0x2f0] sm:$0xff]
      %v489 = vld [vmem:[%s212 + $0x2f8] sm:$0xff]
      %v490 = vld [vmem:[%s212 + $0x300] sm:$0xff]
      %v491 = vld [vmem:[%s212 + $0x308] sm:$0xff]
      %v492 = vld [vmem:[%s212 + $0x310] sm:$0xff]
      %v493 = vld [vmem:[%s212 + $0x318] sm:$0xff]
      %v494 = vld [vmem:[%s212 + $0x320] sm:$0xff]
      %v495 = vld [vmem:[%s212 + $0x328] sm:$0xff]
      %v496 = vld [vmem:[%s212 + $0x330] sm:$0xff]
      %v497 = vld [vmem:[%s212 + $0x338] sm:$0xff]
      %v498 = vld [vmem:[%s212 + $0x340] sm:$0xff]
      %v499 = vld [vmem:[%s212 + $0x348] sm:$0xff]
      %v500 = vld [vmem:[%s212 + $0x350] sm:$0xff]
      %v501 = vld [vmem:[%s212 + $0x358] sm:$0xff]
      %v502 = vunpack.c.0.s8 %v394
      %v503 = vunpack.c.0.s8 %v395
      %v504 = vunpack.c.0.s8 %v396
      %v505 = vunpack.c.1.s8 %v394
      %v506 = vunpack.c.1.s8 %v395
      %v507 = vunpack.c.1.s8 %v396
      %v508 = vunpack.c.2.s8 %v394
      %v509 = vunpack.c.2.s8 %v395
      %v510 = vunpack.c.2.s8 %v396
      %v511 = vunpack.c.3.s8 %v394
      %v512 = vunpack.c.3.s8 %v395
      %v513 = vunpack.c.3.s8 %v396
      %v514 = vunpack.c.0.s8 %v397
      %v515 = vunpack.c.0.s8 %v398
      %v516 = vunpack.c.0.s8 %v399
      %v517 = vunpack.c.1.s8 %v397
      %v518 = vunpack.c.1.s8 %v398
      %v519 = vunpack.c.1.s8 %v399
      %v520 = vunpack.c.2.s8 %v397
      %v521 = vunpack.c.2.s8 %v398
      %v522 = vunpack.c.2.s8 %v399
      %v523 = vunpack.c.3.s8 %v397
      %v524 = vunpack.c.3.s8 %v398
      %v525 = vunpack.c.3.s8 %v399
      %v526 = vunpack.c.0.s8 %v400
      %v527 = vunpack.c.0.s8 %v401
      %v528 = vunpack.c.0.s8 %v402
      %v529 = vunpack.c.1.s8 %v400
      %v530 = vunpack.c.1.s8 %v401
      %v531 = vunpack.c.1.s8 %v402
      %v532 = vunpack.c.2.s8 %v400
      %v533 = vunpack.c.2.s8 %v401
      %v534 = vunpack.c.2.s8 %v402
      %v535 = vunpack.c.3.s8 %v400
      %v536 = vunpack.c.3.s8 %v401
      %v537 = vunpack.c.3.s8 %v402
      %v538 = vunpack.c.0.s8 %v403
      %v539 = vunpack.c.0.s8 %v404
      %v540 = vunpack.c.0.s8 %v405
      %v541 = vunpack.c.1.s8 %v403
      %v542 = vunpack.c.1.s8 %v404
      %v543 = vunpack.c.1.s8 %v405
      %v544 = vunpack.c.2.s8 %v403
      %v545 = vunpack.c.2.s8 %v404
      %v546 = vunpack.c.2.s8 %v405
      %v547 = vunpack.c.3.s8 %v403
      %v548 = vunpack.c.3.s8 %v404
      %v549 = vunpack.c.3.s8 %v405
      %v550 = vunpack.c.0.s8 %v406
      %v551 = vunpack.c.0.s8 %v407
      %v552 = vunpack.c.0.s8 %v408
      %v553 = vunpack.c.1.s8 %v406
      %v554 = vunpack.c.1.s8 %v407
      %v555 = vunpack.c.1.s8 %v408
      %v556 = vunpack.c.2.s8 %v406
      %v557 = vunpack.c.2.s8 %v407
      %v558 = vunpack.c.2.s8 %v408
      %v559 = vunpack.c.3.s8 %v406
      %v560 = vunpack.c.3.s8 %v407
      %v561 = vunpack.c.3.s8 %v408
      %v562 = vunpack.c.0.s8 %v409
      %v563 = vunpack.c.0.s8 %v410
      %v564 = vunpack.c.0.s8 %v411
      %v565 = vunpack.c.1.s8 %v409
      %v566 = vunpack.c.1.s8 %v410
      %v567 = vunpack.c.1.s8 %v411
      %v568 = vunpack.c.2.s8 %v409
      %v569 = vunpack.c.2.s8 %v410
      %v570 = vunpack.c.2.s8 %v411
      %v571 = vunpack.c.3.s8 %v409
      %v572 = vunpack.c.3.s8 %v410
      %v573 = vunpack.c.3.s8 %v411
      %v574 = vunpack.c.0.s8 %v412
      %v575 = vunpack.c.0.s8 %v413
      %v576 = vunpack.c.0.s8 %v414
      %v577 = vunpack.c.1.s8 %v412
      %v578 = vunpack.c.1.s8 %v413
      %v579 = vunpack.c.1.s8 %v414
      %v580 = vunpack.c.2.s8 %v412
      %v581 = vunpack.c.2.s8 %v413
      %v582 = vunpack.c.2.s8 %v414
      %v583 = vunpack.c.3.s8 %v412
      %v584 = vunpack.c.3.s8 %v413
      %v585 = vunpack.c.3.s8 %v414
      %v586 = vunpack.c.0.s8 %v415
      %v587 = vunpack.c.0.s8 %v416
      %v588 = vunpack.c.0.s8 %v417
      %v589 = vunpack.c.1.s8 %v415
      %v590 = vunpack.c.1.s8 %v416
      %v591 = vunpack.c.1.s8 %v417
      %v592 = vunpack.c.2.s8 %v415
      %v593 = vunpack.c.2.s8 %v416
      %v594 = vunpack.c.2.s8 %v417
      %v595 = vunpack.c.3.s8 %v415
      %v596 = vunpack.c.3.s8 %v416
      %v597 = vunpack.c.3.s8 %v417
      %v598 = vunpack.c.0.s8 %v418
      %v599 = vunpack.c.0.s8 %v419
      %v600 = vunpack.c.0.s8 %v420
      %v601 = vunpack.c.1.s8 %v418
      %v602 = vunpack.c.1.s8 %v419
      %v603 = vunpack.c.1.s8 %v420
      %v604 = vunpack.c.2.s8 %v418
      %v605 = vunpack.c.2.s8 %v419
      %v606 = vunpack.c.2.s8 %v420
      %v607 = vunpack.c.3.s8 %v418
      %v608 = vunpack.c.3.s8 %v419
      %v609 = vunpack.c.3.s8 %v420
      %v610 = vunpack.c.0.s8 %v421
      %v611 = vunpack.c.0.s8 %v422
      %v612 = vunpack.c.0.s8 %v423
      %v613 = vunpack.c.1.s8 %v421
      %v614 = vunpack.c.1.s8 %v422
      %v615 = vunpack.c.1.s8 %v423
      %v616 = vunpack.c.2.s8 %v421
      %v617 = vunpack.c.2.s8 %v422
      %v618 = vunpack.c.2.s8 %v423
      %v619 = vunpack.c.3.s8 %v421
      %v620 = vunpack.c.3.s8 %v422
      %v621 = vunpack.c.3.s8 %v423
      %v622 = vunpack.c.0.s8 %v424
      %v623 = vunpack.c.0.s8 %v425
      %v624 = vunpack.c.0.s8 %v426
      %v625 = vunpack.c.1.s8 %v424
      %v626 = vunpack.c.1.s8 %v425
      %v627 = vunpack.c.1.s8 %v426
      %v628 = vunpack.c.2.s8 %v424
      %v629 = vunpack.c.2.s8 %v425
      %v630 = vunpack.c.2.s8 %v426
      %v631 = vunpack.c.3.s8 %v424
      %v632 = vunpack.c.3.s8 %v425
      %v633 = vunpack.c.3.s8 %v426
      %v634 = vunpack.c.0.s8 %v427
      %v635 = vunpack.c.0.s8 %v428
      %v636 = vunpack.c.0.s8 %v429
      %v637 = vunpack.c.1.s8 %v427
      %v638 = vunpack.c.1.s8 %v428
      %v639 = vunpack.c.1.s8 %v429
      %v640 = vunpack.c.2.s8 %v427
      %v641 = vunpack.c.2.s8 %v428
      %v642 = vunpack.c.2.s8 %v429
      %v643 = vunpack.c.3.s8 %v427
      %v644 = vunpack.c.3.s8 %v428
      %v645 = vunpack.c.3.s8 %v429
      %v646 = vunpack.c.0.s8 %v430
      %v647 = vunpack.c.0.s8 %v431
      %v648 = vunpack.c.0.s8 %v432
      %v649 = vunpack.c.1.s8 %v430
      %v650 = vunpack.c.1.s8 %v431
      %v651 = vunpack.c.1.s8 %v432
      %v652 = vunpack.c.2.s8 %v430
      %v653 = vunpack.c.2.s8 %v431
      %v654 = vunpack.c.2.s8 %v432
      %v655 = vunpack.c.3.s8 %v430
      %v656 = vunpack.c.3.s8 %v431
      %v657 = vunpack.c.3.s8 %v432
      %v658 = vunpack.c.0.s8 %v433
      %v659 = vunpack.c.0.s8 %v434
      %v660 = vunpack.c.0.s8 %v435
      %v661 = vunpack.c.1.s8 %v433
      %v662 = vunpack.c.1.s8 %v434
      %v663 = vunpack.c.1.s8 %v435
      %v664 = vunpack.c.2.s8 %v433
      %v665 = vunpack.c.2.s8 %v434
      %v666 = vunpack.c.2.s8 %v435
      %v667 = vunpack.c.3.s8 %v433
      %v668 = vunpack.c.3.s8 %v434
      %v669 = vunpack.c.3.s8 %v435
      %v670 = vunpack.c.0.s8 %v436
      %v671 = vunpack.c.0.s8 %v437
      %v672 = vunpack.c.0.s8 %v438
      %v673 = vunpack.c.1.s8 %v436
      %v674 = vunpack.c.1.s8 %v437
      %v675 = vunpack.c.1.s8 %v438
      %v676 = vunpack.c.2.s8 %v436
      %v677 = vunpack.c.2.s8 %v437
      %v678 = vunpack.c.2.s8 %v438
      %v679 = vunpack.c.3.s8 %v436
      %v680 = vunpack.c.3.s8 %v437
      %v681 = vunpack.c.3.s8 %v438
      %v682 = vunpack.c.0.s8 %v439
      %v683 = vunpack.c.0.s8 %v440
      %v684 = vunpack.c.0.s8 %v441
      %v685 = vunpack.c.1.s8 %v439
      %v686 = vunpack.c.1.s8 %v440
      %v687 = vunpack.c.1.s8 %v441
      %v688 = vunpack.c.2.s8 %v439
      %v689 = vunpack.c.2.s8 %v440
      %v690 = vunpack.c.2.s8 %v441
      %v691 = vunpack.c.3.s8 %v439
      %v692 = vunpack.c.3.s8 %v440
      %v693 = vunpack.c.3.s8 %v441
      %v694 = vunpack.c.0.s8 %v442
      %v695 = vunpack.c.0.s8 %v443
      %v696 = vunpack.c.0.s8 %v444
      %v697 = vunpack.c.1.s8 %v442
      %v698 = vunpack.c.1.s8 %v443
      %v699 = vunpack.c.1.s8 %v444
      %v700 = vunpack.c.2.s8 %v442
      %v701 = vunpack.c.2.s8 %v443
      %v702 = vunpack.c.2.s8 %v444
      %v703 = vunpack.c.3.s8 %v442
      %v704 = vunpack.c.3.s8 %v443
      %v705 = vunpack.c.3.s8 %v444
      %v706 = vunpack.c.0.s8 %v445
      %v707 = vunpack.c.0.s8 %v446
      %v708 = vunpack.c.0.s8 %v447
      %v709 = vunpack.c.1.s8 %v445
      %v710 = vunpack.c.1.s8 %v446
      %v711 = vunpack.c.1.s8 %v447
      %v712 = vunpack.c.2.s8 %v445
      %v713 = vunpack.c.2.s8 %v446
      %v714 = vunpack.c.2.s8 %v447
      %v715 = vunpack.c.3.s8 %v445
      %v716 = vunpack.c.3.s8 %v446
      %v717 = vunpack.c.3.s8 %v447
      %v718 = vunpack.c.0.s8 %v448
      %v719 = vunpack.c.0.s8 %v449
      %v720 = vunpack.c.0.s8 %v450
      %v721 = vunpack.c.1.s8 %v448
      %v722 = vunpack.c.1.s8 %v449
      %v723 = vunpack.c.1.s8 %v450
      %v724 = vunpack.c.2.s8 %v448
      %v725 = vunpack.c.2.s8 %v449
      %v726 = vunpack.c.2.s8 %v450
      %v727 = vunpack.c.3.s8 %v448
      %v728 = vunpack.c.3.s8 %v449
      %v729 = vunpack.c.3.s8 %v450
      %v730 = vunpack.c.0.s8 %v451
      %v731 = vunpack.c.0.s8 %v452
      %v732 = vunpack.c.0.s8 %v453
      %v733 = vunpack.c.1.s8 %v451
      %v734 = vunpack.c.1.s8 %v452
      %v735 = vunpack.c.1.s8 %v453
      %v736 = vunpack.c.2.s8 %v451
      %v737 = vunpack.c.2.s8 %v452
      %v738 = vunpack.c.2.s8 %v453
      %v739 = vunpack.c.3.s8 %v451
      %v740 = vunpack.c.3.s8 %v452
      %v741 = vunpack.c.3.s8 %v453
      %v742 = vunpack.c.0.s8 %v454
      %v743 = vunpack.c.0.s8 %v455
      %v744 = vunpack.c.0.s8 %v456
      %v745 = vunpack.c.1.s8 %v454
      %v746 = vunpack.c.1.s8 %v455
      %v747 = vunpack.c.1.s8 %v456
      %v748 = vunpack.c.2.s8 %v454
      %v749 = vunpack.c.2.s8 %v455
      %v750 = vunpack.c.2.s8 %v456
      %v751 = vunpack.c.3.s8 %v454
      %v752 = vunpack.c.3.s8 %v455
      %v753 = vunpack.c.3.s8 %v456
      %v754 = vunpack.c.0.s8 %v457
      %v755 = vunpack.c.0.s8 %v458
      %v756 = vunpack.c.0.s8 %v459
      %v757 = vunpack.c.1.s8 %v457
      %v758 = vunpack.c.1.s8 %v458
      %v759 = vunpack.c.1.s8 %v459
      %v760 = vunpack.c.2.s8 %v457
      %v761 = vunpack.c.2.s8 %v458
      %v762 = vunpack.c.2.s8 %v459
      %v763 = vunpack.c.3.s8 %v457
      %v764 = vunpack.c.3.s8 %v458
      %v765 = vunpack.c.3.s8 %v459
      %v766 = vunpack.c.0.s8 %v460
      %v767 = vunpack.c.0.s8 %v461
      %v768 = vunpack.c.0.s8 %v462
      %v769 = vunpack.c.1.s8 %v460
      %v770 = vunpack.c.1.s8 %v461
      %v771 = vunpack.c.1.s8 %v462
      %v772 = vunpack.c.2.s8 %v460
      %v773 = vunpack.c.2.s8 %v461
      %v774 = vunpack.c.2.s8 %v462
      %v775 = vunpack.c.3.s8 %v460
      %v776 = vunpack.c.3.s8 %v461
      %v777 = vunpack.c.3.s8 %v462
      %v778 = vunpack.c.0.s8 %v463
      %v779 = vunpack.c.0.s8 %v464
      %v780 = vunpack.c.0.s8 %v465
      %v781 = vunpack.c.1.s8 %v463
      %v782 = vunpack.c.1.s8 %v464
      %v783 = vunpack.c.1.s8 %v465
      %v784 = vunpack.c.2.s8 %v463
      %v785 = vunpack.c.2.s8 %v464
      %v786 = vunpack.c.2.s8 %v465
      %v787 = vunpack.c.3.s8 %v463
      %v788 = vunpack.c.3.s8 %v464
      %v789 = vunpack.c.3.s8 %v465
      %v790 = vunpack.c.0.s8 %v466
      %v791 = vunpack.c.0.s8 %v467
      %v792 = vunpack.c.0.s8 %v468
      %v793 = vunpack.c.1.s8 %v466
      %v794 = vunpack.c.1.s8 %v467
      %v795 = vunpack.c.1.s8 %v468
      %v796 = vunpack.c.2.s8 %v466
      %v797 = vunpack.c.2.s8 %v467
      %v798 = vunpack.c.2.s8 %v468
      %v799 = vunpack.c.3.s8 %v466
      %v800 = vunpack.c.3.s8 %v467
      %v801 = vunpack.c.3.s8 %v468
      %v802 = vunpack.c.0.s8 %v469
      %v803 = vunpack.c.0.s8 %v470
      %v804 = vunpack.c.0.s8 %v471
      %v805 = vunpack.c.1.s8 %v469
      %v806 = vunpack.c.1.s8 %v470
      %v807 = vunpack.c.1.s8 %v471
      %v808 = vunpack.c.2.s8 %v469
      %v809 = vunpack.c.2.s8 %v470
      %v810 = vunpack.c.2.s8 %v471
      %v811 = vunpack.c.3.s8 %v469
      %v812 = vunpack.c.3.s8 %v470
      %v813 = vunpack.c.3.s8 %v471
      %v814 = vunpack.c.0.s8 %v472
      %v815 = vunpack.c.0.s8 %v473
      %v816 = vunpack.c.0.s8 %v474
      %v817 = vunpack.c.1.s8 %v472
      %v818 = vunpack.c.1.s8 %v473
      %v819 = vunpack.c.1.s8 %v474
      %v820 = vunpack.c.2.s8 %v472
      %v821 = vunpack.c.2.s8 %v473
      %v822 = vunpack.c.2.s8 %v474
      %v823 = vunpack.c.3.s8 %v472
      %v824 = vunpack.c.3.s8 %v473
      %v825 = vunpack.c.3.s8 %v474
      %v826 = vunpack.c.0.s8 %v475
      %v827 = vunpack.c.0.s8 %v476
      %v828 = vunpack.c.0.s8 %v477
      %v829 = vunpack.c.1.s8 %v475
      %v830 = vunpack.c.1.s8 %v476
      %v831 = vunpack.c.1.s8 %v477
      %v832 = vunpack.c.2.s8 %v475
      %v833 = vunpack.c.2.s8 %v476
      %v834 = vunpack.c.2.s8 %v477
      %v835 = vunpack.c.3.s8 %v475
      %v836 = vunpack.c.3.s8 %v476
      %v837 = vunpack.c.3.s8 %v477
      %v838 = vunpack.c.0.s8 %v478
      %v839 = vunpack.c.0.s8 %v479
      %v840 = vunpack.c.0.s8 %v480
      %v841 = vunpack.c.1.s8 %v478
      %v842 = vunpack.c.1.s8 %v479
      %v843 = vunpack.c.1.s8 %v480
      %v844 = vunpack.c.2.s8 %v478
      %v845 = vunpack.c.2.s8 %v479
      %v846 = vunpack.c.2.s8 %v480
      %v847 = vunpack.c.3.s8 %v478
      %v848 = vunpack.c.3.s8 %v479
      %v849 = vunpack.c.3.s8 %v480
      %v850 = vunpack.c.0.s8 %v481
      %v851 = vunpack.c.0.s8 %v482
      %v852 = vunpack.c.0.s8 %v483
      %v853 = vunpack.c.1.s8 %v481
      %v854 = vunpack.c.1.s8 %v482
      %v855 = vunpack.c.1.s8 %v483
      %v856 = vunpack.c.2.s8 %v481
      %v857 = vunpack.c.2.s8 %v482
      %v858 = vunpack.c.2.s8 %v483
      %v859 = vunpack.c.3.s8 %v481
      %v860 = vunpack.c.3.s8 %v482
      %v861 = vunpack.c.3.s8 %v483
      %v862 = vunpack.c.0.s8 %v484
      %v863 = vunpack.c.0.s8 %v485
      %v864 = vunpack.c.0.s8 %v486
      %v865 = vunpack.c.1.s8 %v484
      %v866 = vunpack.c.1.s8 %v485
      %v867 = vunpack.c.1.s8 %v486
      %v868 = vunpack.c.2.s8 %v484
      %v869 = vunpack.c.2.s8 %v485
      %v870 = vunpack.c.2.s8 %v486
      %v871 = vunpack.c.3.s8 %v484
      %v872 = vunpack.c.3.s8 %v485
      %v873 = vunpack.c.3.s8 %v486
      %v874 = vunpack.c.0.s8 %v487
      %v875 = vunpack.c.0.s8 %v488
      %v876 = vunpack.c.0.s8 %v489
      %v877 = vunpack.c.1.s8 %v487
      %v878 = vunpack.c.1.s8 %v488
      %v879 = vunpack.c.1.s8 %v489
      %v880 = vunpack.c.2.s8 %v487
      %v881 = vunpack.c.2.s8 %v488
      %v882 = vunpack.c.2.s8 %v489
      %v883 = vunpack.c.3.s8 %v487
      %v884 = vunpack.c.3.s8 %v488
      %v885 = vunpack.c.3.s8 %v489
      %v886 = vunpack.c.0.s8 %v490
      %v887 = vunpack.c.0.s8 %v491
      %v888 = vunpack.c.0.s8 %v492
      %v889 = vunpack.c.1.s8 %v490
      %v890 = vunpack.c.1.s8 %v491
      %v891 = vunpack.c.1.s8 %v492
      %v892 = vunpack.c.2.s8 %v490
      %v893 = vunpack.c.2.s8 %v491
      %v894 = vunpack.c.2.s8 %v492
      %v895 = vunpack.c.3.s8 %v490
      %v896 = vunpack.c.3.s8 %v491
      %v897 = vunpack.c.3.s8 %v492
      %v898 = vunpack.c.0.s8 %v493
      %v899 = vunpack.c.0.s8 %v494
      %v900 = vunpack.c.0.s8 %v495
      %v901 = vunpack.c.1.s8 %v493
      %v902 = vunpack.c.1.s8 %v494
      %v903 = vunpack.c.1.s8 %v495
      %v904 = vunpack.c.2.s8 %v493
      %v905 = vunpack.c.2.s8 %v494
      %v906 = vunpack.c.2.s8 %v495
      %v907 = vunpack.c.3.s8 %v493
      %v908 = vunpack.c.3.s8 %v494
      %v909 = vunpack.c.3.s8 %v495
      %v910 = vunpack.c.0.s8 %v496
      %v911 = vunpack.c.0.s8 %v497
      %v912 = vunpack.c.0.s8 %v498
      %v913 = vunpack.c.1.s8 %v496
      %v914 = vunpack.c.1.s8 %v497
      %v915 = vunpack.c.1.s8 %v498
      %v916 = vunpack.c.2.s8 %v496
      %v917 = vunpack.c.2.s8 %v497
      %v918 = vunpack.c.2.s8 %v498
      %v919 = vunpack.c.3.s8 %v496
      %v920 = vunpack.c.3.s8 %v497
      %v921 = vunpack.c.3.s8 %v498
      %v922 = vunpack.c.0.s8 %v499
      %v923 = vunpack.c.0.s8 %v500
      %v924 = vunpack.c.0.s8 %v501
      %v925 = vunpack.c.1.s8 %v499
      %v926 = vunpack.c.1.s8 %v500
      %v927 = vunpack.c.1.s8 %v501
      %v928 = vunpack.c.2.s8 %v499
      %v929 = vunpack.c.2.s8 %v500
      %v930 = vunpack.c.2.s8 %v501
      %v931 = vunpack.c.3.s8 %v499
      %v932 = vunpack.c.3.s8 %v500
      %v933 = vunpack.c.3.s8 %v501
      %v934 = vcvt.s32.f32 %v502
      %v935 = vcvt.s32.f32 %v503
      %v936 = vcvt.s32.f32 %v504
      %v937 = vcvt.s32.f32 %v505
      %v938 = vcvt.s32.f32 %v506
      %v939 = vcvt.s32.f32 %v507
      %v940 = vcvt.s32.f32 %v508
      %v941 = vcvt.s32.f32 %v509
      %v942 = vcvt.s32.f32 %v510
      %v943 = vcvt.s32.f32 %v511
      %v944 = vcvt.s32.f32 %v512
      %v945 = vcvt.s32.f32 %v513
      %v946 = vcvt.s32.f32 %v514
      %v947 = vcvt.s32.f32 %v515
      %v948 = vcvt.s32.f32 %v516
      %v949 = vcvt.s32.f32 %v517
      %v950 = vcvt.s32.f32 %v518
      %v951 = vcvt.s32.f32 %v519
      %v952 = vcvt.s32.f32 %v520
      %v953 = vcvt.s32.f32 %v521
      %v954 = vcvt.s32.f32 %v522
      %v955 = vcvt.s32.f32 %v523
      %v956 = vcvt.s32.f32 %v524
      %v957 = vcvt.s32.f32 %v525
      %v958 = vcvt.s32.f32 %v526
      %v959 = vcvt.s32.f32 %v527
      %v960 = vcvt.s32.f32 %v528
      %v961 = vcvt.s32.f32 %v529
      %v962 = vcvt.s32.f32 %v530
      %v963 = vcvt.s32.f32 %v531
      %v964 = vcvt.s32.f32 %v532
      %v965 = vcvt.s32.f32 %v533
      %v966 = vcvt.s32.f32 %v534
      %v967 = vcvt.s32.f32 %v535
      %v968 = vcvt.s32.f32 %v536
      %v969 = vcvt.s32.f32 %v537
      %v970 = vcvt.s32.f32 %v538
      %v971 = vcvt.s32.f32 %v539
      %v972 = vcvt.s32.f32 %v540
      %v973 = vcvt.s32.f32 %v541
      %v974 = vcvt.s32.f32 %v542
      %v975 = vcvt.s32.f32 %v543
      %v976 = vcvt.s32.f32 %v544
      %v977 = vcvt.s32.f32 %v545
      %v978 = vcvt.s32.f32 %v546
      %v979 = vcvt.s32.f32 %v547
      %v980 = vcvt.s32.f32 %v548
      %v981 = vcvt.s32.f32 %v549
      %v982 = vcvt.s32.f32 %v550
      %v983 = vcvt.s32.f32 %v551
      %v984 = vcvt.s32.f32 %v552
      %v985 = vcvt.s32.f32 %v553
      %v986 = vcvt.s32.f32 %v554
      %v987 = vcvt.s32.f32 %v555
      %v988 = vcvt.s32.f32 %v556
      %v989 = vcvt.s32.f32 %v557
      %v990 = vcvt.s32.f32 %v558
      %v991 = vcvt.s32.f32 %v559
      %v992 = vcvt.s32.f32 %v560
      %v993 = vcvt.s32.f32 %v561
      %v994 = vcvt.s32.f32 %v562
      %v995 = vcvt.s32.f32 %v563
      %v996 = vcvt.s32.f32 %v564
      %v997 = vcvt.s32.f32 %v565
      %v998 = vcvt.s32.f32 %v566
      %v999 = vcvt.s32.f32 %v567
      %v1000 = vcvt.s32.f32 %v568
      %v1001 = vcvt.s32.f32 %v569
      %v1002 = vcvt.s32.f32 %v570
      %v1003 = vcvt.s32.f32 %v571
      %v1004 = vcvt.s32.f32 %v572
      %v1005 = vcvt.s32.f32 %v573
      %v1006 = vcvt.s32.f32 %v574
      %v1007 = vcvt.s32.f32 %v575
      %v1008 = vcvt.s32.f32 %v576
      %v1009 = vcvt.s32.f32 %v577
      %v1010 = vcvt.s32.f32 %v578
      %v1011 = vcvt.s32.f32 %v579
      %v1012 = vcvt.s32.f32 %v580
      %v1013 = vcvt.s32.f32 %v581
      %v1014 = vcvt.s32.f32 %v582
      %v1015 = vcvt.s32.f32 %v583
      %v1016 = vcvt.s32.f32 %v584
      %v1017 = vcvt.s32.f32 %v585
      %v1018 = vcvt.s32.f32 %v586
      %v1019 = vcvt.s32.f32 %v587
      %v1020 = vcvt.s32.f32 %v588
      %v1021 = vcvt.s32.f32 %v589
      %v1022 = vcvt.s32.f32 %v590
      %v1023 = vcvt.s32.f32 %v591
      %v1024 = vcvt.s32.f32 %v592
      %v1025 = vcvt.s32.f32 %v593
      %v1026 = vcvt.s32.f32 %v594
      %v1027 = vcvt.s32.f32 %v595
      %v1028 = vcvt.s32.f32 %v596
      %v1029 = vcvt.s32.f32 %v597
      %v1030 = vcvt.s32.f32 %v598
      %v1031 = vcvt.s32.f32 %v599
      %v1032 = vcvt.s32.f32 %v600
      %v1033 = vcvt.s32.f32 %v601
      %v1034 = vcvt.s32.f32 %v602
      %v1035 = vcvt.s32.f32 %v603
      %v1036 = vcvt.s32.f32 %v604
      %v1037 = vcvt.s32.f32 %v605
      %v1038 = vcvt.s32.f32 %v606
      %v1039 = vcvt.s32.f32 %v607
      %v1040 = vcvt.s32.f32 %v608
      %v1041 = vcvt.s32.f32 %v609
      %v1042 = vcvt.s32.f32 %v610
      %v1043 = vcvt.s32.f32 %v611
      %v1044 = vcvt.s32.f32 %v612
      %v1045 = vcvt.s32.f32 %v613
      %v1046 = vcvt.s32.f32 %v614
      %v1047 = vcvt.s32.f32 %v615
      %v1048 = vcvt.s32.f32 %v616
      %v1049 = vcvt.s32.f32 %v617
      %v1050 = vcvt.s32.f32 %v618
      %v1051 = vcvt.s32.f32 %v619
      %v1052 = vcvt.s32.f32 %v620
      %v1053 = vcvt.s32.f32 %v621
      %v1054 = vcvt.s32.f32 %v622
      %v1055 = vcvt.s32.f32 %v623
      %v1056 = vcvt.s32.f32 %v624
      %v1057 = vcvt.s32.f32 %v625
      %v1058 = vcvt.s32.f32 %v626
      %v1059 = vcvt.s32.f32 %v627
      %v1060 = vcvt.s32.f32 %v628
      %v1061 = vcvt.s32.f32 %v629
      %v1062 = vcvt.s32.f32 %v630
      %v1063 = vcvt.s32.f32 %v631
      %v1064 = vcvt.s32.f32 %v632
      %v1065 = vcvt.s32.f32 %v633
      %v1066 = vcvt.s32.f32 %v634
      %v1067 = vcvt.s32.f32 %v635
      %v1068 = vcvt.s32.f32 %v636
      %v1069 = vcvt.s32.f32 %v637
      %v1070 = vcvt.s32.f32 %v638
      %v1071 = vcvt.s32.f32 %v639
      %v1072 = vcvt.s32.f32 %v640
      %v1073 = vcvt.s32.f32 %v641
      %v1074 = vcvt.s32.f32 %v642
      %v1075 = vcvt.s32.f32 %v643
      %v1076 = vcvt.s32.f32 %v644
      %v1077 = vcvt.s32.f32 %v645
      %v1078 = vcvt.s32.f32 %v646
      %v1079 = vcvt.s32.f32 %v647
      %v1080 = vcvt.s32.f32 %v648
      %v1081 = vcvt.s32.f32 %v649
      %v1082 = vcvt.s32.f32 %v650
      %v1083 = vcvt.s32.f32 %v651
      %v1084 = vcvt.s32.f32 %v652
      %v1085 = vcvt.s32.f32 %v653
      %v1086 = vcvt.s32.f32 %v654
      %v1087 = vcvt.s32.f32 %v655
      %v1088 = vcvt.s32.f32 %v656
      %v1089 = vcvt.s32.f32 %v657
      %v1090 = vcvt.s32.f32 %v658
      %v1091 = vcvt.s32.f32 %v659
      %v1092 = vcvt.s32.f32 %v660
      %v1093 = vcvt.s32.f32 %v661
      %v1094 = vcvt.s32.f32 %v662
      %v1095 = vcvt.s32.f32 %v663
      %v1096 = vcvt.s32.f32 %v664
      %v1097 = vcvt.s32.f32 %v665
      %v1098 = vcvt.s32.f32 %v666
      %v1099 = vcvt.s32.f32 %v667
      %v1100 = vcvt.s32.f32 %v668
      %v1101 = vcvt.s32.f32 %v669
      %v1102 = vcvt.s32.f32 %v670
      %v1103 = vcvt.s32.f32 %v671
      %v1104 = vcvt.s32.f32 %v672
      %v1105 = vcvt.s32.f32 %v673
      %v1106 = vcvt.s32.f32 %v674
      %v1107 = vcvt.s32.f32 %v675
      %v1108 = vcvt.s32.f32 %v676
      %v1109 = vcvt.s32.f32 %v677
      %v1110 = vcvt.s32.f32 %v678
      %v1111 = vcvt.s32.f32 %v679
      %v1112 = vcvt.s32.f32 %v680
      %v1113 = vcvt.s32.f32 %v681
      %v1114 = vcvt.s32.f32 %v682
      %v1115 = vcvt.s32.f32 %v683
      %v1116 = vcvt.s32.f32 %v684
      %v1117 = vcvt.s32.f32 %v685
      %v1118 = vcvt.s32.f32 %v686
      %v1119 = vcvt.s32.f32 %v687
      %v1120 = vcvt.s32.f32 %v688
      %v1121 = vcvt.s32.f32 %v689
      %v1122 = vcvt.s32.f32 %v690
      %v1123 = vcvt.s32.f32 %v691
      %v1124 = vcvt.s32.f32 %v692
      %v1125 = vcvt.s32.f32 %v693
      %v1126 = vcvt.s32.f32 %v694
      %v1127 = vcvt.s32.f32 %v695
      %v1128 = vcvt.s32.f32 %v696
      %v1129 = vcvt.s32.f32 %v697
      %v1130 = vcvt.s32.f32 %v698
      %v1131 = vcvt.s32.f32 %v699
      %v1132 = vcvt.s32.f32 %v700
      %v1133 = vcvt.s32.f32 %v701
      %v1134 = vcvt.s32.f32 %v702
      %v1135 = vcvt.s32.f32 %v703
      %v1136 = vcvt.s32.f32 %v704
      %v1137 = vcvt.s32.f32 %v705
      %v1138 = vcvt.s32.f32 %v706
      %v1139 = vcvt.s32.f32 %v707
      %v1140 = vcvt.s32.f32 %v708
      %v1141 = vcvt.s32.f32 %v709
      %v1142 = vcvt.s32.f32 %v710
      %v1143 = vcvt.s32.f32 %v711
      %v1144 = vcvt.s32.f32 %v712
      %v1145 = vcvt.s32.f32 %v713
      %v1146 = vcvt.s32.f32 %v714
      %v1147 = vcvt.s32.f32 %v715
      %v1148 = vcvt.s32.f32 %v716
      %v1149 = vcvt.s32.f32 %v717
      %v1150 = vcvt.s32.f32 %v718
      %v1151 = vcvt.s32.f32 %v719
      %v1152 = vcvt.s32.f32 %v720
      %v1153 = vcvt.s32.f32 %v721
      %v1154 = vcvt.s32.f32 %v722
      %v1155 = vcvt.s32.f32 %v723
      %v1156 = vcvt.s32.f32 %v724
      %v1157 = vcvt.s32.f32 %v725
      %v1158 = vcvt.s32.f32 %v726
      %v1159 = vcvt.s32.f32 %v727
      %v1160 = vcvt.s32.f32 %v728
      %v1161 = vcvt.s32.f32 %v729
      %v1162 = vcvt.s32.f32 %v730
      %v1163 = vcvt.s32.f32 %v731
      %v1164 = vcvt.s32.f32 %v732
      %v1165 = vcvt.s32.f32 %v733
      %v1166 = vcvt.s32.f32 %v734
      %v1167 = vcvt.s32.f32 %v735
      %v1168 = vcvt.s32.f32 %v736
      %v1169 = vcvt.s32.f32 %v737
      %v1170 = vcvt.s32.f32 %v738
      %v1171 = vcvt.s32.f32 %v739
      %v1172 = vcvt.s32.f32 %v740
      %v1173 = vcvt.s32.f32 %v741
      %v1174 = vcvt.s32.f32 %v742
      %v1175 = vcvt.s32.f32 %v743
      %v1176 = vcvt.s32.f32 %v744
      %v1177 = vcvt.s32.f32 %v745
      %v1178 = vcvt.s32.f32 %v746
      %v1179 = vcvt.s32.f32 %v747
      %v1180 = vcvt.s32.f32 %v748
      %v1181 = vcvt.s32.f32 %v749
      %v1182 = vcvt.s32.f32 %v750
      %v1183 = vcvt.s32.f32 %v751
      %v1184 = vcvt.s32.f32 %v752
      %v1185 = vcvt.s32.f32 %v753
      %v1186 = vcvt.s32.f32 %v754
      %v1187 = vcvt.s32.f32 %v755
      %v1188 = vcvt.s32.f32 %v756
      %v1189 = vcvt.s32.f32 %v757
      %v1190 = vcvt.s32.f32 %v758
      %v1191 = vcvt.s32.f32 %v759
      %v1192 = vcvt.s32.f32 %v760
      %v1193 = vcvt.s32.f32 %v761
      %v1194 = vcvt.s32.f32 %v762
      %v1195 = vcvt.s32.f32 %v763
      %v1196 = vcvt.s32.f32 %v764
      %v1197 = vcvt.s32.f32 %v765
      %v1198 = vcvt.s32.f32 %v766
      %v1199 = vcvt.s32.f32 %v767
      %v1200 = vcvt.s32.f32 %v768
      %v1201 = vcvt.s32.f32 %v769
      %v1202 = vcvt.s32.f32 %v770
      %v1203 = vcvt.s32.f32 %v771
      %v1204 = vcvt.s32.f32 %v772
      %v1205 = vcvt.s32.f32 %v773
      %v1206 = vcvt.s32.f32 %v774
      %v1207 = vcvt.s32.f32 %v775
      %v1208 = vcvt.s32.f32 %v776
      %v1209 = vcvt.s32.f32 %v777
      %v1210 = vcvt.s32.f32 %v778
      %v1211 = vcvt.s32.f32 %v779
      %v1212 = vcvt.s32.f32 %v780
      %v1213 = vcvt.s32.f32 %v781
      %v1214 = vcvt.s32.f32 %v782
      %v1215 = vcvt.s32.f32 %v783
      %v1216 = vcvt.s32.f32 %v784
      %v1217 = vcvt.s32.f32 %v785
      %v1218 = vcvt.s32.f32 %v786
      %v1219 = vcvt.s32.f32 %v787
      %v1220 = vcvt.s32.f32 %v788
      %v1221 = vcvt.s32.f32 %v789
      %v1222 = vcvt.s32.f32 %v790
      %v1223 = vcvt.s32.f32 %v791
      %v1224 = vcvt.s32.f32 %v792
      %v1225 = vcvt.s32.f32 %v793
      %v1226 = vcvt.s32.f32 %v794
      %v1227 = vcvt.s32.f32 %v795
      %v1228 = vcvt.s32.f32 %v796
      %v1229 = vcvt.s32.f32 %v797
      %v1230 = vcvt.s32.f32 %v798
      %v1231 = vcvt.s32.f32 %v799
      %v1232 = vcvt.s32.f32 %v800
      %v1233 = vcvt.s32.f32 %v801
      %v1234 = vcvt.s32.f32 %v802
      %v1235 = vcvt.s32.f32 %v803
      %v1236 = vcvt.s32.f32 %v804
      %v1237 = vcvt.s32.f32 %v805
      %v1238 = vcvt.s32.f32 %v806
      %v1239 = vcvt.s32.f32 %v807
      %v1240 = vcvt.s32.f32 %v808
      %v1241 = vcvt.s32.f32 %v809
      %v1242 = vcvt.s32.f32 %v810
      %v1243 = vcvt.s32.f32 %v811
      %v1244 = vcvt.s32.f32 %v812
      %v1245 = vcvt.s32.f32 %v813
      %v1246 = vcvt.s32.f32 %v814
      %v1247 = vcvt.s32.f32 %v815
      %v1248 = vcvt.s32.f32 %v816
      %v1249 = vcvt.s32.f32 %v817
      %v1250 = vcvt.s32.f32 %v818
      %v1251 = vcvt.s32.f32 %v819
      %v1252 = vcvt.s32.f32 %v820
      %v1253 = vcvt.s32.f32 %v821
      %v1254 = vcvt.s32.f32 %v822
      %v1255 = vcvt.s32.f32 %v823
      %v1256 = vcvt.s32.f32 %v824
      %v1257 = vcvt.s32.f32 %v825
      %v1258 = vcvt.s32.f32 %v826
      %v1259 = vcvt.s32.f32 %v827
      %v1260 = vcvt.s32.f32 %v828
      %v1261 = vcvt.s32.f32 %v829
      %v1262 = vcvt.s32.f32 %v830
      %v1263 = vcvt.s32.f32 %v831
      %v1264 = vcvt.s32.f32 %v832
      %v1265 = vcvt.s32.f32 %v833
      %v1266 = vcvt.s32.f32 %v834
      %v1267 = vcvt.s32.f32 %v835
      %v1268 = vcvt.s32.f32 %v836
      %v1269 = vcvt.s32.f32 %v837
      %v1270 = vcvt.s32.f32 %v838
      %v1271 = vcvt.s32.f32 %v839
      %v1272 = vcvt.s32.f32 %v840
      %v1273 = vcvt.s32.f32 %v841
      %v1274 = vcvt.s32.f32 %v842
      %v1275 = vcvt.s32.f32 %v843
      %v1276 = vcvt.s32.f32 %v844
      %v1277 = vcvt.s32.f32 %v845
      %v1278 = vcvt.s32.f32 %v846
      %v1279 = vcvt.s32.f32 %v847
      %v1280 = vcvt.s32.f32 %v848
      %v1281 = vcvt.s32.f32 %v849
      %v1282 = vcvt.s32.f32 %v850
      %v1283 = vcvt.s32.f32 %v851
      %v1284 = vcvt.s32.f32 %v852
      %v1285 = vcvt.s32.f32 %v853
      %v1286 = vcvt.s32.f32 %v854
      %v1287 = vcvt.s32.f32 %v855
      %v1288 = vcvt.s32.f32 %v856
      %v1289 = vcvt.s32.f32 %v857
      %v1290 = vcvt.s32.f32 %v858
      %v1291 = vcvt.s32.f32 %v859
      %v1292 = vcvt.s32.f32 %v860
      %v1293 = vcvt.s32.f32 %v861
      %v1294 = vcvt.s32.f32 %v862
      %v1295 = vcvt.s32.f32 %v863
      %v1296 = vcvt.s32.f32 %v864
      %v1297 = vcvt.s32.f32 %v865
      %v1298 = vcvt.s32.f32 %v866
      %v1299 = vcvt.s32.f32 %v867
      %v1300 = vcvt.s32.f32 %v868
      %v1301 = vcvt.s32.f32 %v869
      %v1302 = vcvt.s32.f32 %v870
      %v1303 = vcvt.s32.f32 %v871
      %v1304 = vcvt.s32.f32 %v872
      %v1305 = vcvt.s32.f32 %v873
      %v1306 = vcvt.s32.f32 %v874
      %v1307 = vcvt.s32.f32 %v875
      %v1308 = vcvt.s32.f32 %v876
      %v1309 = vcvt.s32.f32 %v877
      %v1310 = vcvt.s32.f32 %v878
      %v1311 = vcvt.s32.f32 %v879
      %v1312 = vcvt.s32.f32 %v880
      %v1313 = vcvt.s32.f32 %v881
      %v1314 = vcvt.s32.f32 %v882
      %v1315 = vcvt.s32.f32 %v883
      %v1316 = vcvt.s32.f32 %v884
      %v1317 = vcvt.s32.f32 %v885
      %v1318 = vcvt.s32.f32 %v886
      %v1319 = vcvt.s32.f32 %v887
      %v1320 = vcvt.s32.f32 %v888
      %v1321 = vcvt.s32.f32 %v889
      %v1322 = vcvt.s32.f32 %v890
      %v1323 = vcvt.s32.f32 %v891
      %v1324 = vcvt.s32.f32 %v892
      %v1325 = vcvt.s32.f32 %v893
      %v1326 = vcvt.s32.f32 %v894
      %v1327 = vcvt.s32.f32 %v895
      %v1328 = vcvt.s32.f32 %v896
      %v1329 = vcvt.s32.f32 %v897
      %v1330 = vcvt.s32.f32 %v898
      %v1331 = vcvt.s32.f32 %v899
      %v1332 = vcvt.s32.f32 %v900
      %v1333 = vcvt.s32.f32 %v901
      %v1334 = vcvt.s32.f32 %v902
      %v1335 = vcvt.s32.f32 %v903
      %v1336 = vcvt.s32.f32 %v904
      %v1337 = vcvt.s32.f32 %v905
      %v1338 = vcvt.s32.f32 %v906
      %v1339 = vcvt.s32.f32 %v907
      %v1340 = vcvt.s32.f32 %v908
      %v1341 = vcvt.s32.f32 %v909
      %v1342 = vcvt.s32.f32 %v910
      %v1343 = vcvt.s32.f32 %v911
      %v1344 = vcvt.s32.f32 %v912
      %v1345 = vcvt.s32.f32 %v913
      %v1346 = vcvt.s32.f32 %v914
      %v1347 = vcvt.s32.f32 %v915
      %v1348 = vcvt.s32.f32 %v916
      %v1349 = vcvt.s32.f32 %v917
      %v1350 = vcvt.s32.f32 %v918
      %v1351 = vcvt.s32.f32 %v919
      %v1352 = vcvt.s32.f32 %v920
      %v1353 = vcvt.s32.f32 %v921
      %v1354 = vcvt.s32.f32 %v922
      %v1355 = vcvt.s32.f32 %v923
      %v1356 = vcvt.s32.f32 %v924
      %v1357 = vcvt.s32.f32 %v925
      %v1358 = vcvt.s32.f32 %v926
      %v1359 = vcvt.s32.f32 %v927
      %v1360 = vcvt.s32.f32 %v928
      %v1361 = vcvt.s32.f32 %v929
      %v1362 = vcvt.s32.f32 %v930
      %v1363 = vcvt.s32.f32 %v931
      %v1364 = vcvt.s32.f32 %v932
      %v1365 = vcvt.s32.f32 %v933
      %v1366 = vpack.c.bf16 %v937, %v934
      %v1367 = vpack.c.bf16 %v938, %v935
      %v1368 = vpack.c.bf16 %v939, %v936
      %v1369 = vpack.c.bf16 %v943, %v940
      %v1370 = vpack.c.bf16 %v944, %v941
      %v1371 = vpack.c.bf16 %v945, %v942
      %v1372 = vpack.c.bf16 %v949, %v946
      %v1373 = vpack.c.bf16 %v950, %v947
      %v1374 = vpack.c.bf16 %v951, %v948
      %v1375 = vpack.c.bf16 %v955, %v952
      %v1376 = vpack.c.bf16 %v956, %v953
      %v1377 = vpack.c.bf16 %v957, %v954
      %v1378 = vpack.c.bf16 %v961, %v958
      %v1379 = vpack.c.bf16 %v962, %v959
      %v1380 = vpack.c.bf16 %v963, %v960
      %v1381 = vpack.c.bf16 %v967, %v964
      %v1382 = vpack.c.bf16 %v968, %v965
      %v1383 = vpack.c.bf16 %v969, %v966
      %v1384 = vpack.c.bf16 %v973, %v970
      %v1385 = vpack.c.bf16 %v974, %v971
      %v1386 = vpack.c.bf16 %v975, %v972
      %v1387 = vpack.c.bf16 %v979, %v976
      %v1388 = vpack.c.bf16 %v980, %v977
      %v1389 = vpack.c.bf16 %v981, %v978
      %v1390 = vpack.c.bf16 %v985, %v982
      %v1391 = vpack.c.bf16 %v986, %v983
      %v1392 = vpack.c.bf16 %v987, %v984
      %v1393 = vpack.c.bf16 %v991, %v988
      %v1394 = vpack.c.bf16 %v992, %v989
      %v1395 = vpack.c.bf16 %v993, %v990
      %v1396 = vpack.c.bf16 %v997, %v994
      %v1397 = vpack.c.bf16 %v998, %v995
      %v1398 = vpack.c.bf16 %v999, %v996
      %v1399 = vpack.c.bf16 %v1003, %v1000
      %v1400 = vpack.c.bf16 %v1004, %v1001
      %v1401 = vpack.c.bf16 %v1005, %v1002
      %v1402 = vpack.c.bf16 %v1009, %v1006
      %v1403 = vpack.c.bf16 %v1010, %v1007
      %v1404 = vpack.c.bf16 %v1011, %v1008
      %v1405 = vpack.c.bf16 %v1015, %v1012
      %v1406 = vpack.c.bf16 %v1016, %v1013
      %v1407 = vpack.c.bf16 %v1017, %v1014
      %v1408 = vpack.c.bf16 %v1021, %v1018
      %v1409 = vpack.c.bf16 %v1022, %v1019
      %v1410 = vpack.c.bf16 %v1023, %v1020
      %v1411 = vpack.c.bf16 %v1027, %v1024
      %v1412 = vpack.c.bf16 %v1028, %v1025
      %v1413 = vpack.c.bf16 %v1029, %v1026
      %v1414 = vpack.c.bf16 %v1033, %v1030
      %v1415 = vpack.c.bf16 %v1034, %v1031
      %v1416 = vpack.c.bf16 %v1035, %v1032
      %v1417 = vpack.c.bf16 %v1039, %v1036
      %v1418 = vpack.c.bf16 %v1040, %v1037
      %v1419 = vpack.c.bf16 %v1041, %v1038
      %v1420 = vpack.c.bf16 %v1045, %v1042
      %v1421 = vpack.c.bf16 %v1046, %v1043
      %v1422 = vpack.c.bf16 %v1047, %v1044
      %v1423 = vpack.c.bf16 %v1051, %v1048
      %v1424 = vpack.c.bf16 %v1052, %v1049
      %v1425 = vpack.c.bf16 %v1053, %v1050
      %v1426 = vpack.c.bf16 %v1057, %v1054
      %v1427 = vpack.c.bf16 %v1058, %v1055
      %v1428 = vpack.c.bf16 %v1059, %v1056
      %v1429 = vpack.c.bf16 %v1063, %v1060
      %v1430 = vpack.c.bf16 %v1064, %v1061
      %v1431 = vpack.c.bf16 %v1065, %v1062
      %v1432 = vpack.c.bf16 %v1069, %v1066
      %v1433 = vpack.c.bf16 %v1070, %v1067
      %v1434 = vpack.c.bf16 %v1071, %v1068
      %v1435 = vpack.c.bf16 %v1075, %v1072
      %v1436 = vpack.c.bf16 %v1076, %v1073
      %v1437 = vpack.c.bf16 %v1077, %v1074
      %v1438 = vpack.c.bf16 %v1081, %v1078
      %v1439 = vpack.c.bf16 %v1082, %v1079
      %v1440 = vpack.c.bf16 %v1083, %v1080
      %v1441 = vpack.c.bf16 %v1087, %v1084
      %v1442 = vpack.c.bf16 %v1088, %v1085
      %v1443 = vpack.c.bf16 %v1089, %v1086
      %v1444 = vpack.c.bf16 %v1093, %v1090
      %v1445 = vpack.c.bf16 %v1094, %v1091
      %v1446 = vpack.c.bf16 %v1095, %v1092
      %v1447 = vpack.c.bf16 %v1099, %v1096
      %v1448 = vpack.c.bf16 %v1100, %v1097
      %v1449 = vpack.c.bf16 %v1101, %v1098
      %v1450 = vpack.c.bf16 %v1105, %v1102
      %v1451 = vpack.c.bf16 %v1106, %v1103
      %v1452 = vpack.c.bf16 %v1107, %v1104
      %v1453 = vpack.c.bf16 %v1111, %v1108
      %v1454 = vpack.c.bf16 %v1112, %v1109
      %v1455 = vpack.c.bf16 %v1113, %v1110
      %v1456 = vpack.c.bf16 %v1117, %v1114
      %v1457 = vpack.c.bf16 %v1118, %v1115
      %v1458 = vpack.c.bf16 %v1119, %v1116
      %v1459 = vpack.c.bf16 %v1123, %v1120
      %v1460 = vpack.c.bf16 %v1124, %v1121
      %v1461 = vpack.c.bf16 %v1125, %v1122
      %v1462 = vpack.c.bf16 %v1129, %v1126
      %v1463 = vpack.c.bf16 %v1130, %v1127
      %v1464 = vpack.c.bf16 %v1131, %v1128
      %v1465 = vpack.c.bf16 %v1135, %v1132
      %v1466 = vpack.c.bf16 %v1136, %v1133
      %v1467 = vpack.c.bf16 %v1137, %v1134
      %v1468 = vpack.c.bf16 %v1141, %v1138
      %v1469 = vpack.c.bf16 %v1142, %v1139
      %v1470 = vpack.c.bf16 %v1143, %v1140
      %v1471 = vpack.c.bf16 %v1147, %v1144
      %v1472 = vpack.c.bf16 %v1148, %v1145
      %v1473 = vpack.c.bf16 %v1149, %v1146
      %v1474 = vpack.c.bf16 %v1153, %v1150
      %v1475 = vpack.c.bf16 %v1154, %v1151
      %v1476 = vpack.c.bf16 %v1155, %v1152
      %v1477 = vpack.c.bf16 %v1159, %v1156
      %v1478 = vpack.c.bf16 %v1160, %v1157
      %v1479 = vpack.c.bf16 %v1161, %v1158
      %v1480 = vpack.c.bf16 %v1165, %v1162
      %v1481 = vpack.c.bf16 %v1166, %v1163
      %v1482 = vpack.c.bf16 %v1167, %v1164
      %v1483 = vpack.c.bf16 %v1171, %v1168
      %v1484 = vpack.c.bf16 %v1172, %v1169
      %v1485 = vpack.c.bf16 %v1173, %v1170
      %v1486 = vpack.c.bf16 %v1177, %v1174
      %v1487 = vpack.c.bf16 %v1178, %v1175
      %v1488 = vpack.c.bf16 %v1179, %v1176
      %v1489 = vpack.c.bf16 %v1183, %v1180
      %v1490 = vpack.c.bf16 %v1184, %v1181
      %v1491 = vpack.c.bf16 %v1185, %v1182
      %v1492 = vpack.c.bf16 %v1189, %v1186
      %v1493 = vpack.c.bf16 %v1190, %v1187
      %v1494 = vpack.c.bf16 %v1191, %v1188
      %v1495 = vpack.c.bf16 %v1195, %v1192
      %v1496 = vpack.c.bf16 %v1196, %v1193
      %v1497 = vpack.c.bf16 %v1197, %v1194
      %v1498 = vpack.c.bf16 %v1201, %v1198
      %v1499 = vpack.c.bf16 %v1202, %v1199
      %v1500 = vpack.c.bf16 %v1203, %v1200
      %v1501 = vpack.c.bf16 %v1207, %v1204
      %v1502 = vpack.c.bf16 %v1208, %v1205
      %v1503 = vpack.c.bf16 %v1209, %v1206
      %v1504 = vpack.c.bf16 %v1213, %v1210
      %v1505 = vpack.c.bf16 %v1214, %v1211
      %v1506 = vpack.c.bf16 %v1215, %v1212
      %v1507 = vpack.c.bf16 %v1219, %v1216
      %v1508 = vpack.c.bf16 %v1220, %v1217
      %v1509 = vpack.c.bf16 %v1221, %v1218
      %v1510 = vpack.c.bf16 %v1225, %v1222
      %v1511 = vpack.c.bf16 %v1226, %v1223
      %v1512 = vpack.c.bf16 %v1227, %v1224
      %v1513 = vpack.c.bf16 %v1231, %v1228
      %v1514 = vpack.c.bf16 %v1232, %v1229
      %v1515 = vpack.c.bf16 %v1233, %v1230
      %v1516 = vpack.c.bf16 %v1237, %v1234
      %v1517 = vpack.c.bf16 %v1238, %v1235
      %v1518 = vpack.c.bf16 %v1239, %v1236
      %v1519 = vpack.c.bf16 %v1243, %v1240
      %v1520 = vpack.c.bf16 %v1244, %v1241
      %v1521 = vpack.c.bf16 %v1245, %v1242
      %v1522 = vpack.c.bf16 %v1249, %v1246
      %v1523 = vpack.c.bf16 %v1250, %v1247
      %v1524 = vpack.c.bf16 %v1251, %v1248
      %v1525 = vpack.c.bf16 %v1255, %v1252
      %v1526 = vpack.c.bf16 %v1256, %v1253
      %v1527 = vpack.c.bf16 %v1257, %v1254
      %v1528 = vpack.c.bf16 %v1261, %v1258
      %v1529 = vpack.c.bf16 %v1262, %v1259
      %v1530 = vpack.c.bf16 %v1263, %v1260
      %v1531 = vpack.c.bf16 %v1267, %v1264
      %v1532 = vpack.c.bf16 %v1268, %v1265
      %v1533 = vpack.c.bf16 %v1269, %v1266
      %v1534 = vpack.c.bf16 %v1273, %v1270
      %v1535 = vpack.c.bf16 %v1274, %v1271
      %v1536 = vpack.c.bf16 %v1275, %v1272
      %v1537 = vpack.c.bf16 %v1279, %v1276
      %v1538 = vpack.c.bf16 %v1280, %v1277
      %v1539 = vpack.c.bf16 %v1281, %v1278
      %v1540 = vpack.c.bf16 %v1285, %v1282
      %v1541 = vpack.c.bf16 %v1286, %v1283
      %v1542 = vpack.c.bf16 %v1287, %v1284
      %v1543 = vpack.c.bf16 %v1291, %v1288
      %v1544 = vpack.c.bf16 %v1292, %v1289
      %v1545 = vpack.c.bf16 %v1293, %v1290
      %v1546 = vpack.c.bf16 %v1297, %v1294
      %v1547 = vpack.c.bf16 %v1298, %v1295
      %v1548 = vpack.c.bf16 %v1299, %v1296
      %v1549 = vpack.c.bf16 %v1303, %v1300
      %v1550 = vpack.c.bf16 %v1304, %v1301
      %v1551 = vpack.c.bf16 %v1305, %v1302
      %v1552 = vpack.c.bf16 %v1309, %v1306
      %v1553 = vpack.c.bf16 %v1310, %v1307
      %v1554 = vpack.c.bf16 %v1311, %v1308
      %v1555 = vpack.c.bf16 %v1315, %v1312
      %v1556 = vpack.c.bf16 %v1316, %v1313
      %v1557 = vpack.c.bf16 %v1317, %v1314
      %v1558 = vpack.c.bf16 %v1321, %v1318
      %v1559 = vpack.c.bf16 %v1322, %v1319
      %v1560 = vpack.c.bf16 %v1323, %v1320
      %v1561 = vpack.c.bf16 %v1327, %v1324
      %v1562 = vpack.c.bf16 %v1328, %v1325
      %v1563 = vpack.c.bf16 %v1329, %v1326
      %v1564 = vpack.c.bf16 %v1333, %v1330
      %v1565 = vpack.c.bf16 %v1334, %v1331
      %v1566 = vpack.c.bf16 %v1335, %v1332
      %v1567 = vpack.c.bf16 %v1339, %v1336
      %v1568 = vpack.c.bf16 %v1340, %v1337
      %v1569 = vpack.c.bf16 %v1341, %v1338
      %v1570 = vpack.c.bf16 %v1345, %v1342
      %v1571 = vpack.c.bf16 %v1346, %v1343
      %v1572 = vpack.c.bf16 %v1347, %v1344
      %v1573 = vpack.c.bf16 %v1351, %v1348
      %v1574 = vpack.c.bf16 %v1352, %v1349
      %v1575 = vpack.c.bf16 %v1353, %v1350
      %v1576 = vpack.c.bf16 %v1357, %v1354
      %v1577 = vpack.c.bf16 %v1358, %v1355
      %v1578 = vpack.c.bf16 %v1359, %v1356
      %v1579 = vpack.c.bf16 %v1363, %v1360
      %v1580 = vpack.c.bf16 %v1364, %v1361
      %v1581 = vpack.c.bf16 %v1365, %v1362
      %1582 = vmatpush.bf16.msra.mxu0 %v377
      %1583 = vmatpush.bf16.msra.mxu0 %v376
      %1584 = vmatpush.bf16.msra.mxu0 %v375
      %1585 = vmatpush.bf16.msra.mxu0 %v374
      %1586 = vmatpush.bf16.msra.mxu0 %v373
      %1587 = vmatpush.bf16.msra.mxu0 %v372
      %1588 = vmatpush.bf16.msra.mxu0 %v371
      %1589 = vmatpush.bf16.msra.mxu0 %v370
      %1590 = vmatmul.bf16.gmra.mxu0 %v1366
      %v1591 = vpop.f32.mrf.mxu0
      %v1592 = vadd.f32 0.0, %v1591
      %v1593 = vpop.f32.mrf.mxu0
      %v1594 = vadd.f32 0.0, %v1593
      %1595 = vmatmul.bf16.gmra.mxu0 %v1369
      %v1596 = vpop.f32.mrf.mxu0
      %v1597 = vadd.f32 0.0, %v1596
      %v1598 = vpop.f32.mrf.mxu0
      %v1599 = vadd.f32 0.0, %v1598
      %1600 = vmatmul.bf16.gmra.mxu0 %v1372
      %v1601 = vpop.f32.mrf.mxu0
      %v1602 = vadd.f32 0.0, %v1601
      %v1603 = vpop.f32.mrf.mxu0
      %v1604 = vadd.f32 0.0, %v1603
      %1605 = vmatmul.bf16.gmra.mxu0 %v1375
      %v1606 = vpop.f32.mrf.mxu0
      %v1607 = vadd.f32 0.0, %v1606
      %v1608 = vpop.f32.mrf.mxu0
      %v1609 = vadd.f32 0.0, %v1608
      %1610 = vmatmul.bf16.gmra.mxu0 %v1378
      %v1611 = vpop.f32.mrf.mxu0
      %v1612 = vadd.f32 0.0, %v1611
      %v1613 = vpop.f32.mrf.mxu0
      %v1614 = vadd.f32 0.0, %v1613
      %1615 = vmatmul.bf16.gmra.mxu0 %v1381
      %v1616 = vpop.f32.mrf.mxu0
      %v1617 = vadd.f32 0.0, %v1616
      %v1618 = vpop.f32.mrf.mxu0
      %v1619 = vadd.f32 0.0, %v1618
      %1620 = vmatmul.bf16.gmra.mxu0 %v1384
      %v1621 = vpop.f32.mrf.mxu0
      %v1622 = vadd.f32 0.0, %v1621
      %v1623 = vpop.f32.mrf.mxu0
      %v1624 = vadd.f32 0.0, %v1623
      %1625 = vmatmul.bf16.gmra.mxu0 %v1387
      %v1626 = vpop.f32.mrf.mxu0
      %v1627 = vadd.f32 0.0, %v1626
      %v1628 = vpop.f32.mrf.mxu0
      %v1629 = vadd.f32 0.0, %v1628
      %1630 = vmatmul.bf16.gmra.mxu0 %v1390
      %v1631 = vpop.f32.mrf.mxu0
      %v1632 = vadd.f32 0.0, %v1631
      %v1633 = vpop.f32.mrf.mxu0
      %v1634 = vadd.f32 0.0, %v1633
      %1635 = vmatmul.bf16.gmra.mxu0 %v1393
      %v1636 = vpop.f32.mrf.mxu0
      %v1637 = vadd.f32 0.0, %v1636
      %v1638 = vpop.f32.mrf.mxu0
      %v1639 = vadd.f32 0.0, %v1638
      %1640 = vmatmul.bf16.gmra.mxu0 %v1396
      %v1641 = vpop.f32.mrf.mxu0
      %v1642 = vadd.f32 0.0, %v1641
      %v1643 = vpop.f32.mrf.mxu0
      %v1644 = vadd.f32 0.0, %v1643
      %1645 = vmatmul.bf16.gmra.mxu0 %v1399
      %v1646 = vpop.f32.mrf.mxu0
      %v1647 = vadd.f32 0.0, %v1646
      %v1648 = vpop.f32.mrf.mxu0
      %v1649 = vadd.f32 0.0, %v1648
      %1650 = vmatmul.bf16.gmra.mxu0 %v1402
      %v1651 = vpop.f32.mrf.mxu0
      %v1652 = vadd.f32 0.0, %v1651
      %v1653 = vpop.f32.mrf.mxu0
      %v1654 = vadd.f32 0.0, %v1653
      %1655 = vmatmul.bf16.gmra.mxu0 %v1405
      %v1656 = vpop.f32.mrf.mxu0
      %v1657 = vadd.f32 0.0, %v1656
      %v1658 = vpop.f32.mrf.mxu0
      %v1659 = vadd.f32 0.0, %v1658
      %1660 = vmatmul.bf16.gmra.mxu0 %v1408
      %v1661 = vpop.f32.mrf.mxu0
      %v1662 = vadd.f32 0.0, %v1661
      %v1663 = vpop.f32.mrf.mxu0
      %v1664 = vadd.f32 0.0, %v1663
      %1665 = vmatmul.bf16.gmra.mxu0 %v1411
      %v1666 = vpop.f32.mrf.mxu0
      %v1667 = vadd.f32 0.0, %v1666
      %v1668 = vpop.f32.mrf.mxu0
      %v1669 = vadd.f32 0.0, %v1668
      %1670 = vmatmul.bf16.gmra.mxu0 %v1414
      %v1671 = vpop.f32.mrf.mxu0
      %v1672 = vadd.f32 0.0, %v1671
      %v1673 = vpop.f32.mrf.mxu0
      %v1674 = vadd.f32 0.0, %v1673
      %1675 = vmatmul.bf16.gmra.mxu0 %v1417
      %v1676 = vpop.f32.mrf.mxu0
      %v1677 = vadd.f32 0.0, %v1676
      %v1678 = vpop.f32.mrf.mxu0
      %v1679 = vadd.f32 0.0, %v1678
      %1680 = vmatmul.bf16.gmra.mxu0 %v1420
      %v1681 = vpop.f32.mrf.mxu0
      %v1682 = vadd.f32 0.0, %v1681
      %v1683 = vpop.f32.mrf.mxu0
      %v1684 = vadd.f32 0.0, %v1683
      %1685 = vmatmul.bf16.gmra.mxu0 %v1423
      %v1686 = vpop.f32.mrf.mxu0
      %v1687 = vadd.f32 0.0, %v1686
      %v1688 = vpop.f32.mrf.mxu0
      %v1689 = vadd.f32 0.0, %v1688
      %1690 = vmatmul.bf16.gmra.mxu0 %v1426
      %v1691 = vpop.f32.mrf.mxu0
      %v1692 = vadd.f32 0.0, %v1691
      %v1693 = vpop.f32.mrf.mxu0
      %v1694 = vadd.f32 0.0, %v1693
      %1695 = vmatmul.bf16.gmra.mxu0 %v1429
      %v1696 = vpop.f32.mrf.mxu0
      %v1697 = vadd.f32 0.0, %v1696
      %v1698 = vpop.f32.mrf.mxu0
      %v1699 = vadd.f32 0.0, %v1698
      %1700 = vmatmul.bf16.gmra.mxu0 %v1432
      %v1701 = vpop.f32.mrf.mxu0
      %v1702 = vadd.f32 0.0, %v1701
      %v1703 = vpop.f32.mrf.mxu0
      %v1704 = vadd.f32 0.0, %v1703
      %1705 = vmatmul.bf16.gmra.mxu0 %v1435
      %v1706 = vpop.f32.mrf.mxu0
      %v1707 = vadd.f32 0.0, %v1706
      %v1708 = vpop.f32.mrf.mxu0
      %v1709 = vadd.f32 0.0, %v1708
      %1710 = vmatmul.bf16.gmra.mxu0 %v1438
      %v1711 = vpop.f32.mrf.mxu0
      %v1712 = vadd.f32 0.0, %v1711
      %v1713 = vpop.f32.mrf.mxu0
      %v1714 = vadd.f32 0.0, %v1713
      %1715 = vmatmul.bf16.gmra.mxu0 %v1441
      %v1716 = vpop.f32.mrf.mxu0
      %v1717 = vadd.f32 0.0, %v1716
      %v1718 = vpop.f32.mrf.mxu0
      %v1719 = vadd.f32 0.0, %v1718
      %1720 = vmatmul.bf16.gmra.mxu0 %v1444
      %v1721 = vpop.f32.mrf.mxu0
      %v1722 = vadd.f32 0.0, %v1721
      %v1723 = vpop.f32.mrf.mxu0
      %v1724 = vadd.f32 0.0, %v1723
      %1725 = vmatmul.bf16.gmra.mxu0 %v1447
      %v1726 = vpop.f32.mrf.mxu0
      %v1727 = vadd.f32 0.0, %v1726
      %v1728 = vpop.f32.mrf.mxu0
      %v1729 = vadd.f32 0.0, %v1728
      %1730 = vmatmul.bf16.gmra.mxu0 %v1450
      %v1731 = vpop.f32.mrf.mxu0
      %v1732 = vadd.f32 0.0, %v1731
      %v1733 = vpop.f32.mrf.mxu0
      %v1734 = vadd.f32 0.0, %v1733
      %1735 = vmatmul.bf16.gmra.mxu0 %v1453
      %v1736 = vpop.f32.mrf.mxu0
      %v1737 = vadd.f32 0.0, %v1736
      %v1738 = vpop.f32.mrf.mxu0
      %v1739 = vadd.f32 0.0, %v1738
      %1740 = vmatmul.bf16.gmra.mxu0 %v1456
      %v1741 = vpop.f32.mrf.mxu0
      %v1742 = vadd.f32 0.0, %v1741
      %v1743 = vpop.f32.mrf.mxu0
      %v1744 = vadd.f32 0.0, %v1743
      %1745 = vmatmul.bf16.gmra.mxu0 %v1459
      %v1746 = vpop.f32.mrf.mxu0
      %v1747 = vadd.f32 0.0, %v1746
      %v1748 = vpop.f32.mrf.mxu0
      %v1749 = vadd.f32 0.0, %v1748
      %1750 = vmatmul.bf16.gmra.mxu0 %v1462
      %v1751 = vpop.f32.mrf.mxu0
      %v1752 = vadd.f32 0.0, %v1751
      %v1753 = vpop.f32.mrf.mxu0
      %v1754 = vadd.f32 0.0, %v1753
      %1755 = vmatmul.bf16.gmra.mxu0 %v1465
      %v1756 = vpop.f32.mrf.mxu0
      %v1757 = vadd.f32 0.0, %v1756
      %v1758 = vpop.f32.mrf.mxu0
      %v1759 = vadd.f32 0.0, %v1758
      %1760 = vmatmul.bf16.gmra.mxu0 %v1468
      %v1761 = vpop.f32.mrf.mxu0
      %v1762 = vadd.f32 0.0, %v1761
      %v1763 = vpop.f32.mrf.mxu0
      %v1764 = vadd.f32 0.0, %v1763
      %1765 = vmatmul.bf16.gmra.mxu0 %v1471
      %v1766 = vpop.f32.mrf.mxu0
      %v1767 = vadd.f32 0.0, %v1766
      %v1768 = vpop.f32.mrf.mxu0
      %v1769 = vadd.f32 0.0, %v1768
      %1770 = vmatmul.bf16.gmra.mxu0 %v1474
      %v1771 = vpop.f32.mrf.mxu0
      %v1772 = vadd.f32 0.0, %v1771
      %v1773 = vpop.f32.mrf.mxu0
      %v1774 = vadd.f32 0.0, %v1773
      %1775 = vmatmul.bf16.gmra.mxu0 %v1477
      %v1776 = vpop.f32.mrf.mxu0
      %v1777 = vadd.f32 0.0, %v1776
      %v1778 = vpop.f32.mrf.mxu0
      %v1779 = vadd.f32 0.0, %v1778
      %1780 = vmatmul.bf16.gmra.mxu0 %v1480
      %v1781 = vpop.f32.mrf.mxu0
      %v1782 = vadd.f32 0.0, %v1781
      %v1783 = vpop.f32.mrf.mxu0
      %v1784 = vadd.f32 0.0, %v1783
      %1785 = vmatmul.bf16.gmra.mxu0 %v1483
      %v1786 = vpop.f32.mrf.mxu0
      %v1787 = vadd.f32 0.0, %v1786
      %v1788 = vpop.f32.mrf.mxu0
      %v1789 = vadd.f32 0.0, %v1788
      %1790 = vmatmul.bf16.gmra.mxu0 %v1486
      %v1791 = vpop.f32.mrf.mxu0
      %v1792 = vadd.f32 0.0, %v1791
      %v1793 = vpop.f32.mrf.mxu0
      %v1794 = vadd.f32 0.0, %v1793
      %1795 = vmatmul.bf16.gmra.mxu0 %v1489
      %v1796 = vpop.f32.mrf.mxu0
      %v1797 = vadd.f32 0.0, %v1796
      %v1798 = vpop.f32.mrf.mxu0
      %v1799 = vadd.f32 0.0, %v1798
      %1800 = vmatmul.bf16.gmra.mxu0 %v1492
      %v1801 = vpop.f32.mrf.mxu0
      %v1802 = vadd.f32 0.0, %v1801
      %v1803 = vpop.f32.mrf.mxu0
      %v1804 = vadd.f32 0.0, %v1803
      %1805 = vmatmul.bf16.gmra.mxu0 %v1495
      %v1806 = vpop.f32.mrf.mxu0
      %v1807 = vadd.f32 0.0, %v1806
      %v1808 = vpop.f32.mrf.mxu0
      %v1809 = vadd.f32 0.0, %v1808
      %1810 = vmatmul.bf16.gmra.mxu0 %v1498
      %v1811 = vpop.f32.mrf.mxu0
      %v1812 = vadd.f32 0.0, %v1811
      %v1813 = vpop.f32.mrf.mxu0
      %v1814 = vadd.f32 0.0, %v1813
      %1815 = vmatmul.bf16.gmra.mxu0 %v1501
      %v1816 = vpop.f32.mrf.mxu0
      %v1817 = vadd.f32 0.0, %v1816
      %v1818 = vpop.f32.mrf.mxu0
      %v1819 = vadd.f32 0.0, %v1818
      %1820 = vmatmul.bf16.gmra.mxu0 %v1504
      %v1821 = vpop.f32.mrf.mxu0
      %v1822 = vadd.f32 0.0, %v1821
      %v1823 = vpop.f32.mrf.mxu0
      %v1824 = vadd.f32 0.0, %v1823
      %1825 = vmatmul.bf16.gmra.mxu0 %v1507
      %v1826 = vpop.f32.mrf.mxu0
      %v1827 = vadd.f32 0.0, %v1826
      %v1828 = vpop.f32.mrf.mxu0
      %v1829 = vadd.f32 0.0, %v1828
      %1830 = vmatmul.bf16.gmra.mxu0 %v1510
      %v1831 = vpop.f32.mrf.mxu0
      %v1832 = vadd.f32 0.0, %v1831
      %v1833 = vpop.f32.mrf.mxu0
      %v1834 = vadd.f32 0.0, %v1833
      %1835 = vmatmul.bf16.gmra.mxu0 %v1513
      %v1836 = vpop.f32.mrf.mxu0
      %v1837 = vadd.f32 0.0, %v1836
      %v1838 = vpop.f32.mrf.mxu0
      %v1839 = vadd.f32 0.0, %v1838
      %1840 = vmatmul.bf16.gmra.mxu0 %v1516
      %v1841 = vpop.f32.mrf.mxu0
      %v1842 = vadd.f32 0.0, %v1841
      %v1843 = vpop.f32.mrf.mxu0
      %v1844 = vadd.f32 0.0, %v1843
      %1845 = vmatmul.bf16.gmra.mxu0 %v1519
      %v1846 = vpop.f32.mrf.mxu0
      %v1847 = vadd.f32 0.0, %v1846
      %v1848 = vpop.f32.mrf.mxu0
      %v1849 = vadd.f32 0.0, %v1848
      %1850 = vmatmul.bf16.gmra.mxu0 %v1522
      %v1851 = vpop.f32.mrf.mxu0
      %v1852 = vadd.f32 0.0, %v1851
      %v1853 = vpop.f32.mrf.mxu0
      %v1854 = vadd.f32 0.0, %v1853
      %1855 = vmatmul.bf16.gmra.mxu0 %v1525
      %v1856 = vpop.f32.mrf.mxu0
      %v1857 = vadd.f32 0.0, %v1856
      %v1858 = vpop.f32.mrf.mxu0
      %v1859 = vadd.f32 0.0, %v1858
      %1860 = vmatmul.bf16.gmra.mxu0 %v1528
      %v1861 = vpop.f32.mrf.mxu0
      %v1862 = vadd.f32 0.0, %v1861
      %v1863 = vpop.f32.mrf.mxu0
      %v1864 = vadd.f32 0.0, %v1863
      %1865 = vmatmul.bf16.gmra.mxu0 %v1531
      %v1866 = vpop.f32.mrf.mxu0
      %v1867 = vadd.f32 0.0, %v1866
      %v1868 = vpop.f32.mrf.mxu0
      %v1869 = vadd.f32 0.0, %v1868
      %1870 = vmatmul.bf16.gmra.mxu0 %v1534
      %v1871 = vpop.f32.mrf.mxu0
      %v1872 = vadd.f32 0.0, %v1871
      %v1873 = vpop.f32.mrf.mxu0
      %v1874 = vadd.f32 0.0, %v1873
      %1875 = vmatmul.bf16.gmra.mxu0 %v1537
      %v1876 = vpop.f32.mrf.mxu0
      %v1877 = vadd.f32 0.0, %v1876
      %v1878 = vpop.f32.mrf.mxu0
      %v1879 = vadd.f32 0.0, %v1878
      %1880 = vmatmul.bf16.gmra.mxu0 %v1540
      %v1881 = vpop.f32.mrf.mxu0
      %v1882 = vadd.f32 0.0, %v1881
      %v1883 = vpop.f32.mrf.mxu0
      %v1884 = vadd.f32 0.0, %v1883
      %1885 = vmatmul.bf16.gmra.mxu0 %v1543
      %v1886 = vpop.f32.mrf.mxu0
      %v1887 = vadd.f32 0.0, %v1886
      %v1888 = vpop.f32.mrf.mxu0
      %v1889 = vadd.f32 0.0, %v1888
      %1890 = vmatmul.bf16.gmra.mxu0 %v1546
      %v1891 = vpop.f32.mrf.mxu0
      %v1892 = vadd.f32 0.0, %v1891
      %v1893 = vpop.f32.mrf.mxu0
      %v1894 = vadd.f32 0.0, %v1893
      %1895 = vmatmul.bf16.gmra.mxu0 %v1549
      %v1896 = vpop.f32.mrf.mxu0
      %v1897 = vadd.f32 0.0, %v1896
      %v1898 = vpop.f32.mrf.mxu0
      %v1899 = vadd.f32 0.0, %v1898
      %1900 = vmatmul.bf16.gmra.mxu0 %v1552
      %v1901 = vpop.f32.mrf.mxu0
      %v1902 = vadd.f32 0.0, %v1901
      %v1903 = vpop.f32.mrf.mxu0
      %v1904 = vadd.f32 0.0, %v1903
      %1905 = vmatmul.bf16.gmra.mxu0 %v1555
      %v1906 = vpop.f32.mrf.mxu0
      %v1907 = vadd.f32 0.0, %v1906
      %v1908 = vpop.f32.mrf.mxu0
      %v1909 = vadd.f32 0.0, %v1908
      %1910 = vmatmul.bf16.gmra.mxu0 %v1558
      %v1911 = vpop.f32.mrf.mxu0
      %v1912 = vadd.f32 0.0, %v1911
      %v1913 = vpop.f32.mrf.mxu0
      %v1914 = vadd.f32 0.0, %v1913
      %1915 = vmatmul.bf16.gmra.mxu0 %v1561
      %v1916 = vpop.f32.mrf.mxu0
      %v1917 = vadd.f32 0.0, %v1916
      %v1918 = vpop.f32.mrf.mxu0
      %v1919 = vadd.f32 0.0, %v1918
      %1920 = vmatmul.bf16.gmra.mxu0 %v1564
      %v1921 = vpop.f32.mrf.mxu0
      %v1922 = vadd.f32 0.0, %v1921
      %v1923 = vpop.f32.mrf.mxu0
      %v1924 = vadd.f32 0.0, %v1923
      %1925 = vmatmul.bf16.gmra.mxu0 %v1567
      %v1926 = vpop.f32.mrf.mxu0
      %v1927 = vadd.f32 0.0, %v1926
      %v1928 = vpop.f32.mrf.mxu0
      %v1929 = vadd.f32 0.0, %v1928
      %1930 = vmatmul.bf16.gmra.mxu0 %v1570
      %v1931 = vpop.f32.mrf.mxu0
      %v1932 = vadd.f32 0.0, %v1931
      %v1933 = vpop.f32.mrf.mxu0
      %v1934 = vadd.f32 0.0, %v1933
      %1935 = vmatmul.bf16.gmra.mxu0 %v1573
      %v1936 = vpop.f32.mrf.mxu0
      %v1937 = vadd.f32 0.0, %v1936
      %v1938 = vpop.f32.mrf.mxu0
      %v1939 = vadd.f32 0.0, %v1938
      %1940 = vmatmul.bf16.gmra.mxu0 %v1576
      %v1941 = vpop.f32.mrf.mxu0
      %v1942 = vadd.f32 0.0, %v1941
      %v1943 = vpop.f32.mrf.mxu0
      %v1944 = vadd.f32 0.0, %v1943
      %1945 = vmatmul.bf16.gmra.mxu0 %v1579
      %v1946 = vpop.f32.mrf.mxu0
      %v1947 = vadd.f32 0.0, %v1946
      %v1948 = vpop.f32.mrf.mxu0
      %v1949 = vadd.f32 0.0, %v1948
      %1950 = vdwg.mxu0
      %1951 = vmatpush.bf16.msra.mxu0 %v385
      %1952 = vmatpush.bf16.msra.mxu0 %v384
      %1953 = vmatpush.bf16.msra.mxu0 %v383
      %1954 = vmatpush.bf16.msra.mxu0 %v382
      %1955 = vmatpush.bf16.msra.mxu0 %v381
      %1956 = vmatpush.bf16.msra.mxu0 %v380
      %1957 = vmatpush.bf16.msra.mxu0 %v379
      %1958 = vmatpush.bf16.msra.mxu0 %v378
      %1959 = vmatmul.bf16.gmra.mxu0 %v1367
      %v1960 = vpop.f32.mrf.mxu0
      %v1961 = vadd.f32 %v1592, %v1960
      %v1962 = vpop.f32.mrf.mxu0
      %v1963 = vadd.f32 %v1594, %v1962
      %1964 = vmatmul.bf16.gmra.mxu0 %v1370
      %v1965 = vpop.f32.mrf.mxu0
      %v1966 = vadd.f32 %v1597, %v1965
      %v1967 = vpop.f32.mrf.mxu0
      %v1968 = vadd.f32 %v1599, %v1967
      %1969 = vmatmul.bf16.gmra.mxu0 %v1373
      %v1970 = vpop.f32.mrf.mxu0
      %v1971 = vadd.f32 %v1602, %v1970
      %v1972 = vpop.f32.mrf.mxu0
      %v1973 = vadd.f32 %v1604, %v1972
      %1974 = vmatmul.bf16.gmra.mxu0 %v1376
      %v1975 = vpop.f32.mrf.mxu0
      %v1976 = vadd.f32 %v1607, %v1975
      %v1977 = vpop.f32.mrf.mxu0
      %v1978 = vadd.f32 %v1609, %v1977
      %1979 = vmatmul.bf16.gmra.mxu0 %v1379
      %v1980 = vpop.f32.mrf.mxu0
      %v1981 = vadd.f32 %v1612, %v1980
      %v1982 = vpop.f32.mrf.mxu0
      %v1983 = vadd.f32 %v1614, %v1982
      %1984 = vmatmul.bf16.gmra.mxu0 %v1382
      %v1985 = vpop.f32.mrf.mxu0
      %v1986 = vadd.f32 %v1617, %v1985
      %v1987 = vpop.f32.mrf.mxu0
      %v1988 = vadd.f32 %v1619, %v1987
      %1989 = vmatmul.bf16.gmra.mxu0 %v1385
      %v1990 = vpop.f32.mrf.mxu0
      %v1991 = vadd.f32 %v1622, %v1990
      %v1992 = vpop.f32.mrf.mxu0
      %v1993 = vadd.f32 %v1624, %v1992
      %1994 = vmatmul.bf16.gmra.mxu0 %v1388
      %v1995 = vpop.f32.mrf.mxu0
      %v1996 = vadd.f32 %v1627, %v1995
      %v1997 = vpop.f32.mrf.mxu0
      %v1998 = vadd.f32 %v1629, %v1997
      %1999 = vmatmul.bf16.gmra.mxu0 %v1391
      %v2000 = vpop.f32.mrf.mxu0
      %v2001 = vadd.f32 %v1632, %v2000
      %v2002 = vpop.f32.mrf.mxu0
      %v2003 = vadd.f32 %v1634, %v2002
      %2004 = vmatmul.bf16.gmra.mxu0 %v1394
      %v2005 = vpop.f32.mrf.mxu0
      %v2006 = vadd.f32 %v1637, %v2005
      %v2007 = vpop.f32.mrf.mxu0
      %v2008 = vadd.f32 %v1639, %v2007
      %2009 = vmatmul.bf16.gmra.mxu0 %v1397
      %v2010 = vpop.f32.mrf.mxu0
      %v2011 = vadd.f32 %v1642, %v2010
      %v2012 = vpop.f32.mrf.mxu0
      %v2013 = vadd.f32 %v1644, %v2012
      %2014 = vmatmul.bf16.gmra.mxu0 %v1400
      %v2015 = vpop.f32.mrf.mxu0
      %v2016 = vadd.f32 %v1647, %v2015
      %v2017 = vpop.f32.mrf.mxu0
      %v2018 = vadd.f32 %v1649, %v2017
      %2019 = vmatmul.bf16.gmra.mxu0 %v1403
      %v2020 = vpop.f32.mrf.mxu0
      %v2021 = vadd.f32 %v1652, %v2020
      %v2022 = vpop.f32.mrf.mxu0
      %v2023 = vadd.f32 %v1654, %v2022
      %2024 = vmatmul.bf16.gmra.mxu0 %v1406
      %v2025 = vpop.f32.mrf.mxu0
      %v2026 = vadd.f32 %v1657, %v2025
      %v2027 = vpop.f32.mrf.mxu0
      %v2028 = vadd.f32 %v1659, %v2027
      %2029 = vmatmul.bf16.gmra.mxu0 %v1409
      %v2030 = vpop.f32.mrf.mxu0
      %v2031 = vadd.f32 %v1662, %v2030
      %v2032 = vpop.f32.mrf.mxu0
      %v2033 = vadd.f32 %v1664, %v2032
      %2034 = vmatmul.bf16.gmra.mxu0 %v1412
      %v2035 = vpop.f32.mrf.mxu0
      %v2036 = vadd.f32 %v1667, %v2035
      %v2037 = vpop.f32.mrf.mxu0
      %v2038 = vadd.f32 %v1669, %v2037
      %2039 = vmatmul.bf16.gmra.mxu0 %v1415
      %v2040 = vpop.f32.mrf.mxu0
      %v2041 = vadd.f32 %v1672, %v2040
      %v2042 = vpop.f32.mrf.mxu0
      %v2043 = vadd.f32 %v1674, %v2042
      %2044 = vmatmul.bf16.gmra.mxu0 %v1418
      %v2045 = vpop.f32.mrf.mxu0
      %v2046 = vadd.f32 %v1677, %v2045
      %v2047 = vpop.f32.mrf.mxu0
      %v2048 = vadd.f32 %v1679, %v2047
      %2049 = vmatmul.bf16.gmra.mxu0 %v1421
      %v2050 = vpop.f32.mrf.mxu0
      %v2051 = vadd.f32 %v1682, %v2050
      %v2052 = vpop.f32.mrf.mxu0
      %v2053 = vadd.f32 %v1684, %v2052
      %2054 = vmatmul.bf16.gmra.mxu0 %v1424
      %v2055 = vpop.f32.mrf.mxu0
      %v2056 = vadd.f32 %v1687, %v2055
      %v2057 = vpop.f32.mrf.mxu0
      %v2058 = vadd.f32 %v1689, %v2057
      %2059 = vmatmul.bf16.gmra.mxu0 %v1427
      %v2060 = vpop.f32.mrf.mxu0
      %v2061 = vadd.f32 %v1692, %v2060
      %v2062 = vpop.f32.mrf.mxu0
      %v2063 = vadd.f32 %v1694, %v2062
      %2064 = vmatmul.bf16.gmra.mxu0 %v1430
      %v2065 = vpop.f32.mrf.mxu0
      %v2066 = vadd.f32 %v1697, %v2065
      %v2067 = vpop.f32.mrf.mxu0
      %v2068 = vadd.f32 %v1699, %v2067
      %2069 = vmatmul.bf16.gmra.mxu0 %v1433
      %v2070 = vpop.f32.mrf.mxu0
      %v2071 = vadd.f32 %v1702, %v2070
      %v2072 = vpop.f32.mrf.mxu0
      %v2073 = vadd.f32 %v1704, %v2072
      %2074 = vmatmul.bf16.gmra.mxu0 %v1436
      %v2075 = vpop.f32.mrf.mxu0
      %v2076 = vadd.f32 %v1707, %v2075
      %v2077 = vpop.f32.mrf.mxu0
      %v2078 = vadd.f32 %v1709, %v2077
      %2079 = vmatmul.bf16.gmra.mxu0 %v1439
      %v2080 = vpop.f32.mrf.mxu0
      %v2081 = vadd.f32 %v1712, %v2080
      %v2082 = vpop.f32.mrf.mxu0
      %v2083 = vadd.f32 %v1714, %v2082
      %2084 = vmatmul.bf16.gmra.mxu0 %v1442
      %v2085 = vpop.f32.mrf.mxu0
      %v2086 = vadd.f32 %v1717, %v2085
      %v2087 = vpop.f32.mrf.mxu0
      %v2088 = vadd.f32 %v1719, %v2087
      %2089 = vmatmul.bf16.gmra.mxu0 %v1445
      %v2090 = vpop.f32.mrf.mxu0
      %v2091 = vadd.f32 %v1722, %v2090
      %v2092 = vpop.f32.mrf.mxu0
      %v2093 = vadd.f32 %v1724, %v2092
      %2094 = vmatmul.bf16.gmra.mxu0 %v1448
      %v2095 = vpop.f32.mrf.mxu0
      %v2096 = vadd.f32 %v1727, %v2095
      %v2097 = vpop.f32.mrf.mxu0
      %v2098 = vadd.f32 %v1729, %v2097
      %2099 = vmatmul.bf16.gmra.mxu0 %v1451
      %v2100 = vpop.f32.mrf.mxu0
      %v2101 = vadd.f32 %v1732, %v2100
      %v2102 = vpop.f32.mrf.mxu0
      %v2103 = vadd.f32 %v1734, %v2102
      %2104 = vmatmul.bf16.gmra.mxu0 %v1454
      %v2105 = vpop.f32.mrf.mxu0
      %v2106 = vadd.f32 %v1737, %v2105
      %v2107 = vpop.f32.mrf.mxu0
      %v2108 = vadd.f32 %v1739, %v2107
      %2109 = vmatmul.bf16.gmra.mxu0 %v1457
      %v2110 = vpop.f32.mrf.mxu0
      %v2111 = vadd.f32 %v1742, %v2110
      %v2112 = vpop.f32.mrf.mxu0
      %v2113 = vadd.f32 %v1744, %v2112
      %2114 = vmatmul.bf16.gmra.mxu0 %v1460
      %v2115 = vpop.f32.mrf.mxu0
      %v2116 = vadd.f32 %v1747, %v2115
      %v2117 = vpop.f32.mrf.mxu0
      %v2118 = vadd.f32 %v1749, %v2117
      %2119 = vmatmul.bf16.gmra.mxu0 %v1463
      %v2120 = vpop.f32.mrf.mxu0
      %v2121 = vadd.f32 %v1752, %v2120
      %v2122 = vpop.f32.mrf.mxu0
      %v2123 = vadd.f32 %v1754, %v2122
      %2124 = vmatmul.bf16.gmra.mxu0 %v1466
      %v2125 = vpop.f32.mrf.mxu0
      %v2126 = vadd.f32 %v1757, %v2125
      %v2127 = vpop.f32.mrf.mxu0
      %v2128 = vadd.f32 %v1759, %v2127
      %2129 = vmatmul.bf16.gmra.mxu0 %v1469
      %v2130 = vpop.f32.mrf.mxu0
      %v2131 = vadd.f32 %v1762, %v2130
      %v2132 = vpop.f32.mrf.mxu0
      %v2133 = vadd.f32 %v1764, %v2132
      %2134 = vmatmul.bf16.gmra.mxu0 %v1472
      %v2135 = vpop.f32.mrf.mxu0
      %v2136 = vadd.f32 %v1767, %v2135
      %v2137 = vpop.f32.mrf.mxu0
      %v2138 = vadd.f32 %v1769, %v2137
      %2139 = vmatmul.bf16.gmra.mxu0 %v1475
      %v2140 = vpop.f32.mrf.mxu0
      %v2141 = vadd.f32 %v1772, %v2140
      %v2142 = vpop.f32.mrf.mxu0
      %v2143 = vadd.f32 %v1774, %v2142
      %2144 = vmatmul.bf16.gmra.mxu0 %v1478
      %v2145 = vpop.f32.mrf.mxu0
      %v2146 = vadd.f32 %v1777, %v2145
      %v2147 = vpop.f32.mrf.mxu0
      %v2148 = vadd.f32 %v1779, %v2147
      %2149 = vmatmul.bf16.gmra.mxu0 %v1481
      %v2150 = vpop.f32.mrf.mxu0
      %v2151 = vadd.f32 %v1782, %v2150
      %v2152 = vpop.f32.mrf.mxu0
      %v2153 = vadd.f32 %v1784, %v2152
      %2154 = vmatmul.bf16.gmra.mxu0 %v1484
      %v2155 = vpop.f32.mrf.mxu0
      %v2156 = vadd.f32 %v1787, %v2155
      %v2157 = vpop.f32.mrf.mxu0
      %v2158 = vadd.f32 %v1789, %v2157
      %2159 = vmatmul.bf16.gmra.mxu0 %v1487
      %v2160 = vpop.f32.mrf.mxu0
      %v2161 = vadd.f32 %v1792, %v2160
      %v2162 = vpop.f32.mrf.mxu0
      %v2163 = vadd.f32 %v1794, %v2162
      %2164 = vmatmul.bf16.gmra.mxu0 %v1490
      %v2165 = vpop.f32.mrf.mxu0
      %v2166 = vadd.f32 %v1797, %v2165
      %v2167 = vpop.f32.mrf.mxu0
      %v2168 = vadd.f32 %v1799, %v2167
      %2169 = vmatmul.bf16.gmra.mxu0 %v1493
      %v2170 = vpop.f32.mrf.mxu0
      %v2171 = vadd.f32 %v1802, %v2170
      %v2172 = vpop.f32.mrf.mxu0
      %v2173 = vadd.f32 %v1804, %v2172
      %2174 = vmatmul.bf16.gmra.mxu0 %v1496
      %v2175 = vpop.f32.mrf.mxu0
      %v2176 = vadd.f32 %v1807, %v2175
      %v2177 = vpop.f32.mrf.mxu0
      %v2178 = vadd.f32 %v1809, %v2177
      %2179 = vmatmul.bf16.gmra.mxu0 %v1499
      %v2180 = vpop.f32.mrf.mxu0
      %v2181 = vadd.f32 %v1812, %v2180
      %v2182 = vpop.f32.mrf.mxu0
      %v2183 = vadd.f32 %v1814, %v2182
      %2184 = vmatmul.bf16.gmra.mxu0 %v1502
      %v2185 = vpop.f32.mrf.mxu0
      %v2186 = vadd.f32 %v1817, %v2185
      %v2187 = vpop.f32.mrf.mxu0
      %v2188 = vadd.f32 %v1819, %v2187
      %2189 = vmatmul.bf16.gmra.mxu0 %v1505
      %v2190 = vpop.f32.mrf.mxu0
      %v2191 = vadd.f32 %v1822, %v2190
      %v2192 = vpop.f32.mrf.mxu0
      %v2193 = vadd.f32 %v1824, %v2192
      %2194 = vmatmul.bf16.gmra.mxu0 %v1508
      %v2195 = vpop.f32.mrf.mxu0
      %v2196 = vadd.f32 %v1827, %v2195
      %v2197 = vpop.f32.mrf.mxu0
      %v2198 = vadd.f32 %v1829, %v2197
      %2199 = vmatmul.bf16.gmra.mxu0 %v1511
      %v2200 = vpop.f32.mrf.mxu0
      %v2201 = vadd.f32 %v1832, %v2200
      %v2202 = vpop.f32.mrf.mxu0
      %v2203 = vadd.f32 %v1834, %v2202
      %2204 = vmatmul.bf16.gmra.mxu0 %v1514
      %v2205 = vpop.f32.mrf.mxu0
      %v2206 = vadd.f32 %v1837, %v2205
      %v2207 = vpop.f32.mrf.mxu0
      %v2208 = vadd.f32 %v1839, %v2207
      %2209 = vmatmul.bf16.gmra.mxu0 %v1517
      %v2210 = vpop.f32.mrf.mxu0
      %v2211 = vadd.f32 %v1842, %v2210
      %v2212 = vpop.f32.mrf.mxu0
      %v2213 = vadd.f32 %v1844, %v2212
      %2214 = vmatmul.bf16.gmra.mxu0 %v1520
      %v2215 = vpop.f32.mrf.mxu0
      %v2216 = vadd.f32 %v1847, %v2215
      %v2217 = vpop.f32.mrf.mxu0
      %v2218 = vadd.f32 %v1849, %v2217
      %2219 = vmatmul.bf16.gmra.mxu0 %v1523
      %v2220 = vpop.f32.mrf.mxu0
      %v2221 = vadd.f32 %v1852, %v2220
      %v2222 = vpop.f32.mrf.mxu0
      %v2223 = vadd.f32 %v1854, %v2222
      %2224 = vmatmul.bf16.gmra.mxu0 %v1526
      %v2225 = vpop.f32.mrf.mxu0
      %v2226 = vadd.f32 %v1857, %v2225
      %v2227 = vpop.f32.mrf.mxu0
      %v2228 = vadd.f32 %v1859, %v2227
      %2229 = vmatmul.bf16.gmra.mxu0 %v1529
      %v2230 = vpop.f32.mrf.mxu0
      %v2231 = vadd.f32 %v1862, %v2230
      %v2232 = vpop.f32.mrf.mxu0
      %v2233 = vadd.f32 %v1864, %v2232
      %2234 = vmatmul.bf16.gmra.mxu0 %v1532
      %v2235 = vpop.f32.mrf.mxu0
      %v2236 = vadd.f32 %v1867, %v2235
      %v2237 = vpop.f32.mrf.mxu0
      %v2238 = vadd.f32 %v1869, %v2237
      %2239 = vmatmul.bf16.gmra.mxu0 %v1535
      %v2240 = vpop.f32.mrf.mxu0
      %v2241 = vadd.f32 %v1872, %v2240
      %v2242 = vpop.f32.mrf.mxu0
      %v2243 = vadd.f32 %v1874, %v2242
      %2244 = vmatmul.bf16.gmra.mxu0 %v1538
      %v2245 = vpop.f32.mrf.mxu0
      %v2246 = vadd.f32 %v1877, %v2245
      %v2247 = vpop.f32.mrf.mxu0
      %v2248 = vadd.f32 %v1879, %v2247
      %2249 = vmatmul.bf16.gmra.mxu0 %v1541
      %v2250 = vpop.f32.mrf.mxu0
      %v2251 = vadd.f32 %v1882, %v2250
      %v2252 = vpop.f32.mrf.mxu0
      %v2253 = vadd.f32 %v1884, %v2252
      %2254 = vmatmul.bf16.gmra.mxu0 %v1544
      %v2255 = vpop.f32.mrf.mxu0
      %v2256 = vadd.f32 %v1887, %v2255
      %v2257 = vpop.f32.mrf.mxu0
      %v2258 = vadd.f32 %v1889, %v2257
      %2259 = vmatmul.bf16.gmra.mxu0 %v1547
      %v2260 = vpop.f32.mrf.mxu0
      %v2261 = vadd.f32 %v1892, %v2260
      %v2262 = vpop.f32.mrf.mxu0
      %v2263 = vadd.f32 %v1894, %v2262
      %2264 = vmatmul.bf16.gmra.mxu0 %v1550
      %v2265 = vpop.f32.mrf.mxu0
      %v2266 = vadd.f32 %v1897, %v2265
      %v2267 = vpop.f32.mrf.mxu0
      %v2268 = vadd.f32 %v1899, %v2267
      %2269 = vmatmul.bf16.gmra.mxu0 %v1553
      %v2270 = vpop.f32.mrf.mxu0
      %v2271 = vadd.f32 %v1902, %v2270
      %v2272 = vpop.f32.mrf.mxu0
      %v2273 = vadd.f32 %v1904, %v2272
      %2274 = vmatmul.bf16.gmra.mxu0 %v1556
      %v2275 = vpop.f32.mrf.mxu0
      %v2276 = vadd.f32 %v1907, %v2275
      %v2277 = vpop.f32.mrf.mxu0
      %v2278 = vadd.f32 %v1909, %v2277
      %2279 = vmatmul.bf16.gmra.mxu0 %v1559
      %v2280 = vpop.f32.mrf.mxu0
      %v2281 = vadd.f32 %v1912, %v2280
      %v2282 = vpop.f32.mrf.mxu0
      %v2283 = vadd.f32 %v1914, %v2282
      %2284 = vmatmul.bf16.gmra.mxu0 %v1562
      %v2285 = vpop.f32.mrf.mxu0
      %v2286 = vadd.f32 %v1917, %v2285
      %v2287 = vpop.f32.mrf.mxu0
      %v2288 = vadd.f32 %v1919, %v2287
      %2289 = vmatmul.bf16.gmra.mxu0 %v1565
      %v2290 = vpop.f32.mrf.mxu0
      %v2291 = vadd.f32 %v1922, %v2290
      %v2292 = vpop.f32.mrf.mxu0
      %v2293 = vadd.f32 %v1924, %v2292
      %2294 = vmatmul.bf16.gmra.mxu0 %v1568
      %v2295 = vpop.f32.mrf.mxu0
      %v2296 = vadd.f32 %v1927, %v2295
      %v2297 = vpop.f32.mrf.mxu0
      %v2298 = vadd.f32 %v1929, %v2297
      %2299 = vmatmul.bf16.gmra.mxu0 %v1571
      %v2300 = vpop.f32.mrf.mxu0
      %v2301 = vadd.f32 %v1932, %v2300
      %v2302 = vpop.f32.mrf.mxu0
      %v2303 = vadd.f32 %v1934, %v2302
      %2304 = vmatmul.bf16.gmra.mxu0 %v1574
      %v2305 = vpop.f32.mrf.mxu0
      %v2306 = vadd.f32 %v1937, %v2305
      %v2307 = vpop.f32.mrf.mxu0
      %v2308 = vadd.f32 %v1939, %v2307
      %2309 = vmatmul.bf16.gmra.mxu0 %v1577
      %v2310 = vpop.f32.mrf.mxu0
      %v2311 = vadd.f32 %v1942, %v2310
      %v2312 = vpop.f32.mrf.mxu0
      %v2313 = vadd.f32 %v1944, %v2312
      %2314 = vmatmul.bf16.gmra.mxu0 %v1580
      %v2315 = vpop.f32.mrf.mxu0
      %v2316 = vadd.f32 %v1947, %v2315
      %v2317 = vpop.f32.mrf.mxu0
      %v2318 = vadd.f32 %v1949, %v2317
      %2319 = vdwg.mxu0
      %2320 = vmatpush.bf16.msra.mxu0 %v393
      %2321 = vmatpush.bf16.msra.mxu0 %v392
      %2322 = vmatpush.bf16.msra.mxu0 %v391
      %2323 = vmatpush.bf16.msra.mxu0 %v390
      %2324 = vmatpush.bf16.msra.mxu0 %v389
      %2325 = vmatpush.bf16.msra.mxu0 %v388
      %2326 = vmatpush.bf16.msra.mxu0 %v387
      %2327 = vmatpush.bf16.msra.mxu0 %v386
      %2328 = vmatmul.bf16.gmra.mxu0 %v1368
      %v2329 = vpop.f32.mrf.mxu0
      %v2330 = vadd.f32 %v1961, %v2329
      %v2331 = vpop.f32.mrf.mxu0
      %v2332 = vadd.f32 %v1963, %v2331
      %2333 = vmatmul.bf16.gmra.mxu0 %v1371
      %v2334 = vpop.f32.mrf.mxu0
      %v2335 = vadd.f32 %v1966, %v2334
      %v2336 = vpop.f32.mrf.mxu0
      %v2337 = vadd.f32 %v1968, %v2336
      %2338 = vmatmul.bf16.gmra.mxu0 %v1374
      %v2339 = vpop.f32.mrf.mxu0
      %v2340 = vadd.f32 %v1971, %v2339
      %v2341 = vpop.f32.mrf.mxu0
      %v2342 = vadd.f32 %v1973, %v2341
      %2343 = vmatmul.bf16.gmra.mxu0 %v1377
      %v2344 = vpop.f32.mrf.mxu0
      %v2345 = vadd.f32 %v1976, %v2344
      %v2346 = vpop.f32.mrf.mxu0
      %v2347 = vadd.f32 %v1978, %v2346
      %2348 = vmatmul.bf16.gmra.mxu0 %v1380
      %v2349 = vpop.f32.mrf.mxu0
      %v2350 = vadd.f32 %v1981, %v2349
      %v2351 = vpop.f32.mrf.mxu0
      %v2352 = vadd.f32 %v1983, %v2351
      %2353 = vmatmul.bf16.gmra.mxu0 %v1383
      %v2354 = vpop.f32.mrf.mxu0
      %v2355 = vadd.f32 %v1986, %v2354
      %v2356 = vpop.f32.mrf.mxu0
      %v2357 = vadd.f32 %v1988, %v2356
      %2358 = vmatmul.bf16.gmra.mxu0 %v1386
      %v2359 = vpop.f32.mrf.mxu0
      %v2360 = vadd.f32 %v1991, %v2359
      %v2361 = vpop.f32.mrf.mxu0
      %v2362 = vadd.f32 %v1993, %v2361
      %2363 = vmatmul.bf16.gmra.mxu0 %v1389
      %v2364 = vpop.f32.mrf.mxu0
      %v2365 = vadd.f32 %v1996, %v2364
      %v2366 = vpop.f32.mrf.mxu0
      %v2367 = vadd.f32 %v1998, %v2366
      %2368 = vmatmul.bf16.gmra.mxu0 %v1392
      %v2369 = vpop.f32.mrf.mxu0
      %v2370 = vadd.f32 %v2001, %v2369
      %v2371 = vpop.f32.mrf.mxu0
      %v2372 = vadd.f32 %v2003, %v2371
      %2373 = vmatmul.bf16.gmra.mxu0 %v1395
      %v2374 = vpop.f32.mrf.mxu0
      %v2375 = vadd.f32 %v2006, %v2374
      %v2376 = vpop.f32.mrf.mxu0
      %v2377 = vadd.f32 %v2008, %v2376
      %2378 = vmatmul.bf16.gmra.mxu0 %v1398
      %v2379 = vpop.f32.mrf.mxu0
      %v2380 = vadd.f32 %v2011, %v2379
      %v2381 = vpop.f32.mrf.mxu0
      %v2382 = vadd.f32 %v2013, %v2381
      %2383 = vmatmul.bf16.gmra.mxu0 %v1401
      %v2384 = vpop.f32.mrf.mxu0
      %v2385 = vadd.f32 %v2016, %v2384
      %v2386 = vpop.f32.mrf.mxu0
      %v2387 = vadd.f32 %v2018, %v2386
      %2388 = vmatmul.bf16.gmra.mxu0 %v1404
      %v2389 = vpop.f32.mrf.mxu0
      %v2390 = vadd.f32 %v2021, %v2389
      %v2391 = vpop.f32.mrf.mxu0
      %v2392 = vadd.f32 %v2023, %v2391
      %2393 = vmatmul.bf16.gmra.mxu0 %v1407
      %v2394 = vpop.f32.mrf.mxu0
      %v2395 = vadd.f32 %v2026, %v2394
      %v2396 = vpop.f32.mrf.mxu0
      %v2397 = vadd.f32 %v2028, %v2396
      %2398 = vmatmul.bf16.gmra.mxu0 %v1410
      %v2399 = vpop.f32.mrf.mxu0
      %v2400 = vadd.f32 %v2031, %v2399
      %v2401 = vpop.f32.mrf.mxu0
      %v2402 = vadd.f32 %v2033, %v2401
      %2403 = vmatmul.bf16.gmra.mxu0 %v1413
      %v2404 = vpop.f32.mrf.mxu0
      %v2405 = vadd.f32 %v2036, %v2404
      %v2406 = vpop.f32.mrf.mxu0
      %v2407 = vadd.f32 %v2038, %v2406
      %2408 = vmatmul.bf16.gmra.mxu0 %v1416
      %v2409 = vpop.f32.mrf.mxu0
      %v2410 = vadd.f32 %v2041, %v2409
      %v2411 = vpop.f32.mrf.mxu0
      %v2412 = vadd.f32 %v2043, %v2411
      %2413 = vmatmul.bf16.gmra.mxu0 %v1419
      %v2414 = vpop.f32.mrf.mxu0
      %v2415 = vadd.f32 %v2046, %v2414
      %v2416 = vpop.f32.mrf.mxu0
      %v2417 = vadd.f32 %v2048, %v2416
      %2418 = vmatmul.bf16.gmra.mxu0 %v1422
      %v2419 = vpop.f32.mrf.mxu0
      %v2420 = vadd.f32 %v2051, %v2419
      %v2421 = vpop.f32.mrf.mxu0
      %v2422 = vadd.f32 %v2053, %v2421
      %2423 = vmatmul.bf16.gmra.mxu0 %v1425
      %v2424 = vpop.f32.mrf.mxu0
      %v2425 = vadd.f32 %v2056, %v2424
      %v2426 = vpop.f32.mrf.mxu0
      %v2427 = vadd.f32 %v2058, %v2426
      %2428 = vmatmul.bf16.gmra.mxu0 %v1428
      %v2429 = vpop.f32.mrf.mxu0
      %v2430 = vadd.f32 %v2061, %v2429
      %v2431 = vpop.f32.mrf.mxu0
      %v2432 = vadd.f32 %v2063, %v2431
      %2433 = vmatmul.bf16.gmra.mxu0 %v1431
      %v2434 = vpop.f32.mrf.mxu0
      %v2435 = vadd.f32 %v2066, %v2434
      %v2436 = vpop.f32.mrf.mxu0
      %v2437 = vadd.f32 %v2068, %v2436
      %2438 = vmatmul.bf16.gmra.mxu0 %v1434
      %v2439 = vpop.f32.mrf.mxu0
      %v2440 = vadd.f32 %v2071, %v2439
      %v2441 = vpop.f32.mrf.mxu0
      %v2442 = vadd.f32 %v2073, %v2441
      %2443 = vmatmul.bf16.gmra.mxu0 %v1437
      %v2444 = vpop.f32.mrf.mxu0
      %v2445 = vadd.f32 %v2076, %v2444
      %v2446 = vpop.f32.mrf.mxu0
      %v2447 = vadd.f32 %v2078, %v2446
      %2448 = vmatmul.bf16.gmra.mxu0 %v1440
      %v2449 = vpop.f32.mrf.mxu0
      %v2450 = vadd.f32 %v2081, %v2449
      %v2451 = vpop.f32.mrf.mxu0
      %v2452 = vadd.f32 %v2083, %v2451
      %2453 = vmatmul.bf16.gmra.mxu0 %v1443
      %v2454 = vpop.f32.mrf.mxu0
      %v2455 = vadd.f32 %v2086, %v2454
      %v2456 = vpop.f32.mrf.mxu0
      %v2457 = vadd.f32 %v2088, %v2456
      %2458 = vmatmul.bf16.gmra.mxu0 %v1446
      %v2459 = vpop.f32.mrf.mxu0
      %v2460 = vadd.f32 %v2091, %v2459
      %v2461 = vpop.f32.mrf.mxu0
      %v2462 = vadd.f32 %v2093, %v2461
      %2463 = vmatmul.bf16.gmra.mxu0 %v1449
      %v2464 = vpop.f32.mrf.mxu0
      %v2465 = vadd.f32 %v2096, %v2464
      %v2466 = vpop.f32.mrf.mxu0
      %v2467 = vadd.f32 %v2098, %v2466
      %2468 = vmatmul.bf16.gmra.mxu0 %v1452
      %v2469 = vpop.f32.mrf.mxu0
      %v2470 = vadd.f32 %v2101, %v2469
      %v2471 = vpop.f32.mrf.mxu0
      %v2472 = vadd.f32 %v2103, %v2471
      %2473 = vmatmul.bf16.gmra.mxu0 %v1455
      %v2474 = vpop.f32.mrf.mxu0
      %v2475 = vadd.f32 %v2106, %v2474
      %v2476 = vpop.f32.mrf.mxu0
      %v2477 = vadd.f32 %v2108, %v2476
      %2478 = vmatmul.bf16.gmra.mxu0 %v1458
      %v2479 = vpop.f32.mrf.mxu0
      %v2480 = vadd.f32 %v2111, %v2479
      %v2481 = vpop.f32.mrf.mxu0
      %v2482 = vadd.f32 %v2113, %v2481
      %2483 = vmatmul.bf16.gmra.mxu0 %v1461
      %v2484 = vpop.f32.mrf.mxu0
      %v2485 = vadd.f32 %v2116, %v2484
      %v2486 = vpop.f32.mrf.mxu0
      %v2487 = vadd.f32 %v2118, %v2486
      %2488 = vmatmul.bf16.gmra.mxu0 %v1464
      %v2489 = vpop.f32.mrf.mxu0
      %v2490 = vadd.f32 %v2121, %v2489
      %v2491 = vpop.f32.mrf.mxu0
      %v2492 = vadd.f32 %v2123, %v2491
      %2493 = vmatmul.bf16.gmra.mxu0 %v1467
      %v2494 = vpop.f32.mrf.mxu0
      %v2495 = vadd.f32 %v2126, %v2494
      %v2496 = vpop.f32.mrf.mxu0
      %v2497 = vadd.f32 %v2128, %v2496
      %2498 = vmatmul.bf16.gmra.mxu0 %v1470
      %v2499 = vpop.f32.mrf.mxu0
      %v2500 = vadd.f32 %v2131, %v2499
      %v2501 = vpop.f32.mrf.mxu0
      %v2502 = vadd.f32 %v2133, %v2501
      %2503 = vmatmul.bf16.gmra.mxu0 %v1473
      %v2504 = vpop.f32.mrf.mxu0
      %v2505 = vadd.f32 %v2136, %v2504
      %v2506 = vpop.f32.mrf.mxu0
      %v2507 = vadd.f32 %v2138, %v2506
      %2508 = vmatmul.bf16.gmra.mxu0 %v1476
      %v2509 = vpop.f32.mrf.mxu0
      %v2510 = vadd.f32 %v2141, %v2509
      %v2511 = vpop.f32.mrf.mxu0
      %v2512 = vadd.f32 %v2143, %v2511
      %2513 = vmatmul.bf16.gmra.mxu0 %v1479
      %v2514 = vpop.f32.mrf.mxu0
      %v2515 = vadd.f32 %v2146, %v2514
      %v2516 = vpop.f32.mrf.mxu0
      %v2517 = vadd.f32 %v2148, %v2516
      %2518 = vmatmul.bf16.gmra.mxu0 %v1482
      %v2519 = vpop.f32.mrf.mxu0
      %v2520 = vadd.f32 %v2151, %v2519
      %v2521 = vpop.f32.mrf.mxu0
      %v2522 = vadd.f32 %v2153, %v2521
      %2523 = vmatmul.bf16.gmra.mxu0 %v1485
      %v2524 = vpop.f32.mrf.mxu0
      %v2525 = vadd.f32 %v2156, %v2524
      %v2526 = vpop.f32.mrf.mxu0
      %v2527 = vadd.f32 %v2158, %v2526
      %2528 = vmatmul.bf16.gmra.mxu0 %v1488
      %v2529 = vpop.f32.mrf.mxu0
      %v2530 = vadd.f32 %v2161, %v2529
      %v2531 = vpop.f32.mrf.mxu0
      %v2532 = vadd.f32 %v2163, %v2531
      %2533 = vmatmul.bf16.gmra.mxu0 %v1491
      %v2534 = vpop.f32.mrf.mxu0
      %v2535 = vadd.f32 %v2166, %v2534
      %v2536 = vpop.f32.mrf.mxu0
      %v2537 = vadd.f32 %v2168, %v2536
      %2538 = vmatmul.bf16.gmra.mxu0 %v1494
      %v2539 = vpop.f32.mrf.mxu0
      %v2540 = vadd.f32 %v2171, %v2539
      %v2541 = vpop.f32.mrf.mxu0
      %v2542 = vadd.f32 %v2173, %v2541
      %2543 = vmatmul.bf16.gmra.mxu0 %v1497
      %v2544 = vpop.f32.mrf.mxu0
      %v2545 = vadd.f32 %v2176, %v2544
      %v2546 = vpop.f32.mrf.mxu0
      %v2547 = vadd.f32 %v2178, %v2546
      %2548 = vmatmul.bf16.gmra.mxu0 %v1500
      %v2549 = vpop.f32.mrf.mxu0
      %v2550 = vadd.f32 %v2181, %v2549
      %v2551 = vpop.f32.mrf.mxu0
      %v2552 = vadd.f32 %v2183, %v2551
      %2553 = vmatmul.bf16.gmra.mxu0 %v1503
      %v2554 = vpop.f32.mrf.mxu0
      %v2555 = vadd.f32 %v2186, %v2554
      %v2556 = vpop.f32.mrf.mxu0
      %v2557 = vadd.f32 %v2188, %v2556
      %2558 = vmatmul.bf16.gmra.mxu0 %v1506
      %v2559 = vpop.f32.mrf.mxu0
      %v2560 = vadd.f32 %v2191, %v2559
      %v2561 = vpop.f32.mrf.mxu0
      %v2562 = vadd.f32 %v2193, %v2561
      %2563 = vmatmul.bf16.gmra.mxu0 %v1509
      %v2564 = vpop.f32.mrf.mxu0
      %v2565 = vadd.f32 %v2196, %v2564
      %v2566 = vpop.f32.mrf.mxu0
      %v2567 = vadd.f32 %v2198, %v2566
      %2568 = vmatmul.bf16.gmra.mxu0 %v1512
      %v2569 = vpop.f32.mrf.mxu0
      %v2570 = vadd.f32 %v2201, %v2569
      %v2571 = vpop.f32.mrf.mxu0
      %v2572 = vadd.f32 %v2203, %v2571
      %2573 = vmatmul.bf16.gmra.mxu0 %v1515
      %v2574 = vpop.f32.mrf.mxu0
      %v2575 = vadd.f32 %v2206, %v2574
      %v2576 = vpop.f32.mrf.mxu0
      %v2577 = vadd.f32 %v2208, %v2576
      %2578 = vmatmul.bf16.gmra.mxu0 %v1518
      %v2579 = vpop.f32.mrf.mxu0
      %v2580 = vadd.f32 %v2211, %v2579
      %v2581 = vpop.f32.mrf.mxu0
      %v2582 = vadd.f32 %v2213, %v2581
      %2583 = vmatmul.bf16.gmra.mxu0 %v1521
      %v2584 = vpop.f32.mrf.mxu0
      %v2585 = vadd.f32 %v2216, %v2584
      %v2586 = vpop.f32.mrf.mxu0
      %v2587 = vadd.f32 %v2218, %v2586
      %2588 = vmatmul.bf16.gmra.mxu0 %v1524
      %v2589 = vpop.f32.mrf.mxu0
      %v2590 = vadd.f32 %v2221, %v2589
      %v2591 = vpop.f32.mrf.mxu0
      %v2592 = vadd.f32 %v2223, %v2591
      %2593 = vmatmul.bf16.gmra.mxu0 %v1527
      %v2594 = vpop.f32.mrf.mxu0
      %v2595 = vadd.f32 %v2226, %v2594
      %v2596 = vpop.f32.mrf.mxu0
      %v2597 = vadd.f32 %v2228, %v2596
      %2598 = vmatmul.bf16.gmra.mxu0 %v1530
      %v2599 = vpop.f32.mrf.mxu0
      %v2600 = vadd.f32 %v2231, %v2599
      %v2601 = vpop.f32.mrf.mxu0
      %v2602 = vadd.f32 %v2233, %v2601
      %2603 = vmatmul.bf16.gmra.mxu0 %v1533
      %v2604 = vpop.f32.mrf.mxu0
      %v2605 = vadd.f32 %v2236, %v2604
      %v2606 = vpop.f32.mrf.mxu0
      %v2607 = vadd.f32 %v2238, %v2606
      %2608 = vmatmul.bf16.gmra.mxu0 %v1536
      %v2609 = vpop.f32.mrf.mxu0
      %v2610 = vadd.f32 %v2241, %v2609
      %v2611 = vpop.f32.mrf.mxu0
      %v2612 = vadd.f32 %v2243, %v2611
      %2613 = vmatmul.bf16.gmra.mxu0 %v1539
      %v2614 = vpop.f32.mrf.mxu0
      %v2615 = vadd.f32 %v2246, %v2614
      %v2616 = vpop.f32.mrf.mxu0
      %v2617 = vadd.f32 %v2248, %v2616
      %2618 = vmatmul.bf16.gmra.mxu0 %v1542
      %v2619 = vpop.f32.mrf.mxu0
      %v2620 = vadd.f32 %v2251, %v2619
      %v2621 = vpop.f32.mrf.mxu0
      %v2622 = vadd.f32 %v2253, %v2621
      %2623 = vmatmul.bf16.gmra.mxu0 %v1545
      %v2624 = vpop.f32.mrf.mxu0
      %v2625 = vadd.f32 %v2256, %v2624
      %v2626 = vpop.f32.mrf.mxu0
      %v2627 = vadd.f32 %v2258, %v2626
      %2628 = vmatmul.bf16.gmra.mxu0 %v1548
      %v2629 = vpop.f32.mrf.mxu0
      %v2630 = vadd.f32 %v2261, %v2629
      %v2631 = vpop.f32.mrf.mxu0
      %v2632 = vadd.f32 %v2263, %v2631
      %2633 = vmatmul.bf16.gmra.mxu0 %v1551
      %v2634 = vpop.f32.mrf.mxu0
      %v2635 = vadd.f32 %v2266, %v2634
      %v2636 = vpop.f32.mrf.mxu0
      %v2637 = vadd.f32 %v2268, %v2636
      %2638 = vmatmul.bf16.gmra.mxu0 %v1554
      %v2639 = vpop.f32.mrf.mxu0
      %v2640 = vadd.f32 %v2271, %v2639
      %v2641 = vpop.f32.mrf.mxu0
      %v2642 = vadd.f32 %v2273, %v2641
      %2643 = vmatmul.bf16.gmra.mxu0 %v1557
      %v2644 = vpop.f32.mrf.mxu0
      %v2645 = vadd.f32 %v2276, %v2644
      %v2646 = vpop.f32.mrf.mxu0
      %v2647 = vadd.f32 %v2278, %v2646
      %2648 = vmatmul.bf16.gmra.mxu0 %v1560
      %v2649 = vpop.f32.mrf.mxu0
      %v2650 = vadd.f32 %v2281, %v2649
      %v2651 = vpop.f32.mrf.mxu0
      %v2652 = vadd.f32 %v2283, %v2651
      %2653 = vmatmul.bf16.gmra.mxu0 %v1563
      %v2654 = vpop.f32.mrf.mxu0
      %v2655 = vadd.f32 %v2286, %v2654
      %v2656 = vpop.f32.mrf.mxu0
      %v2657 = vadd.f32 %v2288, %v2656
      %2658 = vmatmul.bf16.gmra.mxu0 %v1566
      %v2659 = vpop.f32.mrf.mxu0
      %v2660 = vadd.f32 %v2291, %v2659
      %v2661 = vpop.f32.mrf.mxu0
      %v2662 = vadd.f32 %v2293, %v2661
      %2663 = vmatmul.bf16.gmra.mxu0 %v1569
      %v2664 = vpop.f32.mrf.mxu0
      %v2665 = vadd.f32 %v2296, %v2664
      %v2666 = vpop.f32.mrf.mxu0
      %v2667 = vadd.f32 %v2298, %v2666
      %2668 = vmatmul.bf16.gmra.mxu0 %v1572
      %v2669 = vpop.f32.mrf.mxu0
      %v2670 = vadd.f32 %v2301, %v2669
      %v2671 = vpop.f32.mrf.mxu0
      %v2672 = vadd.f32 %v2303, %v2671
      %2673 = vmatmul.bf16.gmra.mxu0 %v1575
      %v2674 = vpop.f32.mrf.mxu0
      %v2675 = vadd.f32 %v2306, %v2674
      %v2676 = vpop.f32.mrf.mxu0
      %v2677 = vadd.f32 %v2308, %v2676
      %2678 = vmatmul.bf16.gmra.mxu0 %v1578
      %v2679 = vpop.f32.mrf.mxu0
      %v2680 = vadd.f32 %v2311, %v2679
      %v2681 = vpop.f32.mrf.mxu0
      %v2682 = vadd.f32 %v2313, %v2681
      %2683 = vmatmul.bf16.gmra.mxu0 %v1581
      %v2684 = vpop.f32.mrf.mxu0
      %v2685 = vadd.f32 %v2316, %v2684
      %v2686 = vpop.f32.mrf.mxu0
      %v2687 = vadd.f32 %v2318, %v2686
      %2688 = vdwg.mxu0
      %v2689 = vld [vmem:[%s218] sm:$0xff]
      %v2690 = vld [vmem:[%s218 + $0x8] sm:$0xff]
      %v2691 = vld [vmem:[%s218 + $0x10] sm:$0xff]
      %v2692 = vld [vmem:[%s218 + $0x18] sm:$0xff]
      %v2693 = vld [vmem:[%s218 + $0x20] sm:$0xff]
      %v2694 = vld [vmem:[%s218 + $0x28] sm:$0xff]
      %v2695 = vld [vmem:[%s218 + $0x30] sm:$0xff]
      %v2696 = vld [vmem:[%s218 + $0x38] sm:$0xff]
      %v2697 = vld [vmem:[%s218 + $0x40] sm:$0xff]
      %v2698 = vld [vmem:[%s218 + $0x48] sm:$0xff]
      %v2699 = vld [vmem:[%s218 + $0x50] sm:$0xff]
      %v2700 = vld [vmem:[%s218 + $0x58] sm:$0xff]
      %v2701 = vld [vmem:[%s218 + $0x60] sm:$0xff]
      %v2702 = vld [vmem:[%s218 + $0x68] sm:$0xff]
      %v2703 = vld [vmem:[%s218 + $0x70] sm:$0xff]
      %v2704 = vld [vmem:[%s218 + $0x78] sm:$0xff]
      %v2705 = vld [vmem:[%s218 + $0x80] sm:$0xff]
      %v2706 = vld [vmem:[%s218 + $0x88] sm:$0xff]
      %v2707 = vld [vmem:[%s218 + $0x90] sm:$0xff]
      %v2708 = vld [vmem:[%s218 + $0x98] sm:$0xff]
      %v2709 = vld [vmem:[%s218 + $0xa0] sm:$0xff]
      %v2710 = vld [vmem:[%s218 + $0xa8] sm:$0xff]
      %v2711 = vld [vmem:[%s218 + $0xb0] sm:$0xff]
      %v2712 = vld [vmem:[%s218 + $0xb8] sm:$0xff]
      %v2713 = vld [vmem:[%s218 + $0xc0] sm:$0xff]
      %v2714 = vld [vmem:[%s218 + $0xc8] sm:$0xff]
      %v2715 = vld [vmem:[%s218 + $0xd0] sm:$0xff]
      %v2716 = vld [vmem:[%s218 + $0xd8] sm:$0xff]
      %v2717 = vld [vmem:[%s218 + $0xe0] sm:$0xff]
      %v2718 = vld [vmem:[%s218 + $0xe8] sm:$0xff]
      %v2719 = vld [vmem:[%s218 + $0xf0] sm:$0xff]
      %v2720 = vld [vmem:[%s218 + $0xf8] sm:$0xff]
      %v2721 = vld [vmem:[%s218 + $0x100] sm:$0xff]
      %v2722 = vld [vmem:[%s218 + $0x108] sm:$0xff]
      %v2723 = vld [vmem:[%s218 + $0x110] sm:$0xff]
      %v2724 = vld [vmem:[%s218 + $0x118] sm:$0xff]
      %v2725 = vld [vmem:[%s218 + $0x120] sm:$0xff]
      %v2726 = vld [vmem:[%s218 + $0x128] sm:$0xff]
      %v2727 = vld [vmem:[%s218 + $0x130] sm:$0xff]
      %v2728 = vld [vmem:[%s218 + $0x138] sm:$0xff]
      %v2729 = vld [vmem:[%s218 + $0x140] sm:$0xff]
      %v2730 = vld [vmem:[%s218 + $0x148] sm:$0xff]
      %v2731 = vld [vmem:[%s218 + $0x150] sm:$0xff]
      %v2732 = vld [vmem:[%s218 + $0x158] sm:$0xff]
      %v2733 = vld [vmem:[%s218 + $0x160] sm:$0xff]
      %v2734 = vld [vmem:[%s218 + $0x168] sm:$0xff]
      %v2735 = vld [vmem:[%s218 + $0x170] sm:$0xff]
      %v2736 = vld [vmem:[%s218 + $0x178] sm:$0xff]
      %v2737 = vld [vmem:[%s218 + $0x180] sm:$0xff]
      %v2738 = vld [vmem:[%s218 + $0x188] sm:$0xff]
      %v2739 = vld [vmem:[%s218 + $0x190] sm:$0xff]
      %v2740 = vld [vmem:[%s218 + $0x198] sm:$0xff]
      %v2741 = vld [vmem:[%s218 + $0x1a0] sm:$0xff]
      %v2742 = vld [vmem:[%s218 + $0x1a8] sm:$0xff]
      %v2743 = vld [vmem:[%s218 + $0x1b0] sm:$0xff]
      %v2744 = vld [vmem:[%s218 + $0x1b8] sm:$0xff]
      %v2745 = vld [vmem:[%s218 + $0x1c0] sm:$0xff]
      %v2746 = vld [vmem:[%s218 + $0x1c8] sm:$0xff]
      %v2747 = vld [vmem:[%s218 + $0x1d0] sm:$0xff]
      %v2748 = vld [vmem:[%s218 + $0x1d8] sm:$0xff]
      %v2749 = vld [vmem:[%s218 + $0x1e0] sm:$0xff]
      %v2750 = vld [vmem:[%s218 + $0x1e8] sm:$0xff]
      %v2751 = vld [vmem:[%s218 + $0x1f0] sm:$0xff]
      %v2752 = vld [vmem:[%s218 + $0x1f8] sm:$0xff]
      %v2753 = vld [vmem:[%s218 + $0x200] sm:$0xff]
      %v2754 = vld [vmem:[%s218 + $0x208] sm:$0xff]
      %v2755 = vld [vmem:[%s218 + $0x210] sm:$0xff]
      %v2756 = vld [vmem:[%s218 + $0x218] sm:$0xff]
      %v2757 = vld [vmem:[%s218 + $0x220] sm:$0xff]
      %v2758 = vld [vmem:[%s218 + $0x228] sm:$0xff]
      %v2759 = vld [vmem:[%s218 + $0x230] sm:$0xff]
      %v2760 = vld [vmem:[%s218 + $0x238] sm:$0xff]
      %v2761 = vld [vmem:[%s218 + $0x240] sm:$0xff]
      %v2762 = vld [vmem:[%s218 + $0x248] sm:$0xff]
      %v2763 = vld [vmem:[%s218 + $0x250] sm:$0xff]
      %v2764 = vld [vmem:[%s218 + $0x258] sm:$0xff]
      %v2765 = vld [vmem:[%s218 + $0x260] sm:$0xff]
      %v2766 = vld [vmem:[%s218 + $0x268] sm:$0xff]
      %v2767 = vld [vmem:[%s218 + $0x270] sm:$0xff]
      %v2768 = vld [vmem:[%s218 + $0x278] sm:$0xff]
      %v2769 = vld [vmem:[%s218 + $0x280] sm:$0xff]
      %v2770 = vld [vmem:[%s218 + $0x288] sm:$0xff]
      %v2771 = vld [vmem:[%s218 + $0x290] sm:$0xff]
      %v2772 = vld [vmem:[%s218 + $0x298] sm:$0xff]
      %v2773 = vld [vmem:[%s218 + $0x2a0] sm:$0xff]
      %v2774 = vld [vmem:[%s218 + $0x2a8] sm:$0xff]
      %v2775 = vld [vmem:[%s218 + $0x2b0] sm:$0xff]
      %v2776 = vld [vmem:[%s218 + $0x2b8] sm:$0xff]
      %v2777 = vld [vmem:[%s218 + $0x2c0] sm:$0xff]
      %v2778 = vld [vmem:[%s218 + $0x2c8] sm:$0xff]
      %v2779 = vld [vmem:[%s218 + $0x2d0] sm:$0xff]
      %v2780 = vld [vmem:[%s218 + $0x2d8] sm:$0xff]
      %v2781 = vld [vmem:[%s218 + $0x2e0] sm:$0xff]
      %v2782 = vld [vmem:[%s218 + $0x2e8] sm:$0xff]
      %v2783 = vld [vmem:[%s218 + $0x2f0] sm:$0xff]
      %v2784 = vld [vmem:[%s218 + $0x2f8] sm:$0xff]
      %v2785 = vld [vmem:[%s218 + $0x300] sm:$0xff]
      %v2786 = vld [vmem:[%s218 + $0x308] sm:$0xff]
      %v2787 = vld [vmem:[%s218 + $0x310] sm:$0xff]
      %v2788 = vld [vmem:[%s218 + $0x318] sm:$0xff]
      %v2789 = vld [vmem:[%s218 + $0x320] sm:$0xff]
      %v2790 = vld [vmem:[%s218 + $0x328] sm:$0xff]
      %v2791 = vld [vmem:[%s218 + $0x330] sm:$0xff]
      %v2792 = vld [vmem:[%s218 + $0x338] sm:$0xff]
      %v2793 = vld [vmem:[%s218 + $0x340] sm:$0xff]
      %v2794 = vld [vmem:[%s218 + $0x348] sm:$0xff]
      %v2795 = vld [vmem:[%s218 + $0x350] sm:$0xff]
      %v2796 = vld [vmem:[%s218 + $0x358] sm:$0xff]
      %v2797 = vld [vmem:[%s218 + $0x360] sm:$0xff]
      %v2798 = vld [vmem:[%s218 + $0x368] sm:$0xff]
      %v2799 = vld [vmem:[%s218 + $0x370] sm:$0xff]
      %v2800 = vld [vmem:[%s218 + $0x378] sm:$0xff]
      %v2801 = vld [vmem:[%s218 + $0x380] sm:$0xff]
      %v2802 = vld [vmem:[%s218 + $0x388] sm:$0xff]
      %v2803 = vld [vmem:[%s218 + $0x390] sm:$0xff]
      %v2804 = vld [vmem:[%s218 + $0x398] sm:$0xff]
      %v2805 = vld [vmem:[%s218 + $0x3a0] sm:$0xff]
      %v2806 = vld [vmem:[%s218 + $0x3a8] sm:$0xff]
      %v2807 = vld [vmem:[%s218 + $0x3b0] sm:$0xff]
      %v2808 = vld [vmem:[%s218 + $0x3b8] sm:$0xff]
      %v2809 = vld [vmem:[%s218 + $0x3c0] sm:$0xff]
      %v2810 = vld [vmem:[%s218 + $0x3c8] sm:$0xff]
      %v2811 = vld [vmem:[%s218 + $0x3d0] sm:$0xff]
      %v2812 = vld [vmem:[%s218 + $0x3d8] sm:$0xff]
      %v2813 = vld [vmem:[%s218 + $0x3e0] sm:$0xff]
      %v2814 = vld [vmem:[%s218 + $0x3e8] sm:$0xff]
      %v2815 = vld [vmem:[%s218 + $0x3f0] sm:$0xff]
      %v2816 = vld [vmem:[%s218 + $0x3f8] sm:$0xff]
      %v2817 = vld [vmem:[%s218 + $0x400] sm:$0xff]
      %v2818 = vld [vmem:[%s218 + $0x408] sm:$0xff]
      %v2819 = vld [vmem:[%s218 + $0x410] sm:$0xff]
      %v2820 = vld [vmem:[%s218 + $0x418] sm:$0xff]
      %v2821 = vld [vmem:[%s218 + $0x420] sm:$0xff]
      %v2822 = vld [vmem:[%s218 + $0x428] sm:$0xff]
      %v2823 = vld [vmem:[%s218 + $0x430] sm:$0xff]
      %v2824 = vld [vmem:[%s218 + $0x438] sm:$0xff]
      %v2825 = vld [vmem:[%s218 + $0x440] sm:$0xff]
      %v2826 = vld [vmem:[%s218 + $0x448] sm:$0xff]
      %v2827 = vld [vmem:[%s218 + $0x450] sm:$0xff]
      %v2828 = vld [vmem:[%s218 + $0x458] sm:$0xff]
      %v2829 = vld [vmem:[%s218 + $0x460] sm:$0xff]
      %v2830 = vld [vmem:[%s218 + $0x468] sm:$0xff]
      %v2831 = vld [vmem:[%s218 + $0x470] sm:$0xff]
      %v2832 = vld [vmem:[%s218 + $0x478] sm:$0xff]
      %2834 = vset.pattern.permute.xlu0 0
      %2835 = vperm.xlu0 %2834, %v2689
      %v2836 = vpop.permute.xlu0 %2835
      %2839 = vset.pattern.permute.xlu0 0
      %2840 = vperm.xlu0 %2839, %v2690
      %v2841 = vpop.permute.xlu0 %2840
      %2844 = vset.pattern.permute.xlu0 0
      %2845 = vperm.xlu0 %2844, %v2691
      %v2846 = vpop.permute.xlu0 %2845
      %2849 = vset.pattern.permute.xlu0 0
      %2850 = vperm.xlu0 %2849, %v2692
      %v2851 = vpop.permute.xlu0 %2850
      %2854 = vset.pattern.permute.xlu0 0
      %2855 = vperm.xlu0 %2854, %v2693
      %v2856 = vpop.permute.xlu0 %2855
      %2859 = vset.pattern.permute.xlu0 0
      %2860 = vperm.xlu0 %2859, %v2694
      %v2861 = vpop.permute.xlu0 %2860
      %2864 = vset.pattern.permute.xlu0 0
      %2865 = vperm.xlu0 %2864, %v2695
      %v2866 = vpop.permute.xlu0 %2865
      %2869 = vset.pattern.permute.xlu0 0
      %2870 = vperm.xlu0 %2869, %v2696
      %v2871 = vpop.permute.xlu0 %2870
      %2874 = vset.pattern.permute.xlu0 0
      %2875 = vperm.xlu0 %2874, %v2697
      %v2876 = vpop.permute.xlu0 %2875
      %2879 = vset.pattern.permute.xlu0 0
      %2880 = vperm.xlu0 %2879, %v2698
      %v2881 = vpop.permute.xlu0 %2880
      %2884 = vset.pattern.permute.xlu0 0
      %2885 = vperm.xlu0 %2884, %v2699
      %v2886 = vpop.permute.xlu0 %2885
      %2889 = vset.pattern.permute.xlu0 0
      %2890 = vperm.xlu0 %2889, %v2700
      %v2891 = vpop.permute.xlu0 %2890
      %2894 = vset.pattern.permute.xlu0 0
      %2895 = vperm.xlu0 %2894, %v2701
      %v2896 = vpop.permute.xlu0 %2895
      %2899 = vset.pattern.permute.xlu0 0
      %2900 = vperm.xlu0 %2899, %v2702
      %v2901 = vpop.permute.xlu0 %2900
      %2904 = vset.pattern.permute.xlu0 0
      %2905 = vperm.xlu0 %2904, %v2703
      %v2906 = vpop.permute.xlu0 %2905
      %2909 = vset.pattern.permute.xlu0 0
      %2910 = vperm.xlu0 %2909, %v2704
      %v2911 = vpop.permute.xlu0 %2910
      %2914 = vset.pattern.permute.xlu0 0
      %2915 = vperm.xlu0 %2914, %v2705
      %v2916 = vpop.permute.xlu0 %2915
      %2919 = vset.pattern.permute.xlu0 0
      %2920 = vperm.xlu0 %2919, %v2706
      %v2921 = vpop.permute.xlu0 %2920
      %2924 = vset.pattern.permute.xlu0 0
      %2925 = vperm.xlu0 %2924, %v2707
      %v2926 = vpop.permute.xlu0 %2925
      %2929 = vset.pattern.permute.xlu0 0
      %2930 = vperm.xlu0 %2929, %v2708
      %v2931 = vpop.permute.xlu0 %2930
      %2934 = vset.pattern.permute.xlu0 0
      %2935 = vperm.xlu0 %2934, %v2709
      %v2936 = vpop.permute.xlu0 %2935
      %2939 = vset.pattern.permute.xlu0 0
      %2940 = vperm.xlu0 %2939, %v2710
      %v2941 = vpop.permute.xlu0 %2940
      %2944 = vset.pattern.permute.xlu0 0
      %2945 = vperm.xlu0 %2944, %v2711
      %v2946 = vpop.permute.xlu0 %2945
      %2949 = vset.pattern.permute.xlu0 0
      %2950 = vperm.xlu0 %2949, %v2712
      %v2951 = vpop.permute.xlu0 %2950
      %2954 = vset.pattern.permute.xlu0 0
      %2955 = vperm.xlu0 %2954, %v2713
      %v2956 = vpop.permute.xlu0 %2955
      %2959 = vset.pattern.permute.xlu0 0
      %2960 = vperm.xlu0 %2959, %v2714
      %v2961 = vpop.permute.xlu0 %2960
      %2964 = vset.pattern.permute.xlu0 0
      %2965 = vperm.xlu0 %2964, %v2715
      %v2966 = vpop.permute.xlu0 %2965
      %2969 = vset.pattern.permute.xlu0 0
      %2970 = vperm.xlu0 %2969, %v2716
      %v2971 = vpop.permute.xlu0 %2970
      %2974 = vset.pattern.permute.xlu0 0
      %2975 = vperm.xlu0 %2974, %v2717
      %v2976 = vpop.permute.xlu0 %2975
      %2979 = vset.pattern.permute.xlu0 0
      %2980 = vperm.xlu0 %2979, %v2718
      %v2981 = vpop.permute.xlu0 %2980
      %2984 = vset.pattern.permute.xlu0 0
      %2985 = vperm.xlu0 %2984, %v2719
      %v2986 = vpop.permute.xlu0 %2985
      %2989 = vset.pattern.permute.xlu0 0
      %2990 = vperm.xlu0 %2989, %v2720
      %v2991 = vpop.permute.xlu0 %2990
      %2994 = vset.pattern.permute.xlu0 0
      %2995 = vperm.xlu0 %2994, %v2721
      %v2996 = vpop.permute.xlu0 %2995
      %2999 = vset.pattern.permute.xlu0 0
      %3000 = vperm.xlu0 %2999, %v2722
      %v3001 = vpop.permute.xlu0 %3000
      %3004 = vset.pattern.permute.xlu0 0
      %3005 = vperm.xlu0 %3004, %v2723
      %v3006 = vpop.permute.xlu0 %3005
      %3009 = vset.pattern.permute.xlu0 0
      %3010 = vperm.xlu0 %3009, %v2724
      %v3011 = vpop.permute.xlu0 %3010
      %3014 = vset.pattern.permute.xlu0 0
      %3015 = vperm.xlu0 %3014, %v2725
      %v3016 = vpop.permute.xlu0 %3015
      %3019 = vset.pattern.permute.xlu0 0
      %3020 = vperm.xlu0 %3019, %v2726
      %v3021 = vpop.permute.xlu0 %3020
      %3024 = vset.pattern.permute.xlu0 0
      %3025 = vperm.xlu0 %3024, %v2727
      %v3026 = vpop.permute.xlu0 %3025
      %3029 = vset.pattern.permute.xlu0 0
      %3030 = vperm.xlu0 %3029, %v2728
      %v3031 = vpop.permute.xlu0 %3030
      %3034 = vset.pattern.permute.xlu0 0
      %3035 = vperm.xlu0 %3034, %v2729
      %v3036 = vpop.permute.xlu0 %3035
      %3039 = vset.pattern.permute.xlu0 0
      %3040 = vperm.xlu0 %3039, %v2730
      %v3041 = vpop.permute.xlu0 %3040
      %3044 = vset.pattern.permute.xlu0 0
      %3045 = vperm.xlu0 %3044, %v2731
      %v3046 = vpop.permute.xlu0 %3045
      %3049 = vset.pattern.permute.xlu0 0
      %3050 = vperm.xlu0 %3049, %v2732
      %v3051 = vpop.permute.xlu0 %3050
      %3054 = vset.pattern.permute.xlu0 0
      %3055 = vperm.xlu0 %3054, %v2733
      %v3056 = vpop.permute.xlu0 %3055
      %3059 = vset.pattern.permute.xlu0 0
      %3060 = vperm.xlu0 %3059, %v2734
      %v3061 = vpop.permute.xlu0 %3060
      %3064 = vset.pattern.permute.xlu0 0
      %3065 = vperm.xlu0 %3064, %v2735
      %v3066 = vpop.permute.xlu0 %3065
      %3069 = vset.pattern.permute.xlu0 0
      %3070 = vperm.xlu0 %3069, %v2736
      %v3071 = vpop.permute.xlu0 %3070
      %3074 = vset.pattern.permute.xlu0 0
      %3075 = vperm.xlu0 %3074, %v2737
      %v3076 = vpop.permute.xlu0 %3075
      %3079 = vset.pattern.permute.xlu0 0
      %3080 = vperm.xlu0 %3079, %v2738
      %v3081 = vpop.permute.xlu0 %3080
      %3084 = vset.pattern.permute.xlu0 0
      %3085 = vperm.xlu0 %3084, %v2739
      %v3086 = vpop.permute.xlu0 %3085
      %3089 = vset.pattern.permute.xlu0 0
      %3090 = vperm.xlu0 %3089, %v2740
      %v3091 = vpop.permute.xlu0 %3090
      %3094 = vset.pattern.permute.xlu0 0
      %3095 = vperm.xlu0 %3094, %v2741
      %v3096 = vpop.permute.xlu0 %3095
      %3099 = vset.pattern.permute.xlu0 0
      %3100 = vperm.xlu0 %3099, %v2742
      %v3101 = vpop.permute.xlu0 %3100
      %3104 = vset.pattern.permute.xlu0 0
      %3105 = vperm.xlu0 %3104, %v2743
      %v3106 = vpop.permute.xlu0 %3105
      %3109 = vset.pattern.permute.xlu0 0
      %3110 = vperm.xlu0 %3109, %v2744
      %v3111 = vpop.permute.xlu0 %3110
      %3114 = vset.pattern.permute.xlu0 0
      %3115 = vperm.xlu0 %3114, %v2745
      %v3116 = vpop.permute.xlu0 %3115
      %3119 = vset.pattern.permute.xlu0 0
      %3120 = vperm.xlu0 %3119, %v2746
      %v3121 = vpop.permute.xlu0 %3120
      %3124 = vset.pattern.permute.xlu0 0
      %3125 = vperm.xlu0 %3124, %v2747
      %v3126 = vpop.permute.xlu0 %3125
      %3129 = vset.pattern.permute.xlu0 0
      %3130 = vperm.xlu0 %3129, %v2748
      %v3131 = vpop.permute.xlu0 %3130
      %3134 = vset.pattern.permute.xlu0 0
      %3135 = vperm.xlu0 %3134, %v2749
      %v3136 = vpop.permute.xlu0 %3135
      %3139 = vset.pattern.permute.xlu0 0
      %3140 = vperm.xlu0 %3139, %v2750
      %v3141 = vpop.permute.xlu0 %3140
      %3144 = vset.pattern.permute.xlu0 0
      %3145 = vperm.xlu0 %3144, %v2751
      %v3146 = vpop.permute.xlu0 %3145
      %3149 = vset.pattern.permute.xlu0 0
      %3150 = vperm.xlu0 %3149, %v2752
      %v3151 = vpop.permute.xlu0 %3150
      %3154 = vset.pattern.permute.xlu0 0
      %3155 = vperm.xlu0 %3154, %v2753
      %v3156 = vpop.permute.xlu0 %3155
      %3159 = vset.pattern.permute.xlu0 0
      %3160 = vperm.xlu0 %3159, %v2754
      %v3161 = vpop.permute.xlu0 %3160
      %3164 = vset.pattern.permute.xlu0 0
      %3165 = vperm.xlu0 %3164, %v2755
      %v3166 = vpop.permute.xlu0 %3165
      %3169 = vset.pattern.permute.xlu0 0
      %3170 = vperm.xlu0 %3169, %v2756
      %v3171 = vpop.permute.xlu0 %3170
      %3174 = vset.pattern.permute.xlu0 0
      %3175 = vperm.xlu0 %3174, %v2757
      %v3176 = vpop.permute.xlu0 %3175
      %3179 = vset.pattern.permute.xlu0 0
      %3180 = vperm.xlu0 %3179, %v2758
      %v3181 = vpop.permute.xlu0 %3180
      %3184 = vset.pattern.permute.xlu0 0
      %3185 = vperm.xlu0 %3184, %v2759
      %v3186 = vpop.permute.xlu0 %3185
      %3189 = vset.pattern.permute.xlu0 0
      %3190 = vperm.xlu0 %3189, %v2760
      %v3191 = vpop.permute.xlu0 %3190
      %3194 = vset.pattern.permute.xlu0 0
      %3195 = vperm.xlu0 %3194, %v2761
      %v3196 = vpop.permute.xlu0 %3195
      %3199 = vset.pattern.permute.xlu0 0
      %3200 = vperm.xlu0 %3199, %v2762
      %v3201 = vpop.permute.xlu0 %3200
      %3204 = vset.pattern.permute.xlu0 0
      %3205 = vperm.xlu0 %3204, %v2763
      %v3206 = vpop.permute.xlu0 %3205
      %3209 = vset.pattern.permute.xlu0 0
      %3210 = vperm.xlu0 %3209, %v2764
      %v3211 = vpop.permute.xlu0 %3210
      %3214 = vset.pattern.permute.xlu0 0
      %3215 = vperm.xlu0 %3214, %v2765
      %v3216 = vpop.permute.xlu0 %3215
      %3219 = vset.pattern.permute.xlu0 0
      %3220 = vperm.xlu0 %3219, %v2766
      %v3221 = vpop.permute.xlu0 %3220
      %3224 = vset.pattern.permute.xlu0 0
      %3225 = vperm.xlu0 %3224, %v2767
      %v3226 = vpop.permute.xlu0 %3225
      %3229 = vset.pattern.permute.xlu0 0
      %3230 = vperm.xlu0 %3229, %v2768
      %v3231 = vpop.permute.xlu0 %3230
      %3234 = vset.pattern.permute.xlu0 0
      %3235 = vperm.xlu0 %3234, %v2769
      %v3236 = vpop.permute.xlu0 %3235
      %3239 = vset.pattern.permute.xlu0 0
      %3240 = vperm.xlu0 %3239, %v2770
      %v3241 = vpop.permute.xlu0 %3240
      %3244 = vset.pattern.permute.xlu0 0
      %3245 = vperm.xlu0 %3244, %v2771
      %v3246 = vpop.permute.xlu0 %3245
      %3249 = vset.pattern.permute.xlu0 0
      %3250 = vperm.xlu0 %3249, %v2772
      %v3251 = vpop.permute.xlu0 %3250
      %3254 = vset.pattern.permute.xlu0 0
      %3255 = vperm.xlu0 %3254, %v2773
      %v3256 = vpop.permute.xlu0 %3255
      %3259 = vset.pattern.permute.xlu0 0
      %3260 = vperm.xlu0 %3259, %v2774
      %v3261 = vpop.permute.xlu0 %3260
      %3264 = vset.pattern.permute.xlu0 0
      %3265 = vperm.xlu0 %3264, %v2775
      %v3266 = vpop.permute.xlu0 %3265
      %3269 = vset.pattern.permute.xlu0 0
      %3270 = vperm.xlu0 %3269, %v2776
      %v3271 = vpop.permute.xlu0 %3270
      %3274 = vset.pattern.permute.xlu0 0
      %3275 = vperm.xlu0 %3274, %v2777
      %v3276 = vpop.permute.xlu0 %3275
      %3279 = vset.pattern.permute.xlu0 0
      %3280 = vperm.xlu0 %3279, %v2778
      %v3281 = vpop.permute.xlu0 %3280
      %3284 = vset.pattern.permute.xlu0 0
      %3285 = vperm.xlu0 %3284, %v2779
      %v3286 = vpop.permute.xlu0 %3285
      %3289 = vset.pattern.permute.xlu0 0
      %3290 = vperm.xlu0 %3289, %v2780
      %v3291 = vpop.permute.xlu0 %3290
      %3294 = vset.pattern.permute.xlu0 0
      %3295 = vperm.xlu0 %3294, %v2781
      %v3296 = vpop.permute.xlu0 %3295
      %3299 = vset.pattern.permute.xlu0 0
      %3300 = vperm.xlu0 %3299, %v2782
      %v3301 = vpop.permute.xlu0 %3300
      %3304 = vset.pattern.permute.xlu0 0
      %3305 = vperm.xlu0 %3304, %v2783
      %v3306 = vpop.permute.xlu0 %3305
      %3309 = vset.pattern.permute.xlu0 0
      %3310 = vperm.xlu0 %3309, %v2784
      %v3311 = vpop.permute.xlu0 %3310
      %3314 = vset.pattern.permute.xlu0 0
      %3315 = vperm.xlu0 %3314, %v2785
      %v3316 = vpop.permute.xlu0 %3315
      %3319 = vset.pattern.permute.xlu0 0
      %3320 = vperm.xlu0 %3319, %v2786
      %v3321 = vpop.permute.xlu0 %3320
      %3324 = vset.pattern.permute.xlu0 0
      %3325 = vperm.xlu0 %3324, %v2787
      %v3326 = vpop.permute.xlu0 %3325
      %3329 = vset.pattern.permute.xlu0 0
      %3330 = vperm.xlu0 %3329, %v2788
      %v3331 = vpop.permute.xlu0 %3330
      %3334 = vset.pattern.permute.xlu0 0
      %3335 = vperm.xlu0 %3334, %v2789
      %v3336 = vpop.permute.xlu0 %3335
      %3339 = vset.pattern.permute.xlu0 0
      %3340 = vperm.xlu0 %3339, %v2790
      %v3341 = vpop.permute.xlu0 %3340
      %3344 = vset.pattern.permute.xlu0 0
      %3345 = vperm.xlu0 %3344, %v2791
      %v3346 = vpop.permute.xlu0 %3345
      %3349 = vset.pattern.permute.xlu0 0
      %3350 = vperm.xlu0 %3349, %v2792
      %v3351 = vpop.permute.xlu0 %3350
      %3354 = vset.pattern.permute.xlu0 0
      %3355 = vperm.xlu0 %3354, %v2793
      %v3356 = vpop.permute.xlu0 %3355
      %3359 = vset.pattern.permute.xlu0 0
      %3360 = vperm.xlu0 %3359, %v2794
      %v3361 = vpop.permute.xlu0 %3360
      %3364 = vset.pattern.permute.xlu0 0
      %3365 = vperm.xlu0 %3364, %v2795
      %v3366 = vpop.permute.xlu0 %3365
      %3369 = vset.pattern.permute.xlu0 0
      %3370 = vperm.xlu0 %3369, %v2796
      %v3371 = vpop.permute.xlu0 %3370
      %3374 = vset.pattern.permute.xlu0 0
      %3375 = vperm.xlu0 %3374, %v2797
      %v3376 = vpop.permute.xlu0 %3375
      %3379 = vset.pattern.permute.xlu0 0
      %3380 = vperm.xlu0 %3379, %v2798
      %v3381 = vpop.permute.xlu0 %3380
      %3384 = vset.pattern.permute.xlu0 0
      %3385 = vperm.xlu0 %3384, %v2799
      %v3386 = vpop.permute.xlu0 %3385
      %3389 = vset.pattern.permute.xlu0 0
      %3390 = vperm.xlu0 %3389, %v2800
      %v3391 = vpop.permute.xlu0 %3390
      %3394 = vset.pattern.permute.xlu0 0
      %3395 = vperm.xlu0 %3394, %v2801
      %v3396 = vpop.permute.xlu0 %3395
      %3399 = vset.pattern.permute.xlu0 0
      %3400 = vperm.xlu0 %3399, %v2802
      %v3401 = vpop.permute.xlu0 %3400
      %3404 = vset.pattern.permute.xlu0 0
      %3405 = vperm.xlu0 %3404, %v2803
      %v3406 = vpop.permute.xlu0 %3405
      %3409 = vset.pattern.permute.xlu0 0
      %3410 = vperm.xlu0 %3409, %v2804
      %v3411 = vpop.permute.xlu0 %3410
      %3414 = vset.pattern.permute.xlu0 0
      %3415 = vperm.xlu0 %3414, %v2805
      %v3416 = vpop.permute.xlu0 %3415
      %3419 = vset.pattern.permute.xlu0 0
      %3420 = vperm.xlu0 %3419, %v2806
      %v3421 = vpop.permute.xlu0 %3420
      %3424 = vset.pattern.permute.xlu0 0
      %3425 = vperm.xlu0 %3424, %v2807
      %v3426 = vpop.permute.xlu0 %3425
      %3429 = vset.pattern.permute.xlu0 0
      %3430 = vperm.xlu0 %3429, %v2808
      %v3431 = vpop.permute.xlu0 %3430
      %3434 = vset.pattern.permute.xlu0 0
      %3435 = vperm.xlu0 %3434, %v2809
      %v3436 = vpop.permute.xlu0 %3435
      %3439 = vset.pattern.permute.xlu0 0
      %3440 = vperm.xlu0 %3439, %v2810
      %v3441 = vpop.permute.xlu0 %3440
      %3444 = vset.pattern.permute.xlu0 0
      %3445 = vperm.xlu0 %3444, %v2811
      %v3446 = vpop.permute.xlu0 %3445
      %3449 = vset.pattern.permute.xlu0 0
      %3450 = vperm.xlu0 %3449, %v2812
      %v3451 = vpop.permute.xlu0 %3450
      %3454 = vset.pattern.permute.xlu0 0
      %3455 = vperm.xlu0 %3454, %v2813
      %v3456 = vpop.permute.xlu0 %3455
      %3459 = vset.pattern.permute.xlu0 0
      %3460 = vperm.xlu0 %3459, %v2814
      %v3461 = vpop.permute.xlu0 %3460
      %3464 = vset.pattern.permute.xlu0 0
      %3465 = vperm.xlu0 %3464, %v2815
      %v3466 = vpop.permute.xlu0 %3465
      %3469 = vset.pattern.permute.xlu0 0
      %3470 = vperm.xlu0 %3469, %v2816
      %v3471 = vpop.permute.xlu0 %3470
      %3474 = vset.pattern.permute.xlu0 0
      %3475 = vperm.xlu0 %3474, %v2817
      %v3476 = vpop.permute.xlu0 %3475
      %3479 = vset.pattern.permute.xlu0 0
      %3480 = vperm.xlu0 %3479, %v2818
      %v3481 = vpop.permute.xlu0 %3480
      %3484 = vset.pattern.permute.xlu0 0
      %3485 = vperm.xlu0 %3484, %v2819
      %v3486 = vpop.permute.xlu0 %3485
      %3489 = vset.pattern.permute.xlu0 0
      %3490 = vperm.xlu0 %3489, %v2820
      %v3491 = vpop.permute.xlu0 %3490
      %3494 = vset.pattern.permute.xlu0 0
      %3495 = vperm.xlu0 %3494, %v2821
      %v3496 = vpop.permute.xlu0 %3495
      %3499 = vset.pattern.permute.xlu0 0
      %3500 = vperm.xlu0 %3499, %v2822
      %v3501 = vpop.permute.xlu0 %3500
      %3504 = vset.pattern.permute.xlu0 0
      %3505 = vperm.xlu0 %3504, %v2823
      %v3506 = vpop.permute.xlu0 %3505
      %3509 = vset.pattern.permute.xlu0 0
      %3510 = vperm.xlu0 %3509, %v2824
      %v3511 = vpop.permute.xlu0 %3510
      %3514 = vset.pattern.permute.xlu0 0
      %3515 = vperm.xlu0 %3514, %v2825
      %v3516 = vpop.permute.xlu0 %3515
      %3519 = vset.pattern.permute.xlu0 0
      %3520 = vperm.xlu0 %3519, %v2826
      %v3521 = vpop.permute.xlu0 %3520
      %3524 = vset.pattern.permute.xlu0 0
      %3525 = vperm.xlu0 %3524, %v2827
      %v3526 = vpop.permute.xlu0 %3525
      %3529 = vset.pattern.permute.xlu0 0
      %3530 = vperm.xlu0 %3529, %v2828
      %v3531 = vpop.permute.xlu0 %3530
      %3534 = vset.pattern.permute.xlu0 0
      %3535 = vperm.xlu0 %3534, %v2829
      %v3536 = vpop.permute.xlu0 %3535
      %3539 = vset.pattern.permute.xlu0 0
      %3540 = vperm.xlu0 %3539, %v2830
      %v3541 = vpop.permute.xlu0 %3540
      %3544 = vset.pattern.permute.xlu0 0
      %3545 = vperm.xlu0 %3544, %v2831
      %v3546 = vpop.permute.xlu0 %3545
      %3549 = vset.pattern.permute.xlu0 0
      %3550 = vperm.xlu0 %3549, %v2832
      %v3551 = vpop.permute.xlu0 %3550
      %v3553 = vmul.f32 %v2330, %v2836
      %v3554 = vmul.f32 %v2332, %v2841
      %v3555 = vmul.f32 %v2335, %v2846
      %v3556 = vmul.f32 %v2337, %v2851
      %v3557 = vmul.f32 %v2340, %v2856
      %v3558 = vmul.f32 %v2342, %v2861
      %v3559 = vmul.f32 %v2345, %v2866
      %v3560 = vmul.f32 %v2347, %v2871
      %v3561 = vmul.f32 %v2350, %v2876
      %v3562 = vmul.f32 %v2352, %v2881
      %v3563 = vmul.f32 %v2355, %v2886
      %v3564 = vmul.f32 %v2357, %v2891
      %v3565 = vmul.f32 %v2360, %v2896
      %v3566 = vmul.f32 %v2362, %v2901
      %v3567 = vmul.f32 %v2365, %v2906
      %v3568 = vmul.f32 %v2367, %v2911
      %v3569 = vmul.f32 %v2370, %v2916
      %v3570 = vmul.f32 %v2372, %v2921
      %v3571 = vmul.f32 %v2375, %v2926
      %v3572 = vmul.f32 %v2377, %v2931
      %v3573 = vmul.f32 %v2380, %v2936
      %v3574 = vmul.f32 %v2382, %v2941
      %v3575 = vmul.f32 %v2385, %v2946
      %v3576 = vmul.f32 %v2387, %v2951
      %v3577 = vmul.f32 %v2390, %v2956
      %v3578 = vmul.f32 %v2392, %v2961
      %v3579 = vmul.f32 %v2395, %v2966
      %v3580 = vmul.f32 %v2397, %v2971
      %v3581 = vmul.f32 %v2400, %v2976
      %v3582 = vmul.f32 %v2402, %v2981
      %v3583 = vmul.f32 %v2405, %v2986
      %v3584 = vmul.f32 %v2407, %v2991
      %v3585 = vmul.f32 %v2410, %v2996
      %v3586 = vmul.f32 %v2412, %v3001
      %v3587 = vmul.f32 %v2415, %v3006
      %v3588 = vmul.f32 %v2417, %v3011
      %v3589 = vmul.f32 %v2420, %v3016
      %v3590 = vmul.f32 %v2422, %v3021
      %v3591 = vmul.f32 %v2425, %v3026
      %v3592 = vmul.f32 %v2427, %v3031
      %v3593 = vmul.f32 %v2430, %v3036
      %v3594 = vmul.f32 %v2432, %v3041
      %v3595 = vmul.f32 %v2435, %v3046
      %v3596 = vmul.f32 %v2437, %v3051
      %v3597 = vmul.f32 %v2440, %v3056
      %v3598 = vmul.f32 %v2442, %v3061
      %v3599 = vmul.f32 %v2445, %v3066
      %v3600 = vmul.f32 %v2447, %v3071
      %v3601 = vmul.f32 %v2450, %v3076
      %v3602 = vmul.f32 %v2452, %v3081
      %v3603 = vmul.f32 %v2455, %v3086
      %v3604 = vmul.f32 %v2457, %v3091
      %v3605 = vmul.f32 %v2460, %v3096
      %v3606 = vmul.f32 %v2462, %v3101
      %v3607 = vmul.f32 %v2465, %v3106
      %v3608 = vmul.f32 %v2467, %v3111
      %v3609 = vmul.f32 %v2470, %v3116
      %v3610 = vmul.f32 %v2472, %v3121
      %v3611 = vmul.f32 %v2475, %v3126
      %v3612 = vmul.f32 %v2477, %v3131
      %v3613 = vmul.f32 %v2480, %v3136
      %v3614 = vmul.f32 %v2482, %v3141
      %v3615 = vmul.f32 %v2485, %v3146
      %v3616 = vmul.f32 %v2487, %v3151
      %v3617 = vmul.f32 %v2490, %v3156
      %v3618 = vmul.f32 %v2492, %v3161
      %v3619 = vmul.f32 %v2495, %v3166
      %v3620 = vmul.f32 %v2497, %v3171
      %v3621 = vmul.f32 %v2500, %v3176
      %v3622 = vmul.f32 %v2502, %v3181
      %v3623 = vmul.f32 %v2505, %v3186
      %v3624 = vmul.f32 %v2507, %v3191
      %v3625 = vmul.f32 %v2510, %v3196
      %v3626 = vmul.f32 %v2512, %v3201
      %v3627 = vmul.f32 %v2515, %v3206
      %v3628 = vmul.f32 %v2517, %v3211
      %v3629 = vmul.f32 %v2520, %v3216
      %v3630 = vmul.f32 %v2522, %v3221
      %v3631 = vmul.f32 %v2525, %v3226
      %v3632 = vmul.f32 %v2527, %v3231
      %v3633 = vmul.f32 %v2530, %v3236
      %v3634 = vmul.f32 %v2532, %v3241
      %v3635 = vmul.f32 %v2535, %v3246
      %v3636 = vmul.f32 %v2537, %v3251
      %v3637 = vmul.f32 %v2540, %v3256
      %v3638 = vmul.f32 %v2542, %v3261
      %v3639 = vmul.f32 %v2545, %v3266
      %v3640 = vmul.f32 %v2547, %v3271
      %v3641 = vmul.f32 %v2550, %v3276
      %v3642 = vmul.f32 %v2552, %v3281
      %v3643 = vmul.f32 %v2555, %v3286
      %v3644 = vmul.f32 %v2557, %v3291
      %v3645 = vmul.f32 %v2560, %v3296
      %v3646 = vmul.f32 %v2562, %v3301
      %v3647 = vmul.f32 %v2565, %v3306
      %v3648 = vmul.f32 %v2567, %v3311
      %v3649 = vmul.f32 %v2570, %v3316
      %v3650 = vmul.f32 %v2572, %v3321
      %v3651 = vmul.f32 %v2575, %v3326
      %v3652 = vmul.f32 %v2577, %v3331
      %v3653 = vmul.f32 %v2580, %v3336
      %v3654 = vmul.f32 %v2582, %v3341
      %v3655 = vmul.f32 %v2585, %v3346
      %v3656 = vmul.f32 %v2587, %v3351
      %v3657 = vmul.f32 %v2590, %v3356
      %v3658 = vmul.f32 %v2592, %v3361
      %v3659 = vmul.f32 %v2595, %v3366
      %v3660 = vmul.f32 %v2597, %v3371
      %v3661 = vmul.f32 %v2600, %v3376
      %v3662 = vmul.f32 %v2602, %v3381
      %v3663 = vmul.f32 %v2605, %v3386
      %v3664 = vmul.f32 %v2607, %v3391
      %v3665 = vmul.f32 %v2610, %v3396
      %v3666 = vmul.f32 %v2612, %v3401
      %v3667 = vmul.f32 %v2615, %v3406
      %v3668 = vmul.f32 %v2617, %v3411
      %v3669 = vmul.f32 %v2620, %v3416
      %v3670 = vmul.f32 %v2622, %v3421
      %v3671 = vmul.f32 %v2625, %v3426
      %v3672 = vmul.f32 %v2627, %v3431
      %v3673 = vmul.f32 %v2630, %v3436
      %v3674 = vmul.f32 %v2632, %v3441
      %v3675 = vmul.f32 %v2635, %v3446
      %v3676 = vmul.f32 %v2637, %v3451
      %v3677 = vmul.f32 %v2640, %v3456
      %v3678 = vmul.f32 %v2642, %v3461
      %v3679 = vmul.f32 %v2645, %v3466
      %v3680 = vmul.f32 %v2647, %v3471
      %v3681 = vmul.f32 %v2650, %v3476
      %v3682 = vmul.f32 %v2652, %v3481
      %v3683 = vmul.f32 %v2655, %v3486
      %v3684 = vmul.f32 %v2657, %v3491
      %v3685 = vmul.f32 %v2660, %v3496
      %v3686 = vmul.f32 %v2662, %v3501
      %v3687 = vmul.f32 %v2665, %v3506
      %v3688 = vmul.f32 %v2667, %v3511
      %v3689 = vmul.f32 %v2670, %v3516
      %v3690 = vmul.f32 %v2672, %v3521
      %v3691 = vmul.f32 %v2675, %v3526
      %v3692 = vmul.f32 %v2677, %v3531
      %v3693 = vmul.f32 %v2680, %v3536
      %v3694 = vmul.f32 %v2682, %v3541
      %v3695 = vmul.f32 %v2685, %v3546
      %v3696 = vmul.f32 %v2687, %v3551
      %vm3697 = vcmask 400384
      %3698 = vst.msk [vmem:[%s224] sm:$0xff] %vm3697, %v3553
      %3699 = vst.msk [vmem:[%s224 + $0x8] sm:$0xff] %vm3697, %v3554
      %3700 = vst.msk [vmem:[%s224 + $0x10] sm:$0xff] %vm3697, %v3555
      %3701 = vst.msk [vmem:[%s224 + $0x18] sm:$0xff] %vm3697, %v3556
      %3702 = vst.msk [vmem:[%s224 + $0x20] sm:$0xff] %vm3697, %v3557
      %3703 = vst.msk [vmem:[%s224 + $0x28] sm:$0xff] %vm3697, %v3558
      %3704 = vst.msk [vmem:[%s224 + $0x30] sm:$0xff] %vm3697, %v3559
      %3705 = vst.msk [vmem:[%s224 + $0x38] sm:$0xff] %vm3697, %v3560
      %3706 = vst.msk [vmem:[%s224 + $0x40] sm:$0xff] %vm3697, %v3561
      %3707 = vst.msk [vmem:[%s224 + $0x48] sm:$0xff] %vm3697, %v3562
      %3708 = vst.msk [vmem:[%s224 + $0x50] sm:$0xff] %vm3697, %v3563
      %3709 = vst.msk [vmem:[%s224 + $0x58] sm:$0xff] %vm3697, %v3564
      %3710 = vst.msk [vmem:[%s224 + $0x60] sm:$0xff] %vm3697, %v3565
      %3711 = vst.msk [vmem:[%s224 + $0x68] sm:$0xff] %vm3697, %v3566
      %3712 = vst.msk [vmem:[%s224 + $0x70] sm:$0xff] %vm3697, %v3567
      %3713 = vst.msk [vmem:[%s224 + $0x78] sm:$0xff] %vm3697, %v3568
      %3714 = vst.msk [vmem:[%s224 + $0x80] sm:$0xff] %vm3697, %v3569
      %3715 = vst.msk [vmem:[%s224 + $0x88] sm:$0xff] %vm3697, %v3570
      %3716 = vst.msk [vmem:[%s224 + $0x90] sm:$0xff] %vm3697, %v3571
      %3717 = vst.msk [vmem:[%s224 + $0x98] sm:$0xff] %vm3697, %v3572
      %3718 = vst.msk [vmem:[%s224 + $0xa0] sm:$0xff] %vm3697, %v3573
      %3719 = vst.msk [vmem:[%s224 + $0xa8] sm:$0xff] %vm3697, %v3574
      %3720 = vst.msk [vmem:[%s224 + $0xb0] sm:$0xff] %vm3697, %v3575
      %3721 = vst.msk [vmem:[%s224 + $0xb8] sm:$0xff] %vm3697, %v3576
      %3722 = vst.msk [vmem:[%s224 + $0xc0] sm:$0xff] %vm3697, %v3577
      %3723 = vst.msk [vmem:[%s224 + $0xc8] sm:$0xff] %vm3697, %v3578
      %3724 = vst.msk [vmem:[%s224 + $0xd0] sm:$0xff] %vm3697, %v3579
      %3725 = vst.msk [vmem:[%s224 + $0xd8] sm:$0xff] %vm3697, %v3580
      %3726 = vst.msk [vmem:[%s224 + $0xe0] sm:$0xff] %vm3697, %v3581
      %3727 = vst.msk [vmem:[%s224 + $0xe8] sm:$0xff] %vm3697, %v3582
      %3728 = vst.msk [vmem:[%s224 + $0xf0] sm:$0xff] %vm3697, %v3583
      %3729 = vst.msk [vmem:[%s224 + $0xf8] sm:$0xff] %vm3697, %v3584
      %3730 = vst.msk [vmem:[%s224 + $0x100] sm:$0xff] %vm3697, %v3585
      %3731 = vst.msk [vmem:[%s224 + $0x108] sm:$0xff] %vm3697, %v3586
      %3732 = vst.msk [vmem:[%s224 + $0x110] sm:$0xff] %vm3697, %v3587
      %3733 = vst.msk [vmem:[%s224 + $0x118] sm:$0xff] %vm3697, %v3588
      %3734 = vst.msk [vmem:[%s224 + $0x120] sm:$0xff] %vm3697, %v3589
      %3735 = vst.msk [vmem:[%s224 + $0x128] sm:$0xff] %vm3697, %v3590
      %3736 = vst.msk [vmem:[%s224 + $0x130] sm:$0xff] %vm3697, %v3591
      %3737 = vst.msk [vmem:[%s224 + $0x138] sm:$0xff] %vm3697, %v3592
      %3738 = vst.msk [vmem:[%s224 + $0x140] sm:$0xff] %vm3697, %v3593
      %3739 = vst.msk [vmem:[%s224 + $0x148] sm:$0xff] %vm3697, %v3594
      %3740 = vst.msk [vmem:[%s224 + $0x150] sm:$0xff] %vm3697, %v3595
      %3741 = vst.msk [vmem:[%s224 + $0x158] sm:$0xff] %vm3697, %v3596
      %3742 = vst.msk [vmem:[%s224 + $0x160] sm:$0xff] %vm3697, %v3597
      %3743 = vst.msk [vmem:[%s224 + $0x168] sm:$0xff] %vm3697, %v3598
      %3744 = vst.msk [vmem:[%s224 + $0x170] sm:$0xff] %vm3697, %v3599
      %3745 = vst.msk [vmem:[%s224 + $0x178] sm:$0xff] %vm3697, %v3600
      %3746 = vst.msk [vmem:[%s224 + $0x180] sm:$0xff] %vm3697, %v3601
      %3747 = vst.msk [vmem:[%s224 + $0x188] sm:$0xff] %vm3697, %v3602
      %3748 = vst.msk [vmem:[%s224 + $0x190] sm:$0xff] %vm3697, %v3603
      %3749 = vst.msk [vmem:[%s224 + $0x198] sm:$0xff] %vm3697, %v3604
      %3750 = vst.msk [vmem:[%s224 + $0x1a0] sm:$0xff] %vm3697, %v3605
      %3751 = vst.msk [vmem:[%s224 + $0x1a8] sm:$0xff] %vm3697, %v3606
      %3752 = vst.msk [vmem:[%s224 + $0x1b0] sm:$0xff] %vm3697, %v3607
      %3753 = vst.msk [vmem:[%s224 + $0x1b8] sm:$0xff] %vm3697, %v3608
      %3754 = vst.msk [vmem:[%s224 + $0x1c0] sm:$0xff] %vm3697, %v3609
      %3755 = vst.msk [vmem:[%s224 + $0x1c8] sm:$0xff] %vm3697, %v3610
      %3756 = vst.msk [vmem:[%s224 + $0x1d0] sm:$0xff] %vm3697, %v3611
      %3757 = vst.msk [vmem:[%s224 + $0x1d8] sm:$0xff] %vm3697, %v3612
      %3758 = vst.msk [vmem:[%s224 + $0x1e0] sm:$0xff] %vm3697, %v3613
      %3759 = vst.msk [vmem:[%s224 + $0x1e8] sm:$0xff] %vm3697, %v3614
      %3760 = vst.msk [vmem:[%s224 + $0x1f0] sm:$0xff] %vm3697, %v3615
      %3761 = vst.msk [vmem:[%s224 + $0x1f8] sm:$0xff] %vm3697, %v3616
      %3762 = vst.msk [vmem:[%s224 + $0x200] sm:$0xff] %vm3697, %v3617
      %3763 = vst.msk [vmem:[%s224 + $0x208] sm:$0xff] %vm3697, %v3618
      %3764 = vst.msk [vmem:[%s224 + $0x210] sm:$0xff] %vm3697, %v3619
      %3765 = vst.msk [vmem:[%s224 + $0x218] sm:$0xff] %vm3697, %v3620
      %3766 = vst.msk [vmem:[%s224 + $0x220] sm:$0xff] %vm3697, %v3621
      %3767 = vst.msk [vmem:[%s224 + $0x228] sm:$0xff] %vm3697, %v3622
      %3768 = vst.msk [vmem:[%s224 + $0x230] sm:$0xff] %vm3697, %v3623
      %3769 = vst.msk [vmem:[%s224 + $0x238] sm:$0xff] %vm3697, %v3624
      %3770 = vst.msk [vmem:[%s224 + $0x240] sm:$0xff] %vm3697, %v3625
      %3771 = vst.msk [vmem:[%s224 + $0x248] sm:$0xff] %vm3697, %v3626
      %3772 = vst.msk [vmem:[%s224 + $0x250] sm:$0xff] %vm3697, %v3627
      %3773 = vst.msk [vmem:[%s224 + $0x258] sm:$0xff] %vm3697, %v3628
      %3774 = vst.msk [vmem:[%s224 + $0x260] sm:$0xff] %vm3697, %v3629
      %3775 = vst.msk [vmem:[%s224 + $0x268] sm:$0xff] %vm3697, %v3630
      %3776 = vst.msk [vmem:[%s224 + $0x270] sm:$0xff] %vm3697, %v3631
      %3777 = vst.msk [vmem:[%s224 + $0x278] sm:$0xff] %vm3697, %v3632
      %3778 = vst.msk [vmem:[%s224 + $0x280] sm:$0xff] %vm3697, %v3633
      %3779 = vst.msk [vmem:[%s224 + $0x288] sm:$0xff] %vm3697, %v3634
      %3780 = vst.msk [vmem:[%s224 + $0x290] sm:$0xff] %vm3697, %v3635
      %3781 = vst.msk [vmem:[%s224 + $0x298] sm:$0xff] %vm3697, %v3636
      %3782 = vst.msk [vmem:[%s224 + $0x2a0] sm:$0xff] %vm3697, %v3637
      %3783 = vst.msk [vmem:[%s224 + $0x2a8] sm:$0xff] %vm3697, %v3638
      %3784 = vst.msk [vmem:[%s224 + $0x2b0] sm:$0xff] %vm3697, %v3639
      %3785 = vst.msk [vmem:[%s224 + $0x2b8] sm:$0xff] %vm3697, %v3640
      %3786 = vst.msk [vmem:[%s224 + $0x2c0] sm:$0xff] %vm3697, %v3641
      %3787 = vst.msk [vmem:[%s224 + $0x2c8] sm:$0xff] %vm3697, %v3642
      %3788 = vst.msk [vmem:[%s224 + $0x2d0] sm:$0xff] %vm3697, %v3643
      %3789 = vst.msk [vmem:[%s224 + $0x2d8] sm:$0xff] %vm3697, %v3644
      %3790 = vst.msk [vmem:[%s224 + $0x2e0] sm:$0xff] %vm3697, %v3645
      %3791 = vst.msk [vmem:[%s224 + $0x2e8] sm:$0xff] %vm3697, %v3646
      %3792 = vst.msk [vmem:[%s224 + $0x2f0] sm:$0xff] %vm3697, %v3647
      %3793 = vst.msk [vmem:[%s224 + $0x2f8] sm:$0xff] %vm3697, %v3648
      %3794 = vst.msk [vmem:[%s224 + $0x300] sm:$0xff] %vm3697, %v3649
      %3795 = vst.msk [vmem:[%s224 + $0x308] sm:$0xff] %vm3697, %v3650
      %3796 = vst.msk [vmem:[%s224 + $0x310] sm:$0xff] %vm3697, %v3651
      %3797 = vst.msk [vmem:[%s224 + $0x318] sm:$0xff] %vm3697, %v3652
      %3798 = vst.msk [vmem:[%s224 + $0x320] sm:$0xff] %vm3697, %v3653
      %3799 = vst.msk [vmem:[%s224 + $0x328] sm:$0xff] %vm3697, %v3654
      %3800 = vst.msk [vmem:[%s224 + $0x330] sm:$0xff] %vm3697, %v3655
      %3801 = vst.msk [vmem:[%s224 + $0x338] sm:$0xff] %vm3697, %v3656
      %3802 = vst.msk [vmem:[%s224 + $0x340] sm:$0xff] %vm3697, %v3657
      %3803 = vst.msk [vmem:[%s224 + $0x348] sm:$0xff] %vm3697, %v3658
      %3804 = vst.msk [vmem:[%s224 + $0x350] sm:$0xff] %vm3697, %v3659
      %3805 = vst.msk [vmem:[%s224 + $0x358] sm:$0xff] %vm3697, %v3660
      %3806 = vst.msk [vmem:[%s224 + $0x360] sm:$0xff] %vm3697, %v3661
      %3807 = vst.msk [vmem:[%s224 + $0x368] sm:$0xff] %vm3697, %v3662
      %3808 = vst.msk [vmem:[%s224 + $0x370] sm:$0xff] %vm3697, %v3663
      %3809 = vst.msk [vmem:[%s224 + $0x378] sm:$0xff] %vm3697, %v3664
      %3810 = vst.msk [vmem:[%s224 + $0x380] sm:$0xff] %vm3697, %v3665
      %3811 = vst.msk [vmem:[%s224 + $0x388] sm:$0xff] %vm3697, %v3666
      %3812 = vst.msk [vmem:[%s224 + $0x390] sm:$0xff] %vm3697, %v3667
      %3813 = vst.msk [vmem:[%s224 + $0x398] sm:$0xff] %vm3697, %v3668
      %3814 = vst.msk [vmem:[%s224 + $0x3a0] sm:$0xff] %vm3697, %v3669
      %3815 = vst.msk [vmem:[%s224 + $0x3a8] sm:$0xff] %vm3697, %v3670
      %3816 = vst.msk [vmem:[%s224 + $0x3b0] sm:$0xff] %vm3697, %v3671
      %3817 = vst.msk [vmem:[%s224 + $0x3b8] sm:$0xff] %vm3697, %v3672
      %3818 = vst.msk [vmem:[%s224 + $0x3c0] sm:$0xff] %vm3697, %v3673
      %3819 = vst.msk [vmem:[%s224 + $0x3c8] sm:$0xff] %vm3697, %v3674
      %3820 = vst.msk [vmem:[%s224 + $0x3d0] sm:$0xff] %vm3697, %v3675
      %3821 = vst.msk [vmem:[%s224 + $0x3d8] sm:$0xff] %vm3697, %v3676
      %3822 = vst.msk [vmem:[%s224 + $0x3e0] sm:$0xff] %vm3697, %v3677
      %3823 = vst.msk [vmem:[%s224 + $0x3e8] sm:$0xff] %vm3697, %v3678
      %3824 = vst.msk [vmem:[%s224 + $0x3f0] sm:$0xff] %vm3697, %v3679
      %3825 = vst.msk [vmem:[%s224 + $0x3f8] sm:$0xff] %vm3697, %v3680
      %3826 = vst.msk [vmem:[%s224 + $0x400] sm:$0xff] %vm3697, %v3681
      %3827 = vst.msk [vmem:[%s224 + $0x408] sm:$0xff] %vm3697, %v3682
      %3828 = vst.msk [vmem:[%s224 + $0x410] sm:$0xff] %vm3697, %v3683
      %3829 = vst.msk [vmem:[%s224 + $0x418] sm:$0xff] %vm3697, %v3684
      %3830 = vst.msk [vmem:[%s224 + $0x420] sm:$0xff] %vm3697, %v3685
      %3831 = vst.msk [vmem:[%s224 + $0x428] sm:$0xff] %vm3697, %v3686
      %3832 = vst.msk [vmem:[%s224 + $0x430] sm:$0xff] %vm3697, %v3687
      %3833 = vst.msk [vmem:[%s224 + $0x438] sm:$0xff] %vm3697, %v3688
      %3834 = vst.msk [vmem:[%s224 + $0x440] sm:$0xff] %vm3697, %v3689
      %3835 = vst.msk [vmem:[%s224 + $0x448] sm:$0xff] %vm3697, %v3690
      %3836 = vst.msk [vmem:[%s224 + $0x450] sm:$0xff] %vm3697, %v3691
      %3837 = vst.msk [vmem:[%s224 + $0x458] sm:$0xff] %vm3697, %v3692
      %3838 = vst.msk [vmem:[%s224 + $0x460] sm:$0xff] %vm3697, %v3693
      %3839 = vst.msk [vmem:[%s224 + $0x468] sm:$0xff] %vm3697, %v3694
      %3840 = vst.msk [vmem:[%s224 + $0x470] sm:$0xff] %vm3697, %v3695
      %3841 = vst.msk [vmem:[%s224 + $0x478] sm:$0xff] %vm3697, %v3696
      %s3842 = smul.u32 144, %s15
      %p3843 = scmp.lt.s32.totalorder %s3842, 287
      %s3844 = scalar_select %p3843, %s3842, 287
      %s3845 = smul.addr %s3844, 8
      %s3846 = scalar_lea.vmem %s4, %s3845
      // Predicated region
      $region37: #{tpu_custom_call.1} parent=35 // pred_check
        %p3847 = pneg %p127
      $region38: #{tpu_custom_call.1} parent=35 // pred_check_branch
        %3849 = sbr.rel (%p3847) target = $region40
      $region39: #{tpu_custom_call.1} parent=35 // pred_region
        %s3850 = smul.u32 144, %s15
      $region40: #{tpu_custom_call.1} parent=35 // pred_fallthru
        _
    $region36: #{tpu_custom_call.1} parent=5 // pred_fallthru
      _
    %p3851 = scmp.le.s32.totalorder 2, %s10
    // Predicated region
    $region41: #{tpu_custom_call.1} parent=5 // pred_check
      %p3852 = pneg %p3851
    $region42: #{tpu_custom_call.1} parent=5 // pred_check_branch
      %3854 = sbr.rel (%p3852) target = $region44
    $region43: #{tpu_custom_call.1} parent=5 // pred_region
      %s3855 = ssub.s32 %s10, 2
      // Predicated region
      $region45: #{tpu_custom_call.1} parent=43 // pred_check
        %p3856 = pneg %p133
      $region46: #{tpu_custom_call.1} parent=43 // pred_check_branch
        %3858 = sbr.rel (%p3856) target = $region48
      $region47: #{tpu_custom_call.1} parent=43 // pred_region
        %s3859 = smul.u32 144, %s16
        %p3860 = scmp.lt.s32.totalorder %s3859, 287
        %s3861 = scalar_select %p3860, %s3859, 287
        %s3862 = smul.addr %s3861, 8
        %s3863 = scalar_lea.vmem %s4, %s3862
      $region48: #{tpu_custom_call.1} parent=43 // pred_fallthru
        _
    $region44: #{tpu_custom_call.1} parent=5 // pred_fallthru
      _
  $region6: #{tpu_custom_call.1} parent=0 // loop_footer
    %s14 = sadd.s32 1, %s10
  $region7: #{tpu_custom_call.1} parent=0 // loop_footer_branch
    %9 = sbr.rel target = $region3
  $region8: #{tpu_custom_call.1} parent=0 // loop_exit
    _

</llo_original>
